<compile_context>
chip_gen: v7x
topology: tpu7x:2x2x1
jax: 0.10.0
libtpu: 0.0.40
codegen_flags: <defaults>
</compile_context>

<pallas_src>
import functools

import jax
import jax.numpy as jnp
import numpy as np
from jax.experimental import pallas as pl
from jax.experimental.pallas import tpu as pltpu

_LANES = 128  # lane-dense channel padding for the MXU / stores


def _round_up(x, m):
    return (x + m - 1) // m * m


# ----------------------------------------------------------------------------
# Generation-aware VMEM limit and Buffered(1) probe
# ----------------------------------------------------------------------------
def _vmem_limit_bytes():
    """~75% of physical VMEM (v7x: ~48 MiB of 64; v5e/v6e: ~96 MiB of 128)."""
    try:
        cap = getattr(pltpu.get_tpu_info(), "vmem_capacity_bytes", None)
        if cap:
            return int(cap) * 3 // 4
    except Exception:
        pass
    return 32 * 1024 * 1024  # conservative fallback; this kernel needs far less


_WEIGHT_PIPE = None
_WEIGHT_PIPE_SET = False


def _weight_pipeline_mode():
    """pl.Buffered(1) for grid-invariant weights (no pointless double-buffer).

    Probed once with a tiny kernel so older jax versions that reject
    buffer_count=1 (or the pipeline_mode kwarg) gracefully fall back.
    """
    global _WEIGHT_PIPE, _WEIGHT_PIPE_SET
    if _WEIGHT_PIPE_SET:
        return _WEIGHT_PIPE
    try:
        def k(w_ref, o_ref):
            o_ref[...] = w_ref[...] + 1.0

        w = jnp.zeros((8, 128), jnp.float32)
        out = pl.pallas_call(
            k,
            out_shape=jax.ShapeDtypeStruct((16, 128), jnp.float32),
            grid=(2,),
            in_specs=[pl.BlockSpec((8, 128), lambda i: (0, 0),
                                   pipeline_mode=pl.Buffered(1))],
            out_specs=pl.BlockSpec((8, 128), lambda i: (i, 0)),
        )(w)
        jax.block_until_ready(out)
        _WEIGHT_PIPE = pl.Buffered(1)
    except Exception:
        _WEIGHT_PIPE = None
    _WEIGHT_PIPE_SET = True
    return _WEIGHT_PIPE


def _invariant_spec(shape, wmode):
    """BlockSpec for a grid-invariant (weight/bias) input."""
    zeros = (0,) * len(shape)
    index_map = lambda n, _z=zeros: _z
    if wmode is None:
        return pl.BlockSpec(shape, index_map)
    return pl.BlockSpec(shape, index_map, pipeline_mode=wmode)


# ----------------------------------------------------------------------------
# Fused resblock kernel (per batch element)
# ----------------------------------------------------------------------------
def _make_resblock_kernel(stride, Ho, Wo, Cin, Cp, n_ph):
    s = stride
    M = Ho * Wo

    def kernel(*refs):
        phase = refs[:n_ph]
        w1r_ref, b1r_ref, w2_ref, b2_ref, out_ref, hpad_ref = refs[n_ph:]

        # ---- stage 1: conv1 (main) + residual conv, fused along Cout ------
        # 9 shifted-window taps; each tap's LHS is a contiguous (Ho, Wo)
        # window of one spatial phase of the padded input.
        acc1 = jnp.zeros((M, 2 * Cp), jnp.float32)
        for kh in range(3):
            for kw in range(3):
                p = (kh % s) * s + (kw % s)
                r0, c0 = kh // s, kw // s
                win = phase[p][0, r0:r0 + Ho, c0:c0 + Wo, :]   # (Ho, Wo, Cin) bf16
                # f32 detour keeps the leading-dim collapse a layout no-op.
                lhs = win.astype(jnp.float32).reshape(M, Cin).astype(jnp.bfloat16)
                acc1 = acc1 + jnp.dot(lhs, w1r_ref[kh, kw],
                                      preferred_element_type=jnp.float32)
        acc1 = acc1 + b1r_ref[...]
        h = jnp.maximum(acc1[:, :Cp], 0.0)     # relu(bn1(conv1(x)))   (M, Cp) f32
        res = acc1[:, Cp:]                     # bnr(convr(x))         (M, Cp) f32

        # ---- stage 2: conv2 on h via a zero-padded VMEM halo tile ----------
        hpad_ref[...] = jnp.zeros_like(hpad_ref)
        hpad_ref[1:1 + Ho, 1:1 + Wo, :] = h.reshape(Ho, Wo, Cp)
        acc2 = jnp.zeros((M, Cp), jnp.float32)
        for kh in range(3):
            for kw in range(3):
                win = hpad_ref[kh:kh + Ho, kw:kw + Wo, :]      # (Ho, Wo, Cp) f32
                lhs = win.reshape(M, Cp).astype(jnp.bfloat16)
                acc2 = acc2 + jnp.dot(lhs, w2_ref[kh, kw],
                                      preferred_element_type=jnp.float32)

        # bn2(conv2(h)) + residual, ReLU -- epilogue in f32, stored as bf16.
        out = jnp.maximum(acc2 + b2_ref[...] + res, 0.0)
        out_ref[0] = out.astype(out_ref.dtype)

    return kernel


# ----------------------------------------------------------------------------
# JAX-side glue
# ----------------------------------------------------------------------------
def _split_phases(xp, stride, need_h, need_w):
    """Split the padded NHWC input into stride x stride spatial phases so every
    3x3 tap becomes a contiguous (Ho, Wo) window of one phase tensor."""
    s = stride
    hp_req = (s - 1) + s * (need_h - 1) + 1
    wp_req = (s - 1) + s * (need_w - 1) + 1
    eh = max(0, hp_req - xp.shape[1])
    ew = max(0, wp_req - xp.shape[2])
    if eh or ew:
        xp = jnp.pad(xp, ((0, 0), (0, eh), (0, ew), (0, 0)))
    return [xp[:, pr::s, pc::s, :][:, :need_h, :need_w, :]
            for pr in range(s) for pc in range(s)]


def _fold_conv_bn(w_oihw, conv_b, gamma, beta, mean, var, eps=1e-5):
    """Fold inference BN into the conv -> (3,3,Cin,Cout) weight, (Cout,) bias."""
    scale = gamma / jnp.sqrt(var + eps)
    w = jnp.transpose(w_oihw, (2, 3, 1, 0)) * scale
    b = beta + (conv_b - mean) * scale
    return w, b


def _pad_last(a, size):
    pad = size - a.shape[-1]
    if pad:
        a = jnp.pad(a, [(0, 0)] * (a.ndim - 1) + [(0, pad)])
    return a


def prepare_resblock_params(params, lanes=_LANES):
    """One-time weight prep (hoisted out of the forward path)."""
    cout = params["w1"].shape[0]
    cp = _round_up(cout, lanes)
    w1, b1 = _fold_conv_bn(params["w1"], params["b1"], params["g1"], params["be1"],
                           params["m1"], params["v1"])
    wr, br = _fold_conv_bn(params["wr"], params["br"], params["gr"], params["ber"],
                           params["mr"], params["vr"])
    w2, b2 = _fold_conv_bn(params["w2"], params["b2"], params["g2"], params["be2"],
                           params["m2"], params["v2"])
    w1r = jnp.concatenate([_pad_last(w1, cp), _pad_last(wr, cp)], axis=-1)
    b1r = jnp.concatenate([_pad_last(b1, cp), _pad_last(br, cp)])[None, :]
    w2p = _pad_last(w2, cp)
    w2p = jnp.pad(w2p, ((0, 0), (0, 0), (0, cp - cout), (0, 0)))  # pad conv2's Cin
    b2p = _pad_last(b2, cp)[None, :]
    _weight_pipeline_mode()  # run the Buffered(1) probe eagerly, once
    return dict(w1r=w1r.astype(jnp.bfloat16), b1r=b1r.astype(jnp.float32),
                w2p=w2p.astype(jnp.bfloat16), b2p=b2p.astype(jnp.float32),
                cout=cout)


@functools.partial(jax.jit, static_argnames=("stride", "cout"))
def resblock_forward(x_nchw, w1r, b1r, w2p, b2p, *, stride, cout):
    N, Cin, H, W = x_nchw.shape
    Cp = b2p.shape[-1]
    s = stride
    Ho = (H + 2 - 3) // s + 1
    Wo = (W + 2 - 3) // s + 1
    M = Ho * Wo

    x = jnp.transpose(x_nchw, (0, 2, 3, 1)).astype(jnp.bfloat16)  # NCHW -> NHWC bf16
    xp = jnp.pad(x, ((0, 0), (1, 1), (1, 1), (0, 0)))
    need_h = Ho + (2 // s)
    need_w = Wo + (2 // s)
    phases = _split_phases(xp, s, need_h, need_w)
    n_ph = len(phases)

    wmode = _weight_pipeline_mode()
    kern = _make_resblock_kernel(s, Ho, Wo, Cin, Cp, n_ph)

    phase_specs = [pl.BlockSpec((1, need_h, need_w, Cin), lambda n: (n, 0, 0, 0))
                   for _ in range(n_ph)]
    weight_specs = [
        _invariant_spec(w1r.shape, wmode),
        _invariant_spec(b1r.shape, wmode),
        _invariant_spec(w2p.shape, wmode),
        _invariant_spec(b2p.shape, wmode),
    ]

    flops = 2 * N * M * (9 * Cin * 2 * Cp + 9 * Cp * Cp)
    bytes_acc = (sum(int(p.size) * 2 for p in phases)
                 + int(w1r.size) * 2 + int(w2p.size) * 2
                 + (int(b1r.size) + int(b2p.size)) * 4
                 + N * M * Cp * 2)

    out = pl.pallas_call(
        kern,
        out_shape=jax.ShapeDtypeStruct((N, M, Cp), jnp.bfloat16),
        grid_spec=pltpu.PrefetchScalarGridSpec(
            num_scalar_prefetch=0,
            grid=(N,),
            in_specs=phase_specs + weight_specs,
            out_specs=pl.BlockSpec((1, M, Cp), lambda n: (n, 0, 0)),
            scratch_shapes=[pltpu.VMEM((Ho + 2, Wo + 2, Cp), jnp.float32)],
        ),
        compiler_params=pltpu.CompilerParams(
            dimension_semantics=("parallel",),
            vmem_limit_bytes=_vmem_limit_bytes()),
        cost_estimate=pl.CostEstimate(flops=flops, transcendentals=0,
                                      bytes_accessed=bytes_acc),
    )(*phases, w1r, b1r, w2p, b2p)

    out = out.reshape(N, Ho, Wo, Cp)[..., :cout].astype(jnp.float32)
    return jnp.transpose(out, (0, 3, 1, 2))  # NHWC -> NCHW


# ----------------------------------------------------------------------------
# Pure-JAX reference (lax.conv, float32) for correctness checking
# ----------------------------------------------------------------------------
def _conv_ref(x_nhwc, w_oihw, b, stride):
    w = jnp.transpose(w_oihw, (2, 3, 1, 0))  # HWIO
    y = jax.lax.conv_general_dilated(
        x_nhwc, w, (stride, stride), [(1, 1), (1, 1)],
        dimension_numbers=("NHWC", "HWIO", "NHWC"))
    return y + b[None, None, None, :]


def _bn_ref(y, g, be, m, v, eps=1e-5):
    return (y - m) / jnp.sqrt(v + eps) * g + be


def resblock_ref(x_nchw, p, stride):
    x = jnp.transpose(x_nchw, (0, 2, 3, 1))
    h = _bn_ref(_conv_ref(x, p["w1"], p["b1"], stride), p["g1"], p["be1"], p["m1"], p["v1"])
    h = jnp.maximum(h, 0.0)
    y = _bn_ref(_conv_ref(h, p["w2"], p["b2"], 1), p["g2"], p["be2"], p["m2"], p["v2"])
    r = _bn_ref(_conv_ref(x, p["wr"], p["br"], stride), p["gr"], p["ber"], p["mr"], p["vr"])
    out = jnp.maximum(y + r, 0.0)
    return jnp.transpose(out, (0, 3, 1, 2))


# ----------------------------------------------------------------------------
if __name__ == "__main__":
    N, Cin, H, W, Cout, stride = 2, 4, 16, 16, 8, 2

    key = jax.random.PRNGKey(0)
    ks = jax.random.split(key, 22)

    def bn_params(k0, k1, k2, k3, c):
        return (jax.random.uniform(k0, (c,), jnp.float32, 0.5, 1.5),   # gamma
                0.1 * jax.random.normal(k1, (c,), jnp.float32),        # beta
                0.1 * jax.random.normal(k2, (c,), jnp.float32),        # running_mean
                jax.random.uniform(k3, (c,), jnp.float32, 0.5, 1.5))   # running_var

    g1, be1, m1, v1 = bn_params(ks[4], ks[5], ks[6], ks[7], Cout)
    g2, be2, m2, v2 = bn_params(ks[8], ks[9], ks[10], ks[11], Cout)
    gr, ber, mr, vr = bn_params(ks[12], ks[13], ks[14], ks[15], Cout)

    params = dict(
        w1=0.1 * jax.random.normal(ks[1], (Cout, Cin, 3, 3), jnp.float32),
        b1=0.05 * jax.random.normal(ks[16], (Cout,), jnp.float32),
        w2=0.1 * jax.random.normal(ks[2], (Cout, Cout, 3, 3), jnp.float32),
        b2=0.05 * jax.random.normal(ks[17], (Cout,), jnp.float32),
        wr=0.1 * jax.random.normal(ks[3], (Cout, Cin, 3, 3), jnp.float32),
        br=0.05 * jax.random.normal(ks[18], (Cout,), jnp.float32),
        g1=g1, be1=be1, m1=m1, v1=v1,
        g2=g2, be2=be2, m2=m2, v2=v2,
        gr=gr, ber=ber, mr=mr, vr=vr,
    )

    x = jax.random.normal(ks[0], (N, Cin, H, W), jnp.float32)

    prep = prepare_resblock_params(params)           # one-time weight prep
    out = jax.block_until_ready(
        resblock_forward(x, prep["w1r"], prep["b1r"], prep["w2p"], prep["b2p"],
                         stride=stride, cout=prep["cout"]))
    ref = jax.block_until_ready(resblock_ref(x, params, stride))

    assert out.shape == (N, Cout, H // stride, W // stride), out.shape
    # bf16 operands / bf16 output (f32 MXU accumulation) -> loosened tolerance
    np.testing.assert_allclose(np.asarray(out), np.asarray(ref), atol=5e-2, rtol=5e-2)

    print("KERNEL_OK")
</pallas_src>

<mosaic_0001>
module attributes {stable_mosaic.version = 11 : i64} {
  func.func @k(%arg0: i32, %arg1: memref<8x128xf32, #tpu.memory_space<vmem>>, %arg2: memref<8x128xf32, #tpu.memory_space<vmem>>) attributes {dimension_semantics = [#tpu.dimension_semantics<arbitrary>], iteration_bounds = array<i64: 2>, scalar_prefetch = 0 : i64, scratch_operands = 0 : i64, tpu.core_type = #tpu.core_type<tc>, window_params = [{pipeline_mode = #tpu.pipeline_mode<synchronous>, transform_indices = @transform_0, window_bounds = array<i64: 8, 128>}, {transform_indices = @transform_1, window_bounds = array<i64: 8, 128>}]} {
    %c0 = arith.constant 0 : index
    %c0_0 = arith.constant 0 : index
    %0 = vector.load %arg1[%c0, %c0_0] : memref<8x128xf32, #tpu.memory_space<vmem>>, vector<8x128xf32>
    %cst = arith.constant 1.000000e+00 : f32
    %1 = vector.broadcast %cst : f32 to vector<8x128xf32>
    %2 = arith.addf %0, %1 : vector<8x128xf32>
    %c0_1 = arith.constant 0 : index
    %c0_2 = arith.constant 0 : index
    %3 = vector.load %arg2[%c0_1, %c0_2] : memref<8x128xf32, #tpu.memory_space<vmem>>, vector<8x128xf32>
    tpu.vector_store %arg2[%c0_1, %c0_2], %2 {strides = array<i32>} : memref<8x128xf32, #tpu.memory_space<vmem>>, vector<8x128xf32>,
    return
  }
  func.func @transform_0(%arg0: i32) -> (i32, i32) {
    %c0_i32 = arith.constant 0 : i32
    %c0_i32_0 = arith.constant 0 : i32
    %c0_i32_1 = arith.constant 0 : i32
    return %c0_i32, %c0_i32_0 : i32, i32
  }
  func.func @transform_1(%arg0: i32) -> (i32, i32) {
    %c0_i32 = arith.constant 0 : i32
    %c0_i32_0 = arith.constant 0 : i32
    return %arg0, %c0_i32 : i32, i32
  }
}

module attributes {stable_mosaic.version = 11 : i64} {
  func.func @kernel(%arg0: i32, %arg1: memref<1x9x9x4xbf16, #tpu.memory_space<vmem>>, %arg2: memref<1x9x9x4xbf16, #tpu.memory_space<vmem>>, %arg3: memref<1x9x9x4xbf16, #tpu.memory_space<vmem>>, %arg4: memref<1x9x9x4xbf16, #tpu.memory_space<vmem>>, %arg5: memref<3x3x4x256xbf16, #tpu.memory_space<vmem>>, %arg6: memref<1x256xf32, #tpu.memory_space<vmem>>, %arg7: memref<3x3x128x128xbf16, #tpu.memory_space<vmem>>, %arg8: memref<1x128xf32, #tpu.memory_space<vmem>>, %arg9: memref<1x64x128xbf16, #tpu.memory_space<vmem>>, %arg10: memref<10x10x128xf32, #tpu.memory_space<vmem>>) attributes {dimension_semantics = [#tpu.dimension_semantics<parallel>], iteration_bounds = array<i64: 2>, scalar_prefetch = 0 : i64, scratch_operands = 1 : i64, tpu.core_type = #tpu.core_type<tc>, window_params = [{transform_indices = @transform_0, window_bounds = array<i64: 1, 9, 9, 4>}, {transform_indices = @transform_1, window_bounds = array<i64: 1, 9, 9, 4>}, {transform_indices = @transform_2, window_bounds = array<i64: 1, 9, 9, 4>}, {transform_indices = @transform_3, window_bounds = array<i64: 1, 9, 9, 4>}, {pipeline_mode = #tpu.pipeline_mode<synchronous>, transform_indices = @transform_4, window_bounds = array<i64: 3, 3, 4, 256>}, {pipeline_mode = #tpu.pipeline_mode<synchronous>, transform_indices = @transform_5, window_bounds = array<i64: 1, 256>}, {pipeline_mode = #tpu.pipeline_mode<synchronous>, transform_indices = @transform_6, window_bounds = array<i64: 3, 3, 128, 128>}, {pipeline_mode = #tpu.pipeline_mode<synchronous>, transform_indices = @transform_7, window_bounds = array<i64: 1, 128>}, {transform_indices = @transform_8, window_bounds = array<i64: 1, 64, 128>}]} {
    %cst = arith.constant 0.000000e+00 : f32
    %0 = vector.broadcast %cst : f32 to vector<64x256xf32>
    %c0 = arith.constant 0 : index
    %c0_0 = arith.constant 0 : index
    %c0_1 = arith.constant 0 : index
    %c0_2 = arith.constant 0 : index
    %1 = vector.load %arg1[%c0, %c0_0, %c0_1, %c0_2] : memref<1x9x9x4xbf16, #tpu.memory_space<vmem>>, vector<1x8x8x4xbf16>
    %2 = vector.shape_cast %1 : vector<1x8x8x4xbf16> to vector<8x8x4xbf16>
    %3 = arith.extf %2 : vector<8x8x4xbf16> to vector<8x8x4xf32>
    %4 = vector.shape_cast %3 : vector<8x8x4xf32> to vector<64x4xf32>
    %5 = arith.truncf %4 : vector<64x4xf32> to vector<64x4xbf16>
    %c0_3 = arith.constant 0 : index
    %c0_4 = arith.constant 0 : index
    %c0_5 = arith.constant 0 : index
    %c0_6 = arith.constant 0 : index
    %6 = vector.load %arg5[%c0_3, %c0_4, %c0_5, %c0_6] : memref<3x3x4x256xbf16, #tpu.memory_space<vmem>>, vector<1x1x4x256xbf16>
    %7 = vector.shape_cast %6 : vector<1x1x4x256xbf16> to vector<4x256xbf16>
    %cst_7 = arith.constant dense<0.000000e+00> : vector<64x256xf32>
    %8 = tpu.matmul %5, %7, %cst_7 {dimension_numbers = #tpu.dot_dimension_numbers<[1], [0], [0], [1], [0, 0, 1, 1], [], []>} : vector<64x4xbf16>, vector<4x256xbf16>, vector<64x256xf32> -> vector<64x256xf32>
    %9 = arith.addf %0, %8 : vector<64x256xf32>
    %c0_8 = arith.constant 0 : index
    %c0_9 = arith.constant 0 : index
    %c0_10 = arith.constant 0 : index
    %c0_11 = arith.constant 0 : index
    %10 = vector.load %arg2[%c0_8, %c0_9, %c0_10, %c0_11] : memref<1x9x9x4xbf16, #tpu.memory_space<vmem>>, vector<1x8x8x4xbf16>
    %11 = vector.shape_cast %10 : vector<1x8x8x4xbf16> to vector<8x8x4xbf16>
    %12 = arith.extf %11 : vector<8x8x4xbf16> to vector<8x8x4xf32>
    %13 = vector.shape_cast %12 : vector<8x8x4xf32> to vector<64x4xf32>
    %14 = arith.truncf %13 : vector<64x4xf32> to vector<64x4xbf16>
    %c0_12 = arith.constant 0 : index
    %c1 = arith.constant 1 : index
    %c0_13 = arith.constant 0 : index
    %c0_14 = arith.constant 0 : index
    %15 = vector.load %arg5[%c0_12, %c1, %c0_13, %c0_14] : memref<3x3x4x256xbf16, #tpu.memory_space<vmem>>, vector<1x1x4x256xbf16>
    %16 = vector.shape_cast %15 : vector<1x1x4x256xbf16> to vector<4x256xbf16>
    %cst_15 = arith.constant dense<0.000000e+00> : vector<64x256xf32>
    %17 = tpu.matmul %14, %16, %cst_15 {dimension_numbers = #tpu.dot_dimension_numbers<[1], [0], [0], [1], [0, 0, 1, 1], [], []>} : vector<64x4xbf16>, vector<4x256xbf16>, vector<64x256xf32> -> vector<64x256xf32>
    %18 = arith.addf %9, %17 : vector<64x256xf32>
    %c0_16 = arith.constant 0 : index
    %c0_17 = arith.constant 0 : index
    %c1_18 = arith.constant 1 : index
    %c0_19 = arith.constant 0 : index
    %19 = vector.load %arg1[%c0_16, %c0_17, %c1_18, %c0_19] : memref<1x9x9x4xbf16, #tpu.memory_space<vmem>>, vector<1x8x8x4xbf16>
    %20 = vector.shape_cast %19 : vector<1x8x8x4xbf16> to vector<8x8x4xbf16>
    %21 = arith.extf %20 : vector<8x8x4xbf16> to vector<8x8x4xf32>
    %22 = vector.shape_cast %21 : vector<8x8x4xf32> to vector<64x4xf32>
    %23 = arith.truncf %22 : vector<64x4xf32> to vector<64x4xbf16>
    %c0_20 = arith.constant 0 : index
    %c2 = arith.constant 2 : index
    %c0_21 = arith.constant 0 : index
    %c0_22 = arith.constant 0 : index
    %24 = vector.load %arg5[%c0_20, %c2, %c0_21, %c0_22] : memref<3x3x4x256xbf16, #tpu.memory_space<vmem>>, vector<1x1x4x256xbf16>
    %25 = vector.shape_cast %24 : vector<1x1x4x256xbf16> to vector<4x256xbf16>
    %cst_23 = arith.constant dense<0.000000e+00> : vector<64x256xf32>
    %26 = tpu.matmul %23, %25, %cst_23 {dimension_numbers = #tpu.dot_dimension_numbers<[1], [0], [0], [1], [0, 0, 1, 1], [], []>} : vector<64x4xbf16>, vector<4x256xbf16>, vector<64x256xf32> -> vector<64x256xf32>
    %27 = arith.addf %18, %26 : vector<64x256xf32>
    %c0_24 = arith.constant 0 : index
    %c0_25 = arith.constant 0 : index
    %c0_26 = arith.constant 0 : index
    %c0_27 = arith.constant 0 : index
    %28 = vector.load %arg3[%c0_24, %c0_25, %c0_26, %c0_27] : memref<1x9x9x4xbf16, #tpu.memory_space<vmem>>, vector<1x8x8x4xbf16>
    %29 = vector.shape_cast %28 : vector<1x8x8x4xbf16> to vector<8x8x4xbf16>
    %30 = arith.extf %29 : vector<8x8x4xbf16> to vector<8x8x4xf32>
    %31 = vector.shape_cast %30 : vector<8x8x4xf32> to vector<64x4xf32>
    %32 = arith.truncf %31 : vector<64x4xf32> to vector<64x4xbf16>
    %c1_28 = arith.constant 1 : index
    %c0_29 = arith.constant 0 : index
    %c0_30 = arith.constant 0 : index
    %c0_31 = arith.constant 0 : index
    %33 = vector.load %arg5[%c1_28, %c0_29, %c0_30, %c0_31] : memref<3x3x4x256xbf16, #tpu.memory_space<vmem>>, vector<1x1x4x256xbf16>
    %34 = vector.shape_cast %33 : vector<1x1x4x256xbf16> to vector<4x256xbf16>
    %cst_32 = arith.constant dense<0.000000e+00> : vector<64x256xf32>
    %35 = tpu.matmul %32, %34, %cst_32 {dimension_numbers = #tpu.dot_dimension_numbers<[1], [0], [0], [1], [0, 0, 1, 1], [], []>} : vector<64x4xbf16>, vector<4x256xbf16>, vector<64x256xf32> -> vector<64x256xf32>
    %36 = arith.addf %27, %35 : vector<64x256xf32>
    %c0_33 = arith.constant 0 : index
    %c0_34 = arith.constant 0 : index
    %c0_35 = arith.constant 0 : index
    %c0_36 = arith.constant 0 : index
    %37 = vector.load %arg4[%c0_33, %c0_34, %c0_35, %c0_36] : memref<1x9x9x4xbf16, #tpu.memory_space<vmem>>, vector<1x8x8x4xbf16>
    %38 = vector.shape_cast %37 : vector<1x8x8x4xbf16> to vector<8x8x4xbf16>
    %39 = arith.extf %38 : vector<8x8x4xbf16> to vector<8x8x4xf32>
    %40 = vector.shape_cast %39 : vector<8x8x4xf32> to vector<64x4xf32>
    %41 = arith.truncf %40 : vector<64x4xf32> to vector<64x4xbf16>
    %c1_37 = arith.constant 1 : index
    %c1_38 = arith.constant 1 : index
    %c0_39 = arith.constant 0 : index
    %c0_40 = arith.constant 0 : index
    %42 = vector.load %arg5[%c1_37, %c1_38, %c0_39, %c0_40] : memref<3x3x4x256xbf16, #tpu.memory_space<vmem>>, vector<1x1x4x256xbf16>
    %43 = vector.shape_cast %42 : vector<1x1x4x256xbf16> to vector<4x256xbf16>
    %cst_41 = arith.constant dense<0.000000e+00> : vector<64x256xf32>
    %44 = tpu.matmul %41, %43, %cst_41 {dimension_numbers = #tpu.dot_dimension_numbers<[1], [0], [0], [1], [0, 0, 1, 1], [], []>} : vector<64x4xbf16>, vector<4x256xbf16>, vector<64x256xf32> -> vector<64x256xf32>
    %45 = arith.addf %36, %44 : vector<64x256xf32>
    %c0_42 = arith.constant 0 : index
    %c0_43 = arith.constant 0 : index
    %c1_44 = arith.constant 1 : index
    %c0_45 = arith.constant 0 : index
    %46 = vector.load %arg3[%c0_42, %c0_43, %c1_44, %c0_45] : memref<1x9x9x4xbf16, #tpu.memory_space<vmem>>, vector<1x8x8x4xbf16>
    %47 = vector.shape_cast %46 : vector<1x8x8x4xbf16> to vector<8x8x4xbf16>
    %48 = arith.extf %47 : vector<8x8x4xbf16> to vector<8x8x4xf32>
    %49 = vector.shape_cast %48 : vector<8x8x4xf32> to vector<64x4xf32>
    %50 = arith.truncf %49 : vector<64x4xf32> to vector<64x4xbf16>
    %c1_46 = arith.constant 1 : index
    %c2_47 = arith.constant 2 : index
    %c0_48 = arith.constant 0 : index
    %c0_49 = arith.constant 0 : index
    %51 = vector.load %arg5[%c1_46, %c2_47, %c0_48, %c0_49] : memref<3x3x4x256xbf16, #tpu.memory_space<vmem>>, vector<1x1x4x256xbf16>
    %52 = vector.shape_cast %51 : vector<1x1x4x256xbf16> to vector<4x256xbf16>
    %cst_50 = arith.constant dense<0.000000e+00> : vector<64x256xf32>
    %53 = tpu.matmul %50, %52, %cst_50 {dimension_numbers = #tpu.dot_dimension_numbers<[1], [0], [0], [1], [0, 0, 1, 1], [], []>} : vector<64x4xbf16>, vector<4x256xbf16>, vector<64x256xf32> -> vector<64x256xf32>
    %54 = arith.addf %45, %53 : vector<64x256xf32>
    %c0_51 = arith.constant 0 : index
    %c1_52 = arith.constant 1 : index
    %c0_53 = arith.constant 0 : index
    %c0_54 = arith.constant 0 : index
    %55 = vector.load %arg1[%c0_51, %c1_52, %c0_53, %c0_54] : memref<1x9x9x4xbf16, #tpu.memory_space<vmem>>, vector<1x8x8x4xbf16>
    %56 = vector.shape_cast %55 : vector<1x8x8x4xbf16> to vector<8x8x4xbf16>
    %57 = arith.extf %56 : vector<8x8x4xbf16> to vector<8x8x4xf32>
    %58 = vector.shape_cast %57 : vector<8x8x4xf32> to vector<64x4xf32>
    %59 = arith.truncf %58 : vector<64x4xf32> to vector<64x4xbf16>
    %c2_55 = arith.constant 2 : index
    %c0_56 = arith.constant 0 : index
    %c0_57 = arith.constant 0 : index
    %c0_58 = arith.constant 0 : index
    %60 = vector.load %arg5[%c2_55, %c0_56, %c0_57, %c0_58] : memref<3x3x4x256xbf16, #tpu.memory_space<vmem>>, vector<1x1x4x256xbf16>
    %61 = vector.shape_cast %60 : vector<1x1x4x256xbf16> to vector<4x256xbf16>
    %cst_59 = arith.constant dense<0.000000e+00> : vector<64x256xf32>
    %62 = tpu.matmul %59, %61, %cst_59 {dimension_numbers = #tpu.dot_dimension_numbers<[1], [0], [0], [1], [0, 0, 1, 1], [], []>} : vector<64x4xbf16>, vector<4x256xbf16>, vector<64x256xf32> -> vector<64x256xf32>
    %63 = arith.addf %54, %62 : vector<64x256xf32>
    %c0_60 = arith.constant 0 : index
    %c1_61 = arith.constant 1 : index
    %c0_62 = arith.constant 0 : index
    %c0_63 = arith.constant 0 : index
    %64 = vector.load %arg2[%c0_60, %c1_61, %c0_62, %c0_63] : memref<1x9x9x4xbf16, #tpu.memory_space<vmem>>, vector<1x8x8x4xbf16>
    %65 = vector.shape_cast %64 : vector<1x8x8x4xbf16> to vector<8x8x4xbf16>
    %66 = arith.extf %65 : vector<8x8x4xbf16> to vector<8x8x4xf32>
    %67 = vector.shape_cast %66 : vector<8x8x4xf32> to vector<64x4xf32>
    %68 = arith.truncf %67 : vector<64x4xf32> to vector<64x4xbf16>
    %c2_64 = arith.constant 2 : index
    %c1_65 = arith.constant 1 : index
    %c0_66 = arith.constant 0 : index
    %c0_67 = arith.constant 0 : index
    %69 = vector.load %arg5[%c2_64, %c1_65, %c0_66, %c0_67] : memref<3x3x4x256xbf16, #tpu.memory_space<vmem>>, vector<1x1x4x256xbf16>
    %70 = vector.shape_cast %69 : vector<1x1x4x256xbf16> to vector<4x256xbf16>
    %cst_68 = arith.constant dense<0.000000e+00> : vector<64x256xf32>
    %71 = tpu.matmul %68, %70, %cst_68 {dimension_numbers = #tpu.dot_dimension_numbers<[1], [0], [0], [1], [0, 0, 1, 1], [], []>} : vector<64x4xbf16>, vector<4x256xbf16>, vector<64x256xf32> -> vector<64x256xf32>
    %72 = arith.addf %63, %71 : vector<64x256xf32>
    %c0_69 = arith.constant 0 : index
    %c1_70 = arith.constant 1 : index
    %c1_71 = arith.constant 1 : index
    %c0_72 = arith.constant 0 : index
    %73 = vector.load %arg1[%c0_69, %c1_70, %c1_71, %c0_72] : memref<1x9x9x4xbf16, #tpu.memory_space<vmem>>, vector<1x8x8x4xbf16>
    %74 = vector.shape_cast %73 : vector<1x8x8x4xbf16> to vector<8x8x4xbf16>
    %75 = arith.extf %74 : vector<8x8x4xbf16> to vector<8x8x4xf32>
    %76 = vector.shape_cast %75 : vector<8x8x4xf32> to vector<64x4xf32>
    %77 = arith.truncf %76 : vector<64x4xf32> to vector<64x4xbf16>
    %c2_73 = arith.constant 2 : index
    %c2_74 = arith.constant 2 : index
    %c0_75 = arith.constant 0 : index
    %c0_76 = arith.constant 0 : index
    %78 = vector.load %arg5[%c2_73, %c2_74, %c0_75, %c0_76] : memref<3x3x4x256xbf16, #tpu.memory_space<vmem>>, vector<1x1x4x256xbf16>
    %79 = vector.shape_cast %78 : vector<1x1x4x256xbf16> to vector<4x256xbf16>
    %cst_77 = arith.constant dense<0.000000e+00> : vector<64x256xf32>
    %80 = tpu.matmul %77, %79, %cst_77 {dimension_numbers = #tpu.dot_dimension_numbers<[1], [0], [0], [1], [0, 0, 1, 1], [], []>} : vector<64x4xbf16>, vector<4x256xbf16>, vector<64x256xf32> -> vector<64x256xf32>
    %81 = arith.addf %72, %80 : vector<64x256xf32>
    %c0_78 = arith.constant 0 : index
    %c0_79 = arith.constant 0 : index
    %82 = vector.load %arg6[%c0_78, %c0_79] : memref<1x256xf32, #tpu.memory_space<vmem>>, vector<1x256xf32>
    %83 = vector.broadcast %82 : vector<1x256xf32> to vector<64x256xf32>
    %84 = arith.addf %81, %83 : vector<64x256xf32>
    %85 = vector.extract_strided_slice %84 {offsets = [0, 0], sizes = [64, 128], strides = [1, 1]} : vector<64x256xf32> to vector<64x128xf32>
    %cst_80 = arith.constant 0.000000e+00 : f32
    %86 = vector.broadcast %cst_80 : f32 to vector<64x128xf32>
    %87 = arith.maximumf %85, %86 : vector<64x128xf32>
    %88 = vector.extract_strided_slice %84 {offsets = [0, 128], sizes = [64, 128], strides = [1, 1]} : vector<64x256xf32> to vector<64x128xf32>
    %cst_81 = arith.constant 0.000000e+00 : f32
    %89 = vector.broadcast %cst_81 : f32 to vector<10x10x128xf32>
    %c0_82 = arith.constant 0 : index
    %c0_83 = arith.constant 0 : index
    %c0_84 = arith.constant 0 : index
    %90 = vector.load %arg10[%c0_82, %c0_83, %c0_84] : memref<10x10x128xf32, #tpu.memory_space<vmem>>, vector<10x10x128xf32>
    tpu.vector_store %arg10[%c0_82, %c0_83, %c0_84], %89 {strides = array<i32>} : memref<10x10x128xf32, #tpu.memory_space<vmem>>, vector<10x10x128xf32>,
    %91 = vector.shape_cast %87 : vector<64x128xf32> to vector<8x8x128xf32>
    %c1_85 = arith.constant 1 : index
    %c1_86 = arith.constant 1 : index
    %c0_87 = arith.constant 0 : index
    %92 = vector.load %arg10[%c1_85, %c1_86, %c0_87] : memref<10x10x128xf32, #tpu.memory_space<vmem>>, vector<8x8x128xf32>
    tpu.vector_store %arg10[%c1_85, %c1_86, %c0_87], %91 {strides = array<i32>} : memref<10x10x128xf32, #tpu.memory_space<vmem>>, vector<8x8x128xf32>,
    %cst_88 = arith.constant 0.000000e+00 : f32
    %93 = vector.broadcast %cst_88 : f32 to vector<64x128xf32>
    %c0_89 = arith.constant 0 : index
    %c0_90 = arith.constant 0 : index
    %c0_91 = arith.constant 0 : index
    %94 = vector.load %arg10[%c0_89, %c0_90, %c0_91] : memref<10x10x128xf32, #tpu.memory_space<vmem>>, vector<8x8x128xf32>
    %95 = vector.shape_cast %94 : vector<8x8x128xf32> to vector<64x128xf32>
    %96 = arith.truncf %95 : vector<64x128xf32> to vector<64x128xbf16>
    %c0_92 = arith.constant 0 : index
    %c0_93 = arith.constant 0 : index
    %c0_94 = arith.constant 0 : index
    %c0_95 = arith.constant 0 : index
    %97 = vector.load %arg7[%c0_92, %c0_93, %c0_94, %c0_95] : memref<3x3x128x128xbf16, #tpu.memory_space<vmem>>, vector<1x1x128x128xbf16>
    %98 = vector.shape_cast %97 : vector<1x1x128x128xbf16> to vector<128x128xbf16>
    %cst_96 = arith.constant dense<0.000000e+00> : vector<64x128xf32>
    %99 = tpu.matmul %96, %98, %cst_96 {dimension_numbers = #tpu.dot_dimension_numbers<[1], [0], [0], [1], [0, 0, 1, 1], [], []>} : vector<64x128xbf16>, vector<128x128xbf16>, vector<64x128xf32> -> vector<64x128xf32>
    %100 = arith.addf %93, %99 : vector<64x128xf32>
    %c0_97 = arith.constant 0 : index
    %c1_98 = arith.constant 1 : index
    %c0_99 = arith.constant 0 : index
    %101 = vector.load %arg10[%c0_97, %c1_98, %c0_99] : memref<10x10x128xf32, #tpu.memory_space<vmem>>, vector<8x8x128xf32>
    %102 = vector.shape_cast %101 : vector<8x8x128xf32> to vector<64x128xf32>
    %103 = arith.truncf %102 : vector<64x128xf32> to vector<64x128xbf16>
    %c0_100 = arith.constant 0 : index
    %c1_101 = arith.constant 1 : index
    %c0_102 = arith.constant 0 : index
    %c0_103 = arith.constant 0 : index
    %104 = vector.load %arg7[%c0_100, %c1_101, %c0_102, %c0_103] : memref<3x3x128x128xbf16, #tpu.memory_space<vmem>>, vector<1x1x128x128xbf16>
    %105 = vector.shape_cast %104 : vector<1x1x128x128xbf16> to vector<128x128xbf16>
    %cst_104 = arith.constant dense<0.000000e+00> : vector<64x128xf32>
    %106 = tpu.matmul %103, %105, %cst_104 {dimension_numbers = #tpu.dot_dimension_numbers<[1], [0], [0], [1], [0, 0, 1, 1], [], []>} : vector<64x128xbf16>, vector<128x128xbf16>, vector<64x128xf32> -> vector<64x128xf32>
    %107 = arith.addf %100, %106 : vector<64x128xf32>
    %c0_105 = arith.constant 0 : index
    %c2_106 = arith.constant 2 : index
    %c0_107 = arith.constant 0 : index
    %108 = vector.load %arg10[%c0_105, %c2_106, %c0_107] : memref<10x10x128xf32, #tpu.memory_space<vmem>>, vector<8x8x128xf32>
    %109 = vector.shape_cast %108 : vector<8x8x128xf32> to vector<64x128xf32>
    %110 = arith.truncf %109 : vector<64x128xf32> to vector<64x128xbf16>
    %c0_108 = arith.constant 0 : index
    %c2_109 = arith.constant 2 : index
    %c0_110 = arith.constant 0 : index
    %c0_111 = arith.constant 0 : index
    %111 = vector.load %arg7[%c0_108, %c2_109, %c0_110, %c0_111] : memref<3x3x128x128xbf16, #tpu.memory_space<vmem>>, vector<1x1x128x128xbf16>
    %112 = vector.shape_cast %111 : vector<1x1x128x128xbf16> to vector<128x128xbf16>
    %cst_112 = arith.constant dense<0.000000e+00> : vector<64x128xf32>
    %113 = tpu.matmul %110, %112, %cst_112 {dimension_numbers = #tpu.dot_dimension_numbers<[1], [0], [0], [1], [0, 0, 1, 1], [], []>} : vector<64x128xbf16>, vector<128x128xbf16>, vector<64x128xf32> -> vector<64x128xf32>
    %114 = arith.addf %107, %113 : vector<64x128xf32>
    %c1_113 = arith.constant 1 : index
    %c0_114 = arith.constant 0 : index
    %c0_115 = arith.constant 0 : index
    %115 = vector.load %arg10[%c1_113, %c0_114, %c0_115] : memref<10x10x128xf32, #tpu.memory_space<vmem>>, vector<8x8x128xf32>
    %116 = vector.shape_cast %115 : vector<8x8x128xf32> to vector<64x128xf32>
    %117 = arith.truncf %116 : vector<64x128xf32> to vector<64x128xbf16>
    %c1_116 = arith.constant 1 : index
    %c0_117 = arith.constant 0 : index
    %c0_118 = arith.constant 0 : index
    %c0_119 = arith.constant 0 : index
    %118 = vector.load %arg7[%c1_116, %c0_117, %c0_118, %c0_119] : memref<3x3x128x128xbf16, #tpu.memory_space<vmem>>, vector<1x1x128x128xbf16>
    %119 = vector.shape_cast %118 : vector<1x1x128x128xbf16> to vector<128x128xbf16>
    %cst_120 = arith.constant dense<0.000000e+00> : vector<64x128xf32>
    %120 = tpu.matmul %117, %119, %cst_120 {dimension_numbers = #tpu.dot_dimension_numbers<[1], [0], [0], [1], [0, 0, 1, 1], [], []>} : vector<64x128xbf16>, vector<128x128xbf16>, vector<64x128xf32> -> vector<64x128xf32>
    %121 = arith.addf %114, %120 : vector<64x128xf32>
    %c1_121 = arith.constant 1 : index
    %c1_122 = arith.constant 1 : index
    %c0_123 = arith.constant 0 : index
    %122 = vector.load %arg10[%c1_121, %c1_122, %c0_123] : memref<10x10x128xf32, #tpu.memory_space<vmem>>, vector<8x8x128xf32>
    %123 = vector.shape_cast %122 : vector<8x8x128xf32> to vector<64x128xf32>
    %124 = arith.truncf %123 : vector<64x128xf32> to vector<64x128xbf16>
    %c1_124 = arith.constant 1 : index
    %c1_125 = arith.constant 1 : index
    %c0_126 = arith.constant 0 : index
    %c0_127 = arith.constant 0 : index
    %125 = vector.load %arg7[%c1_124, %c1_125, %c0_126, %c0_127] : memref<3x3x128x128xbf16, #tpu.memory_space<vmem>>, vector<1x1x128x128xbf16>
    %126 = vector.shape_cast %125 : vector<1x1x128x128xbf16> to vector<128x128xbf16>
    %cst_128 = arith.constant dense<0.000000e+00> : vector<64x128xf32>
    %127 = tpu.matmul %124, %126, %cst_128 {dimension_numbers = #tpu.dot_dimension_numbers<[1], [0], [0], [1], [0, 0, 1, 1], [], []>} : vector<64x128xbf16>, vector<128x128xbf16>, vector<64x128xf32> -> vector<64x128xf32>
    %128 = arith.addf %121, %127 : vector<64x128xf32>
    %c1_129 = arith.constant 1 : index
    %c2_130 = arith.constant 2 : index
    %c0_131 = arith.constant 0 : index
    %129 = vector.load %arg10[%c1_129, %c2_130, %c0_131] : memref<10x10x128xf32, #tpu.memory_space<vmem>>, vector<8x8x128xf32>
    %130 = vector.shape_cast %129 : vector<8x8x128xf32> to vector<64x128xf32>
    %131 = arith.truncf %130 : vector<64x128xf32> to vector<64x128xbf16>
    %c1_132 = arith.constant 1 : index
    %c2_133 = arith.constant 2 : index
    %c0_134 = arith.constant 0 : index
    %c0_135 = arith.constant 0 : index
    %132 = vector.load %arg7[%c1_132, %c2_133, %c0_134, %c0_135] : memref<3x3x128x128xbf16, #tpu.memory_space<vmem>>, vector<1x1x128x128xbf16>
    %133 = vector.shape_cast %132 : vector<1x1x128x128xbf16> to vector<128x128xbf16>
    %cst_136 = arith.constant dense<0.000000e+00> : vector<64x128xf32>
    %134 = tpu.matmul %131, %133, %cst_136 {dimension_numbers = #tpu.dot_dimension_numbers<[1], [0], [0], [1], [0, 0, 1, 1], [], []>} : vector<64x128xbf16>, vector<128x128xbf16>, vector<64x128xf32> -> vector<64x128xf32>
    %135 = arith.addf %128, %134 : vector<64x128xf32>
    %c2_137 = arith.constant 2 : index
    %c0_138 = arith.constant 0 : index
    %c0_139 = arith.constant 0 : index
    %136 = vector.load %arg10[%c2_137, %c0_138, %c0_139] : memref<10x10x128xf32, #tpu.memory_space<vmem>>, vector<8x8x128xf32>
    %137 = vector.shape_cast %136 : vector<8x8x128xf32> to vector<64x128xf32>
    %138 = arith.truncf %137 : vector<64x128xf32> to vector<64x128xbf16>
    %c2_140 = arith.constant 2 : index
    %c0_141 = arith.constant 0 : index
    %c0_142 = arith.constant 0 : index
    %c0_143 = arith.constant 0 : index
    %139 = vector.load %arg7[%c2_140, %c0_141, %c0_142, %c0_143] : memref<3x3x128x128xbf16, #tpu.memory_space<vmem>>, vector<1x1x128x128xbf16>
    %140 = vector.shape_cast %139 : vector<1x1x128x128xbf16> to vector<128x128xbf16>
    %cst_144 = arith.constant dense<0.000000e+00> : vector<64x128xf32>
    %141 = tpu.matmul %138, %140, %cst_144 {dimension_numbers = #tpu.dot_dimension_numbers<[1], [0], [0], [1], [0, 0, 1, 1], [], []>} : vector<64x128xbf16>, vector<128x128xbf16>, vector<64x128xf32> -> vector<64x128xf32>
    %142 = arith.addf %135, %141 : vector<64x128xf32>
    %c2_145 = arith.constant 2 : index
    %c1_146 = arith.constant 1 : index
    %c0_147 = arith.constant 0 : index
    %143 = vector.load %arg10[%c2_145, %c1_146, %c0_147] : memref<10x10x128xf32, #tpu.memory_space<vmem>>, vector<8x8x128xf32>
    %144 = vector.shape_cast %143 : vector<8x8x128xf32> to vector<64x128xf32>
    %145 = arith.truncf %144 : vector<64x128xf32> to vector<64x128xbf16>
    %c2_148 = arith.constant 2 : index
    %c1_149 = arith.constant 1 : index
    %c0_150 = arith.constant 0 : index
    %c0_151 = arith.constant 0 : index
    %146 = vector.load %arg7[%c2_148, %c1_149, %c0_150, %c0_151] : memref<3x3x128x128xbf16, #tpu.memory_space<vmem>>, vector<1x1x128x128xbf16>
    %147 = vector.shape_cast %146 : vector<1x1x128x128xbf16> to vector<128x128xbf16>
    %cst_152 = arith.constant dense<0.000000e+00> : vector<64x128xf32>
    %148 = tpu.matmul %145, %147, %cst_152 {dimension_numbers = #tpu.dot_dimension_numbers<[1], [0], [0], [1], [0, 0, 1, 1], [], []>} : vector<64x128xbf16>, vector<128x128xbf16>, vector<64x128xf32> -> vector<64x128xf32>
    %149 = arith.addf %142, %148 : vector<64x128xf32>
    %c2_153 = arith.constant 2 : index
    %c2_154 = arith.constant 2 : index
    %c0_155 = arith.constant 0 : index
    %150 = vector.load %arg10[%c2_153, %c2_154, %c0_155] : memref<10x10x128xf32, #tpu.memory_space<vmem>>, vector<8x8x128xf32>
    %151 = vector.shape_cast %150 : vector<8x8x128xf32> to vector<64x128xf32>
    %152 = arith.truncf %151 : vector<64x128xf32> to vector<64x128xbf16>
    %c2_156 = arith.constant 2 : index
    %c2_157 = arith.constant 2 : index
    %c0_158 = arith.constant 0 : index
    %c0_159 = arith.constant 0 : index
    %153 = vector.load %arg7[%c2_156, %c2_157, %c0_158, %c0_159] : memref<3x3x128x128xbf16, #tpu.memory_space<vmem>>, vector<1x1x128x128xbf16>
    %154 = vector.shape_cast %153 : vector<1x1x128x128xbf16> to vector<128x128xbf16>
    %cst_160 = arith.constant dense<0.000000e+00> : vector<64x128xf32>
    %155 = tpu.matmul %152, %154, %cst_160 {dimension_numbers = #tpu.dot_dimension_numbers<[1], [0], [0], [1], [0, 0, 1, 1], [], []>} : vector<64x128xbf16>, vector<128x128xbf16>, vector<64x128xf32> -> vector<64x128xf32>
    %156 = arith.addf %149, %155 : vector<64x128xf32>
    %c0_161 = arith.constant 0 : index
    %c0_162 = arith.constant 0 : index
    %157 = vector.load %arg8[%c0_161, %c0_162] : memref<1x128xf32, #tpu.memory_space<vmem>>, vector<1x128xf32>
    %158 = vector.broadcast %157 : vector<1x128xf32> to vector<64x128xf32>
    %159 = arith.addf %156, %158 : vector<64x128xf32>
    %160 = arith.addf %159, %88 : vector<64x128xf32>
    %cst_163 = arith.constant 0.000000e+00 : f32
    %161 = vector.broadcast %cst_163 : f32 to vector<64x128xf32>
    %162 = arith.maximumf %160, %161 : vector<64x128xf32>
    %163 = arith.truncf %162 : vector<64x128xf32> to vector<64x128xbf16>
    %c0_164 = arith.constant 0 : index
    %c0_165 = arith.constant 0 : index
    %c0_166 = arith.constant 0 : index
    %164 = vector.load %arg9[%c0_164, %c0_165, %c0_166] : memref<1x64x128xbf16, #tpu.memory_space<vmem>>, vector<1x64x128xbf16>
    %165 = vector.shape_cast %164 : vector<1x64x128xbf16> to vector<64x128xbf16>
    %166 = vector.shape_cast %163 : vector<64x128xbf16> to vector<1x64x128xbf16>
    tpu.vector_store %arg9[%c0_164, %c0_165, %c0_166], %166 {strides = array<i32>} : memref<1x64x128xbf16, #tpu.memory_space<vmem>>, vector<1x64x128xbf16>,
    return
  }
  func.func @transform_0(%arg0: i32) -> (i32, i32, i32, i32) {
    %c0_i32 = arith.constant 0 : i32
    %c0_i32_0 = arith.constant 0 : i32
    %c0_i32_1 = arith.constant 0 : i32
    %c0_i32_2 = arith.constant 0 : i32
    return %arg0, %c0_i32, %c0_i32_0, %c0_i32_1 : i32, i32, i32, i32
  }
  func.func @transform_1(%arg0: i32) -> (i32, i32, i32, i32) {
    %c0_i32 = arith.constant 0 : i32
    %c0_i32_0 = arith.constant 0 : i32
    %c0_i32_1 = arith.constant 0 : i32
    %c0_i32_2 = arith.constant 0 : i32
    return %arg0, %c0_i32, %c0_i32_0, %c0_i32_1 : i32, i32, i32, i32
  }
  func.func @transform_2(%arg0: i32) -> (i32, i32, i32, i32) {
    %c0_i32 = arith.constant 0 : i32
    %c0_i32_0 = arith.constant 0 : i32
    %c0_i32_1 = arith.constant 0 : i32
    %c0_i32_2 = arith.constant 0 : i32
    return %arg0, %c0_i32, %c0_i32_0, %c0_i32_1 : i32, i32, i32, i32
  }
  func.func @transform_3(%arg0: i32) -> (i32, i32, i32, i32) {
    %c0_i32 = arith.constant 0 : i32
    %c0_i32_0 = arith.constant 0 : i32
    %c0_i32_1 = arith.constant 0 : i32
    %c0_i32_2 = arith.constant 0 : i32
    return %arg0, %c0_i32, %c0_i32_0, %c0_i32_1 : i32, i32, i32, i32
  }
  func.func @transform_4(%arg0: i32) -> (i32, i32, i32, i32) {
    %c0_i32 = arith.constant 0 : i32
    %c0_i32_0 = arith.constant 0 : i32
    %c0_i32_1 = arith.constant 0 : i32
    %c0_i32_2 = arith.constant 0 : i32
    %c0_i32_3 = arith.constant 0 : i32
    return %c0_i32, %c0_i32_0, %c0_i32_1, %c0_i32_2 : i32, i32, i32, i32
  }
  func.func @transform_5(%arg0: i32) -> (i32, i32) {
    %c0_i32 = arith.constant 0 : i32
    %c0_i32_0 = arith.constant 0 : i32
    %c0_i32_1 = arith.constant 0 : i32
    return %c0_i32, %c0_i32_0 : i32, i32
  }
  func.func @transform_6(%arg0: i32) -> (i32, i32, i32, i32) {
    %c0_i32 = arith.constant 0 : i32
    %c0_i32_0 = arith.constant 0 : i32
    %c0_i32_1 = arith.constant 0 : i32
    %c0_i32_2 = arith.constant 0 : i32
    %c0_i32_3 = arith.constant 0 : i32
    return %c0_i32, %c0_i32_0, %c0_i32_1, %c0_i32_2 : i32, i32, i32, i32
  }
  func.func @transform_7(%arg0: i32) -> (i32, i32) {
    %c0_i32 = arith.constant 0 : i32
    %c0_i32_0 = arith.constant 0 : i32
    %c0_i32_1 = arith.constant 0 : i32
    return %c0_i32, %c0_i32_0 : i32, i32
  }
  func.func @transform_8(%arg0: i32) -> (i32, i32, i32) {
    %c0_i32 = arith.constant 0 : i32
    %c0_i32_0 = arith.constant 0 : i32
    %c0_i32_1 = arith.constant 0 : i32
    return %arg0, %c0_i32, %c0_i32_0 : i32, i32, i32
  }
}

</mosaic_0001>

<llo_original>
// kernel: tpu_custom_call.1
$region0: #{tpu_custom_call.1}
  #allocation0 [shape = 'u32[]', space=smem, size = 0x4, offset = 0x4, fixed_abs, tag = 'smem constant byte address 0x4 - core index']
  #allocation1 [shape = 'u32[144,128]{1,0:T(1,128)}', space=vmem, size = 0x12000, scoped, tag = 'internal scratch']
  %s0 = inlined_call_operand.hbm [shape: f32[8,128], index: 0, kind: input, shape index: {}]
  %s1 = inlined_call_operand.hbm [shape: f32[16,128], index: 1, kind: output, shape index: {}]
  %s2 = sld [smem:[#allocation0]]
  $region41: #{tpu_custom_call.1} parent=0
    _
  %s4 = ssub.s32 1, %s2
  %s5 = scalar_select 0, %s4, %s2
  $region1: #{tpu_custom_call.1} parent=0
    #allocation2 [shape = 'u8[4096]{0}', space=vmem, size = 0x1000, scoped, tag = 'input window, operand 0, single buffered']
    #allocation3 [shape = 's32[2]{0}', space=sflag, size = 0x8, scoped, tag = 'scoped memory for tpu_custom_call.1']
    #allocation4 [shape = 's32[2]{0}', space=sflag, size = 0x8, scoped, tag = 'scoped memory for tpu_custom_call.1']
    #allocation5 [shape = 'u8[8192]{0}', space=vmem, size = 0x2000, scoped, tag = 'output window, operand 0']
    %6 = vsyncpa [#allocation3], 0
    %7 = vsyncpa [#allocation4], 0
    %s8 = scalar_lea.sflag [#allocation4], 1
    %9 = vsyncpa %s8, 0
    loop: start=0, step=1, limit=4
    $region2: #{tpu_custom_call.1} parent=1 // loop_pre_header
      _
    $region3: #{tpu_custom_call.1} parent=1 // loop_header
      %s11 = sphi 0, %s15
      %p12 = scmp.ge.s32.totalorder %s11, 4
      %s19 = sphi 0, %s19
      %s21 = sphi 0, %s19
      %s22 = sphi 0, %s21
      %s36 = sphi 0, %s22
      %s42 = sphi 0, %s44
      %s45 = sphi 0, %s42
      %s46 = sphi 0, %s45
      %s62 = sphi 0, %s46
    $region4: #{tpu_custom_call.1} parent=1 // loop_header_branch
      %14 = sbr.rel (%p12) target = $region8
    $region5: #{tpu_custom_call.1} parent=1 // loop_body
      %s16 = ssub.s32 %s11, 1
      %s17 = ssub.s32 %s11, 2
      %s18 = sadd.s32 %s11, 1
      %s20 = sadd.s32 %s19, 1
      %p23 = scmp.eq.s32.totalorder %s11, 1
      %p24 = scmp.ne.s32.totalorder %s19, %s21
      %p25 = scmp.eq.s32.totalorder %s11, 0
      %p26 = por %p24, %p25
      %p27 = scmp.ne.s32.totalorder %s19, %s21
      %p28 = scmp.eq.s32.totalorder %s16, 1
      %p29 = por %p27, %p28
      %p30 = scmp.ne.s32.totalorder %s21, %s22
      %p31 = scmp.eq.s32.totalorder %s16, 0
      %p32 = por %p30, %p31
      %p33 = scmp.ne.s32.totalorder %s21, %s22
      %p34 = scmp.eq.s32.totalorder %s17, 1
      %p35 = por %p33, %p34
      %p37 = scmp.ne.s32.totalorder %s22, %s36
      %p38 = scmp.eq.s32.totalorder %s17, 0
      %p39 = por %p37, %p38
      %s40 = ssub.s32 %s11, %s18
      %p41 = scmp.eq.s32.totalorder %s40, 0
      %s43 = sadd.s32 %s42, 1
      %s44 = scalar_select %p41, %s42, %s43
      %p47 = pneg %p41
      %p48 = scmp.eq.s32.totalorder %s11, 1
      %p49 = por %p47, %p48
      %p50 = scmp.ne.s32.totalorder %s42, %s45
      %p51 = scmp.eq.s32.totalorder %s11, 0
      %p52 = por %p50, %p51
      %p53 = scmp.ne.s32.totalorder %s42, %s45
      %p54 = scmp.eq.s32.totalorder %s16, 1
      %p55 = por %p53, %p54
      %p56 = scmp.ne.s32.totalorder %s45, %s46
      %p57 = scmp.eq.s32.totalorder %s16, 0
      %p58 = por %p56, %p57
      %p59 = scmp.ne.s32.totalorder %s45, %s46
      %p60 = scmp.eq.s32.totalorder %s17, 1
      %p61 = por %p59, %p60
      %p63 = scmp.ne.s32.totalorder %s46, %s62
      %p64 = scmp.eq.s32.totalorder %s17, 0
      %p65 = por %p63, %p64
      %p66 = scmp.le.s32.totalorder 1, %s11
      %p67 = scmp.lt.s32.totalorder %s11, 3
      %p68 = pnand %p66, %p67
      %p69 = pneg %p68
      // Predicated region
      $region9: #{tpu_custom_call.1} parent=5 // pred_check
        _
      $region10: #{tpu_custom_call.1} parent=5 // pred_check_branch
        %71 = sbr.rel (%p68) target = $region12
      $region11: #{tpu_custom_call.1} parent=5 // pred_region
        %s72 = ssub.s32 %s11, 1
        // Predicated region
        $region13: #{tpu_custom_call.1} parent=11 // pred_check
          %p73 = pneg %p32
        $region14: #{tpu_custom_call.1} parent=11 // pred_check_branch
          %75 = sbr.rel (%p73) target = $region16
        $region15: #{tpu_custom_call.1} parent=11 // pred_region
          %s77 = ssub.s32 128, 128
          %78 = vsyncadd [#allocation3], %s77
          %s80 = sshll.u32 [#allocation2], 4
          %s81 = int_to_ptr.vmem [resolvable:$true] %s80
          %83 = dma.hbm_to_vmem [thread:$0]  %s0, 128, %s81, [#allocation3]
        $region16: #{tpu_custom_call.1} parent=11 // pred_fallthru
          _
      $region12: #{tpu_custom_call.1} parent=5 // pred_fallthru
        _
      %p84 = scmp.lt.s32.totalorder %s11, 2
      // Predicated region
      $region17: #{tpu_custom_call.1} parent=5 // pred_check
        %p85 = pneg %p84
      $region18: #{tpu_custom_call.1} parent=5 // pred_check_branch
        %87 = sbr.rel (%p85) target = $region20
      $region19: #{tpu_custom_call.1} parent=5 // pred_region
        _
      $region20: #{tpu_custom_call.1} parent=5 // pred_fallthru
        _
      %p88 = scmp.le.s32.totalorder 1, %s11
      %p89 = scmp.lt.s32.totalorder %s11, 3
      %p90 = pnand %p88, %p89
      %p91 = pneg %p90
      // Predicated region
      $region21: #{tpu_custom_call.1} parent=5 // pred_check
        _
      $region22: #{tpu_custom_call.1} parent=5 // pred_check_branch
        %93 = sbr.rel (%p90) target = $region24
      $region23: #{tpu_custom_call.1} parent=5 // pred_region
        %s94 = ssub.s32 %s11, 1
        // Predicated region
        $region25: #{tpu_custom_call.1} parent=23 // pred_check
          %p95 = pneg %p32
        $region26: #{tpu_custom_call.1} parent=23 // pred_check_branch
          %97 = sbr.rel (%p95) target = $region28
        $region27: #{tpu_custom_call.1} parent=23 // pred_region
          %98 = dma.done [#allocation3], 128
        $region28: #{tpu_custom_call.1} parent=23 // pred_fallthru
          _
        %p99 = pneg %p32
        %p100 = pneg %p29
        %p101 = pneg %p58
        %p102 = pneg %p55
        %s103 = sand.u32 %s45, 1
        %s104 = scalar_lea.sflag [#allocation4], %s103
        %s105 = sand.u32 %s45, 1
        %s106 = smul.addr %s105, 8
        %s107 = scalar_lea.vmem [#allocation5], %s106
        %v108 = vld [vmem:[#allocation2] sm:$0xff]
        %v109 = vadd.f32 %v108, 1.0
        %110 = vst [vmem:[%s107] sm:$0xff] %v109
        %s111 = sand.u32 %s45, 1
        %s112 = scalar_lea.sflag [#allocation4], %s111
        %s113 = sand.u32 %s45, 1
        %s114 = smul.addr %s113, 8
        %s115 = scalar_lea.vmem [#allocation5], %s114
        // Predicated region
        $region29: #{tpu_custom_call.1} parent=23 // pred_check
          %p116 = pneg %p55
        $region30: #{tpu_custom_call.1} parent=23 // pred_check_branch
          %118 = sbr.rel (%p116) target = $region32
        $region31: #{tpu_custom_call.1} parent=23 // pred_region
          %s120 = ssub.s32 128, 128
          %121 = vsyncadd %s112, %s120
          %s122 = smul.addr %s16, 128
          %s123 = scalar_lea.hbm %s1, %s122
          %s125 = sshll.u32 %s115, 4
          %s126 = int_to_ptr.vmem [resolvable:$true] %s125
          %128 = dma.vmem_to_hbm [thread:$0]  %s126, 128, %s123, %s112
        $region32: #{tpu_custom_call.1} parent=23 // pred_fallthru
          _
      $region24: #{tpu_custom_call.1} parent=5 // pred_fallthru
        _
      %p129 = scmp.le.s32.totalorder 2, %s11
      // Predicated region
      $region33: #{tpu_custom_call.1} parent=5 // pred_check
        %p130 = pneg %p129
      $region34: #{tpu_custom_call.1} parent=5 // pred_check_branch
        %132 = sbr.rel (%p130) target = $region36
      $region35: #{tpu_custom_call.1} parent=5 // pred_region
        %s133 = ssub.s32 %s11, 2
        // Predicated region
        $region37: #{tpu_custom_call.1} parent=35 // pred_check
          %p134 = pneg %p61
        $region38: #{tpu_custom_call.1} parent=35 // pred_check_branch
          %136 = sbr.rel (%p134) target = $region40
        $region39: #{tpu_custom_call.1} parent=35 // pred_region
          %s137 = sand.u32 %s46, 1
          %s138 = scalar_lea.sflag [#allocation4], %s137
          %s139 = sand.u32 %s46, 1
          %s140 = smul.addr %s139, 8
          %s141 = scalar_lea.vmem [#allocation5], %s140
          %142 = dma.done %s138, 128
        $region40: #{tpu_custom_call.1} parent=35 // pred_fallthru
          _
      $region36: #{tpu_custom_call.1} parent=5 // pred_fallthru
        _
    $region6: #{tpu_custom_call.1} parent=1 // loop_footer
      %s15 = sadd.s32 1, %s11
    $region7: #{tpu_custom_call.1} parent=1 // loop_footer_branch
      %10 = sbr.rel target = $region3
    $region8: #{tpu_custom_call.1} parent=1 // loop_exit
      _
    %143 = vsyncpa [#allocation3], 1
    %s144 = scalar_lea.sflag [#allocation3], 1
    %145 = vsyncpa %s144, 1
    %146 = vsyncpa [#allocation4], 1
    %s147 = scalar_lea.sflag [#allocation4], 1
    %148 = vsyncpa %s147, 1

// kernel: resblock_forward.1
$region0: #{resblock_forward.1}
  #allocation0 [shape = 'u32[]', space=smem, size = 0x4, offset = 0x4, fixed_abs, tag = 'smem constant byte address 0x4 - core index']
  #allocation1 [shape = 'u32[144,128]{1,0:T(1,128)}', space=vmem, size = 0x12000, scoped, tag = 'internal scratch']
  #allocation2 [shape = 'f32[10,10,128]{2,1,0:T(8,128)}', space=vmem, size = 0x14000, scoped, tag = 'scratch operand']
  %s0 = inlined_call_operand.vmem [shape: bf16[2,9,9,4], index: 0, kind: input, shape index: {}]
  %s1 = inlined_call_operand.vmem [shape: bf16[2,9,9,4], index: 1, kind: input, shape index: {}]
  %s2 = inlined_call_operand.vmem [shape: bf16[2,9,9,4], index: 2, kind: input, shape index: {}]
  %s3 = inlined_call_operand.vmem [shape: bf16[2,9,9,4], index: 3, kind: input, shape index: {}]
  %s4 = inlined_call_operand.vmem [shape: bf16[3,3,4,256], index: 4, kind: input, shape index: {}]
  %s5 = inlined_call_operand.vmem [shape: f32[1,256], index: 5, kind: input, shape index: {}]
  %s6 = inlined_call_operand.vmem [shape: bf16[3,3,128,128], index: 6, kind: input, shape index: {}]
  %s7 = inlined_call_operand.vmem [shape: f32[1,128], index: 7, kind: input, shape index: {}]
  %s8 = inlined_call_operand.vmem [shape: bf16[2,64,128], index: 8, kind: output, shape index: {}]
  %s9 = sld [smem:[#allocation0]]
  $region65: #{resblock_forward.1} parent=0
    _
  %s11 = ssub.s32 1, %s9
  %s12 = scalar_select 0, %s11, %s9
  loop: start=0, step=1, limit=4
  $region2: #{resblock_forward.1} parent=0 // loop_pre_header
    _
  $region3: #{resblock_forward.1} parent=0 // loop_header
    %s14 = sphi 0, %s18
    %p15 = scmp.ge.s32.totalorder %s14, 4
    %s24 = sphi 0, %s26
    %s27 = sphi 0, %s24
    %s28 = sphi 0, %s27
    %s44 = sphi 0, %s28
    %s50 = sphi 0, %s52
    %s53 = sphi 0, %s50
    %s54 = sphi 0, %s53
    %s70 = sphi 0, %s54
    %s76 = sphi 0, %s78
    %s79 = sphi 0, %s76
    %s80 = sphi 0, %s79
    %s96 = sphi 0, %s80
    %s102 = sphi 0, %s104
    %s105 = sphi 0, %s102
    %s106 = sphi 0, %s105
    %s122 = sphi 0, %s106
    %s126 = sphi 0, %s126
    %s128 = sphi 0, %s126
    %s129 = sphi 0, %s128
    %s143 = sphi 0, %s129
    %s147 = sphi 0, %s147
    %s149 = sphi 0, %s147
    %s150 = sphi 0, %s149
    %s164 = sphi 0, %s150
    %s168 = sphi 0, %s168
    %s170 = sphi 0, %s168
    %s171 = sphi 0, %s170
    %s185 = sphi 0, %s171
    %s189 = sphi 0, %s189
    %s191 = sphi 0, %s189
    %s192 = sphi 0, %s191
    %s206 = sphi 0, %s192
    %s212 = sphi 0, %s214
    %s215 = sphi 0, %s212
    %s216 = sphi 0, %s215
    %s232 = sphi 0, %s216
  $region4: #{resblock_forward.1} parent=0 // loop_header_branch
    %17 = sbr.rel (%p15) target = $region8
  $region5: #{resblock_forward.1} parent=0 // loop_body
    %s19 = ssub.s32 %s14, 1
    %s20 = ssub.s32 %s14, 2
    %s21 = sadd.s32 %s14, 1
    %s22 = ssub.s32 %s14, %s21
    %p23 = scmp.eq.s32.totalorder %s22, 0
    %s25 = sadd.s32 %s24, 1
    %s26 = scalar_select %p23, %s24, %s25
    %p29 = pneg %p23
    %p30 = scmp.eq.s32.totalorder %s14, 1
    %p31 = por %p29, %p30
    %p32 = scmp.ne.s32.totalorder %s24, %s27
    %p33 = scmp.eq.s32.totalorder %s14, 0
    %p34 = por %p32, %p33
    %p35 = scmp.ne.s32.totalorder %s24, %s27
    %p36 = scmp.eq.s32.totalorder %s19, 1
    %p37 = por %p35, %p36
    %p38 = scmp.ne.s32.totalorder %s27, %s28
    %p39 = scmp.eq.s32.totalorder %s19, 0
    %p40 = por %p38, %p39
    %p41 = scmp.ne.s32.totalorder %s27, %s28
    %p42 = scmp.eq.s32.totalorder %s20, 1
    %p43 = por %p41, %p42
    %p45 = scmp.ne.s32.totalorder %s28, %s44
    %p46 = scmp.eq.s32.totalorder %s20, 0
    %p47 = por %p45, %p46
    %s48 = ssub.s32 %s14, %s21
    %p49 = scmp.eq.s32.totalorder %s48, 0
    %s51 = sadd.s32 %s50, 1
    %s52 = scalar_select %p49, %s50, %s51
    %p55 = pneg %p49
    %p56 = scmp.eq.s32.totalorder %s14, 1
    %p57 = por %p55, %p56
    %p58 = scmp.ne.s32.totalorder %s50, %s53
    %p59 = scmp.eq.s32.totalorder %s14, 0
    %p60 = por %p58, %p59
    %p61 = scmp.ne.s32.totalorder %s50, %s53
    %p62 = scmp.eq.s32.totalorder %s19, 1
    %p63 = por %p61, %p62
    %p64 = scmp.ne.s32.totalorder %s53, %s54
    %p65 = scmp.eq.s32.totalorder %s19, 0
    %p66 = por %p64, %p65
    %p67 = scmp.ne.s32.totalorder %s53, %s54
    %p68 = scmp.eq.s32.totalorder %s20, 1
    %p69 = por %p67, %p68
    %p71 = scmp.ne.s32.totalorder %s54, %s70
    %p72 = scmp.eq.s32.totalorder %s20, 0
    %p73 = por %p71, %p72
    %s74 = ssub.s32 %s14, %s21
    %p75 = scmp.eq.s32.totalorder %s74, 0
    %s77 = sadd.s32 %s76, 1
    %s78 = scalar_select %p75, %s76, %s77
    %p81 = pneg %p75
    %p82 = scmp.eq.s32.totalorder %s14, 1
    %p83 = por %p81, %p82
    %p84 = scmp.ne.s32.totalorder %s76, %s79
    %p85 = scmp.eq.s32.totalorder %s14, 0
    %p86 = por %p84, %p85
    %p87 = scmp.ne.s32.totalorder %s76, %s79
    %p88 = scmp.eq.s32.totalorder %s19, 1
    %p89 = por %p87, %p88
    %p90 = scmp.ne.s32.totalorder %s79, %s80
    %p91 = scmp.eq.s32.totalorder %s19, 0
    %p92 = por %p90, %p91
    %p93 = scmp.ne.s32.totalorder %s79, %s80
    %p94 = scmp.eq.s32.totalorder %s20, 1
    %p95 = por %p93, %p94
    %p97 = scmp.ne.s32.totalorder %s80, %s96
    %p98 = scmp.eq.s32.totalorder %s20, 0
    %p99 = por %p97, %p98
    %s100 = ssub.s32 %s14, %s21
    %p101 = scmp.eq.s32.totalorder %s100, 0
    %s103 = sadd.s32 %s102, 1
    %s104 = scalar_select %p101, %s102, %s103
    %p107 = pneg %p101
    %p108 = scmp.eq.s32.totalorder %s14, 1
    %p109 = por %p107, %p108
    %p110 = scmp.ne.s32.totalorder %s102, %s105
    %p111 = scmp.eq.s32.totalorder %s14, 0
    %p112 = por %p110, %p111
    %p113 = scmp.ne.s32.totalorder %s102, %s105
    %p114 = scmp.eq.s32.totalorder %s19, 1
    %p115 = por %p113, %p114
    %p116 = scmp.ne.s32.totalorder %s105, %s106
    %p117 = scmp.eq.s32.totalorder %s19, 0
    %p118 = por %p116, %p117
    %p119 = scmp.ne.s32.totalorder %s105, %s106
    %p120 = scmp.eq.s32.totalorder %s20, 1
    %p121 = por %p119, %p120
    %p123 = scmp.ne.s32.totalorder %s106, %s122
    %p124 = scmp.eq.s32.totalorder %s20, 0
    %p125 = por %p123, %p124
    %s127 = sadd.s32 %s126, 1
    %p130 = scmp.eq.s32.totalorder %s14, 1
    %p131 = scmp.ne.s32.totalorder %s126, %s128
    %p132 = scmp.eq.s32.totalorder %s14, 0
    %p133 = por %p131, %p132
    %p134 = scmp.ne.s32.totalorder %s126, %s128
    %p135 = scmp.eq.s32.totalorder %s19, 1
    %p136 = por %p134, %p135
    %p137 = scmp.ne.s32.totalorder %s128, %s129
    %p138 = scmp.eq.s32.totalorder %s19, 0
    %p139 = por %p137, %p138
    %p140 = scmp.ne.s32.totalorder %s128, %s129
    %p141 = scmp.eq.s32.totalorder %s20, 1
    %p142 = por %p140, %p141
    %p144 = scmp.ne.s32.totalorder %s129, %s143
    %p145 = scmp.eq.s32.totalorder %s20, 0
    %p146 = por %p144, %p145
    %s148 = sadd.s32 %s147, 1
    %p151 = scmp.eq.s32.totalorder %s14, 1
    %p152 = scmp.ne.s32.totalorder %s147, %s149
    %p153 = scmp.eq.s32.totalorder %s14, 0
    %p154 = por %p152, %p153
    %p155 = scmp.ne.s32.totalorder %s147, %s149
    %p156 = scmp.eq.s32.totalorder %s19, 1
    %p157 = por %p155, %p156
    %p158 = scmp.ne.s32.totalorder %s149, %s150
    %p159 = scmp.eq.s32.totalorder %s19, 0
    %p160 = por %p158, %p159
    %p161 = scmp.ne.s32.totalorder %s149, %s150
    %p162 = scmp.eq.s32.totalorder %s20, 1
    %p163 = por %p161, %p162
    %p165 = scmp.ne.s32.totalorder %s150, %s164
    %p166 = scmp.eq.s32.totalorder %s20, 0
    %p167 = por %p165, %p166
    %s169 = sadd.s32 %s168, 1
    %p172 = scmp.eq.s32.totalorder %s14, 1
    %p173 = scmp.ne.s32.totalorder %s168, %s170
    %p174 = scmp.eq.s32.totalorder %s14, 0
    %p175 = por %p173, %p174
    %p176 = scmp.ne.s32.totalorder %s168, %s170
    %p177 = scmp.eq.s32.totalorder %s19, 1
    %p178 = por %p176, %p177
    %p179 = scmp.ne.s32.totalorder %s170, %s171
    %p180 = scmp.eq.s32.totalorder %s19, 0
    %p181 = por %p179, %p180
    %p182 = scmp.ne.s32.totalorder %s170, %s171
    %p183 = scmp.eq.s32.totalorder %s20, 1
    %p184 = por %p182, %p183
    %p186 = scmp.ne.s32.totalorder %s171, %s185
    %p187 = scmp.eq.s32.totalorder %s20, 0
    %p188 = por %p186, %p187
    %s190 = sadd.s32 %s189, 1
    %p193 = scmp.eq.s32.totalorder %s14, 1
    %p194 = scmp.ne.s32.totalorder %s189, %s191
    %p195 = scmp.eq.s32.totalorder %s14, 0
    %p196 = por %p194, %p195
    %p197 = scmp.ne.s32.totalorder %s189, %s191
    %p198 = scmp.eq.s32.totalorder %s19, 1
    %p199 = por %p197, %p198
    %p200 = scmp.ne.s32.totalorder %s191, %s192
    %p201 = scmp.eq.s32.totalorder %s19, 0
    %p202 = por %p200, %p201
    %p203 = scmp.ne.s32.totalorder %s191, %s192
    %p204 = scmp.eq.s32.totalorder %s20, 1
    %p205 = por %p203, %p204
    %p207 = scmp.ne.s32.totalorder %s192, %s206
    %p208 = scmp.eq.s32.totalorder %s20, 0
    %p209 = por %p207, %p208
    %s210 = ssub.s32 %s14, %s21
    %p211 = scmp.eq.s32.totalorder %s210, 0
    %s213 = sadd.s32 %s212, 1
    %s214 = scalar_select %p211, %s212, %s213
    %p217 = pneg %p211
    %p218 = scmp.eq.s32.totalorder %s14, 1
    %p219 = por %p217, %p218
    %p220 = scmp.ne.s32.totalorder %s212, %s215
    %p221 = scmp.eq.s32.totalorder %s14, 0
    %p222 = por %p220, %p221
    %p223 = scmp.ne.s32.totalorder %s212, %s215
    %p224 = scmp.eq.s32.totalorder %s19, 1
    %p225 = por %p223, %p224
    %p226 = scmp.ne.s32.totalorder %s215, %s216
    %p227 = scmp.eq.s32.totalorder %s19, 0
    %p228 = por %p226, %p227
    %p229 = scmp.ne.s32.totalorder %s215, %s216
    %p230 = scmp.eq.s32.totalorder %s20, 1
    %p231 = por %p229, %p230
    %p233 = scmp.ne.s32.totalorder %s216, %s232
    %p234 = scmp.eq.s32.totalorder %s20, 0
    %p235 = por %p233, %p234
    %p236 = scmp.le.s32.totalorder 1, %s14
    %p237 = scmp.lt.s32.totalorder %s14, 3
    %p238 = pnand %p236, %p237
    %p239 = pneg %p238
    // Predicated region
    $region9: #{resblock_forward.1} parent=5 // pred_check
      _
    $region10: #{resblock_forward.1} parent=5 // pred_check_branch
      %241 = sbr.rel (%p238) target = $region12
    $region11: #{resblock_forward.1} parent=5 // pred_region
      %s242 = ssub.s32 %s14, 1
      // Predicated region
      $region13: #{resblock_forward.1} parent=11 // pred_check
        %p243 = pneg %p139
      $region14: #{resblock_forward.1} parent=11 // pred_check_branch
        %245 = sbr.rel (%p243) target = $region16
      $region15: #{resblock_forward.1} parent=11 // pred_region
        _
      $region16: #{resblock_forward.1} parent=11 // pred_fallthru
        _
      // Predicated region
      $region17: #{resblock_forward.1} parent=11 // pred_check
        %p246 = pneg %p160
      $region18: #{resblock_forward.1} parent=11 // pred_check_branch
        %248 = sbr.rel (%p246) target = $region20
      $region19: #{resblock_forward.1} parent=11 // pred_region
        _
      $region20: #{resblock_forward.1} parent=11 // pred_fallthru
        _
      // Predicated region
      $region21: #{resblock_forward.1} parent=11 // pred_check
        %p249 = pneg %p181
      $region22: #{resblock_forward.1} parent=11 // pred_check_branch
        %251 = sbr.rel (%p249) target = $region24
      $region23: #{resblock_forward.1} parent=11 // pred_region
        _
      $region24: #{resblock_forward.1} parent=11 // pred_fallthru
        _
      // Predicated region
      $region25: #{resblock_forward.1} parent=11 // pred_check
        %p252 = pneg %p202
      $region26: #{resblock_forward.1} parent=11 // pred_check_branch
        %254 = sbr.rel (%p252) target = $region28
      $region27: #{resblock_forward.1} parent=11 // pred_region
        _
      $region28: #{resblock_forward.1} parent=11 // pred_fallthru
        _
    $region12: #{resblock_forward.1} parent=5 // pred_fallthru
      _
    %p255 = scmp.lt.s32.totalorder %s14, 2
    // Predicated region
    $region29: #{resblock_forward.1} parent=5 // pred_check
      %p256 = pneg %p255
    $region30: #{resblock_forward.1} parent=5 // pred_check_branch
      %258 = sbr.rel (%p256) target = $region32
    $region31: #{resblock_forward.1} parent=5 // pred_region
      // Predicated region
      $region33: #{resblock_forward.1} parent=31 // pred_check
        %p259 = pneg %p34
      $region34: #{resblock_forward.1} parent=31 // pred_check_branch
        %261 = sbr.rel (%p259) target = $region36
      $region35: #{resblock_forward.1} parent=31 // pred_region
        %p262 = scmp.lt.s32.totalorder %s14, 1
        %s263 = scalar_select %p262, %s14, 1
        %s264 = smul.addr %s263, 18
        %s265 = smul.addr %s264, 4
        %s266 = scalar_lea.vmem %s0, %s265
      $region36: #{resblock_forward.1} parent=31 // pred_fallthru
        _
      // Predicated region
      $region37: #{resblock_forward.1} parent=31 // pred_check
        %p267 = pneg %p60
      $region38: #{resblock_forward.1} parent=31 // pred_check_branch
        %269 = sbr.rel (%p267) target = $region40
      $region39: #{resblock_forward.1} parent=31 // pred_region
        %p270 = scmp.lt.s32.totalorder %s14, 1
        %s271 = scalar_select %p270, %s14, 1
        %s272 = smul.addr %s271, 18
        %s273 = smul.addr %s272, 4
        %s274 = scalar_lea.vmem %s1, %s273
      $region40: #{resblock_forward.1} parent=31 // pred_fallthru
        _
      // Predicated region
      $region41: #{resblock_forward.1} parent=31 // pred_check
        %p275 = pneg %p86
      $region42: #{resblock_forward.1} parent=31 // pred_check_branch
        %277 = sbr.rel (%p275) target = $region44
      $region43: #{resblock_forward.1} parent=31 // pred_region
        %p278 = scmp.lt.s32.totalorder %s14, 1
        %s279 = scalar_select %p278, %s14, 1
        %s280 = smul.addr %s279, 18
        %s281 = smul.addr %s280, 4
        %s282 = scalar_lea.vmem %s2, %s281
      $region44: #{resblock_forward.1} parent=31 // pred_fallthru
        _
      // Predicated region
      $region45: #{resblock_forward.1} parent=31 // pred_check
        %p283 = pneg %p112
      $region46: #{resblock_forward.1} parent=31 // pred_check_branch
        %285 = sbr.rel (%p283) target = $region48
      $region47: #{resblock_forward.1} parent=31 // pred_region
        %p286 = scmp.lt.s32.totalorder %s14, 1
        %s287 = scalar_select %p286, %s14, 1
        %s288 = smul.addr %s287, 18
        %s289 = smul.addr %s288, 4
        %s290 = scalar_lea.vmem %s3, %s289
      $region48: #{resblock_forward.1} parent=31 // pred_fallthru
        _
    $region32: #{resblock_forward.1} parent=5 // pred_fallthru
      _
    %p291 = scmp.le.s32.totalorder 1, %s14
    %p292 = scmp.lt.s32.totalorder %s14, 3
    %p293 = pnand %p291, %p292
    %p294 = pneg %p293
    // Predicated region
    $region49: #{resblock_forward.1} parent=5 // pred_check
      _
    $region50: #{resblock_forward.1} parent=5 // pred_check_branch
      %296 = sbr.rel (%p293) target = $region52
    $region51: #{resblock_forward.1} parent=5 // pred_region
      %s297 = ssub.s32 %s14, 1
      %p298 = scmp.lt.s32.totalorder %s19, 1
      %s299 = scalar_select %p298, %s19, 1
      %s300 = smul.addr %s299, 18
      %s301 = smul.addr %s300, 4
      %s302 = scalar_lea.vmem %s0, %s301
      %p303 = pneg %p40
      %p304 = pneg %p37
      %p305 = scmp.lt.s32.totalorder %s19, 1
      %s306 = scalar_select %p305, %s19, 1
      %s307 = smul.addr %s306, 18
      %s308 = smul.addr %s307, 4
      %s309 = scalar_lea.vmem %s1, %s308
      %p310 = pneg %p66
      %p311 = pneg %p63
      %p312 = scmp.lt.s32.totalorder %s19, 1
      %s313 = scalar_select %p312, %s19, 1
      %s314 = smul.addr %s313, 18
      %s315 = smul.addr %s314, 4
      %s316 = scalar_lea.vmem %s2, %s315
      %p317 = pneg %p92
      %p318 = pneg %p89
      %p319 = scmp.lt.s32.totalorder %s19, 1
      %s320 = scalar_select %p319, %s19, 1
      %s321 = smul.addr %s320, 18
      %s322 = smul.addr %s321, 4
      %s323 = scalar_lea.vmem %s3, %s322
      %p324 = pneg %p118
      %p325 = pneg %p115
      %p326 = pneg %p139
      %p327 = pneg %p136
      %p328 = pneg %p160
      %p329 = pneg %p157
      %p330 = pneg %p181
      %p331 = pneg %p178
      %p332 = pneg %p202
      %p333 = pneg %p199
      %p334 = pneg %p228
      %p335 = pneg %p225
      %p336 = scmp.lt.s32.totalorder %s19, 1
      %s337 = scalar_select %p336, %s19, 1
      %s338 = smul.addr %s337, 8
      %s339 = smul.addr %s338, 4
      %s340 = scalar_lea.vmem %s8, %s339
      %p341 = scmp.lt.s32.totalorder %s19, 1
      %s342 = scalar_select %p341, %s19, 1
      %s343 = smul.addr %s342, 18
      %s344 = smul.addr %s343, 4
      %s345 = scalar_lea.vmem %s0, %s344
      %p346 = scmp.lt.s32.totalorder %s19, 1
      %s347 = scalar_select %p346, %s19, 1
      %s348 = smul.addr %s347, 18
      %s349 = smul.addr %s348, 4
      %s350 = scalar_lea.vmem %s1, %s349
      %p351 = scmp.lt.s32.totalorder %s19, 1
      %s352 = scalar_select %p351, %s19, 1
      %s353 = smul.addr %s352, 18
      %s354 = smul.addr %s353, 4
      %s355 = scalar_lea.vmem %s2, %s354
      %p356 = scmp.lt.s32.totalorder %s19, 1
      %s357 = scalar_select %p356, %s19, 1
      %s358 = smul.addr %s357, 18
      %s359 = smul.addr %s358, 4
      %s360 = scalar_lea.vmem %s3, %s359
      %p361 = scmp.lt.s32.totalorder %s19, 1
      %s362 = scalar_select %p361, %s19, 1
      %s363 = smul.addr %s362, 8
      %s364 = smul.addr %s363, 4
      %s365 = scalar_lea.vmem %s8, %s364
      %v367 = vld [vmem:[%s345] sm:$0xf]
      %v368 = vld [vmem:[%s345 + $0x8] sm:$0xf]
      %v369 = vld [vmem:[%s345 + $0x10] sm:$0xf]
      %v370 = vld [vmem:[%s345 + $0x18] sm:$0xf]
      %v371 = vld [vmem:[%s345 + $0x20] sm:$0xf]
      %v372 = vld [vmem:[%s345 + $0x28] sm:$0xf]
      %v373 = vld [vmem:[%s345 + $0x30] sm:$0xf]
      %v374 = vld [vmem:[%s345 + $0x38] sm:$0xf]
      %v375 = vunpack.c.l.bf16 %v367
      %v376 = vunpack.c.l.bf16 %v368
      %v377 = vunpack.c.l.bf16 %v369
      %v378 = vunpack.c.l.bf16 %v370
      %v379 = vunpack.c.l.bf16 %v371
      %v380 = vunpack.c.l.bf16 %v372
      %v381 = vunpack.c.l.bf16 %v373
      %v382 = vunpack.c.l.bf16 %v374
      %v383 = vpack.c.bf16 %v376, %v375
      %v384 = vpack.c.bf16 %v378, %v377
      %v385 = vpack.c.bf16 %v380, %v379
      %v386 = vpack.c.bf16 %v382, %v381
      %v387 = vld [vmem:[%s4] sm:$0xf]
      %v388 = vld [vmem:[%s350] sm:$0xf]
      %v389 = vld [vmem:[%s350 + $0x8] sm:$0xf]
      %v390 = vld [vmem:[%s350 + $0x10] sm:$0xf]
      %v391 = vld [vmem:[%s350 + $0x18] sm:$0xf]
      %v392 = vld [vmem:[%s350 + $0x20] sm:$0xf]
      %v393 = vld [vmem:[%s350 + $0x28] sm:$0xf]
      %v394 = vld [vmem:[%s350 + $0x30] sm:$0xf]
      %v395 = vld [vmem:[%s350 + $0x38] sm:$0xf]
      %v396 = vunpack.c.l.bf16 %v388
      %v397 = vunpack.c.l.bf16 %v389
      %v398 = vunpack.c.l.bf16 %v390
      %v399 = vunpack.c.l.bf16 %v391
      %v400 = vunpack.c.l.bf16 %v392
      %v401 = vunpack.c.l.bf16 %v393
      %v402 = vunpack.c.l.bf16 %v394
      %v403 = vunpack.c.l.bf16 %v395
      %v404 = vpack.c.bf16 %v397, %v396
      %v405 = vpack.c.bf16 %v399, %v398
      %v406 = vpack.c.bf16 %v401, %v400
      %v407 = vpack.c.bf16 %v403, %v402
      %s408 = scalar_lea.vmem %s4, 4
      %v409 = vld [vmem:[%s408] sm:$0xf]
      %v412 = vunpack.c.l.s4 1983009808
      %v413 = vunpack.c.0.s8 %v412
      %v414 = vlaneseq
      %v415 = vshrl.u32 %v414, 7
      %v416 = vsub.s32 %v413, %v415
      %v417 = vrot.slane %v409, %v416
      %v418 = vcombine.high %v417, %v417
      %vm419 = vcmask 31744
      %v421 = vsel %vm419, %v404, 0
      %v424 = vsel %vm419, %v405, 0
      %v427 = vsel %vm419, %v406, 0
      %v430 = vsel %vm419, %v407, 0
      %vm432 = vcmask 1041408
      %v434 = vsel %vm432, %v417, 0
      %v437 = vsel %vm432, %v418, 0
      %439 = vmatprep.subr.bf16.mxu0 %v437
      %440 = vmatpush1.bf16.msra.mxu0 %v434
      %441 = vmatprep.subr.bf16.mxu0 0
      %442 = vmatpush1.bf16.msra.mxu0 0
      %443 = vmatprep.subr.bf16.mxu0 0
      %444 = vmatpush1.bf16.msra.mxu0 0
      %445 = vmatprep.subr.bf16.mxu0 0
      %446 = vmatpush1.bf16.msra.mxu0 0
      %447 = vmatprep.subr.bf16.mxu0 0
      %448 = vmatpush1.bf16.msra.mxu0 0
      %449 = vmatprep.subr.bf16.mxu0 0
      %450 = vmatpush1.bf16.msra.mxu0 0
      %451 = vmatprep.subr.bf16.mxu0 0
      %452 = vmatpush1.bf16.msra.mxu0 0
      %453 = vmatprep.subr.bf16.mxu0 0
      %454 = vmatpush1.bf16.msra.mxu0 0
      %455 = vmatprep.subr.bf16.mxu0 0
      %456 = vmatpush1.bf16.msra.mxu0 0
      %457 = vmatprep.subr.bf16.mxu0 0
      %458 = vmatpush1.bf16.msra.mxu0 0
      %459 = vmatprep.subr.bf16.mxu0 0
      %460 = vmatpush1.bf16.msra.mxu0 0
      %461 = vmatprep.subr.bf16.mxu0 0
      %462 = vmatpush1.bf16.msra.mxu0 0
      %463 = vmatprep.subr.bf16.mxu0 0
      %464 = vmatpush1.bf16.msra.mxu0 0
      %465 = vmatprep.subr.bf16.mxu0 0
      %466 = vmatpush1.bf16.msra.mxu0 0
      %467 = vmatprep.subr.bf16.mxu0 0
      %468 = vmatpush1.bf16.msra.mxu0 0
      %469 = vmatprep.subr.bf16.mxu0 0
      %470 = vmatpush1.bf16.msra.mxu0 0
      %471 = vmatprep.mubr.bf16.mxu0 0
      %472 = vmatmul.mubr.bf16.gmra.mrb[0].mxu0 %v421
      %v473 = vpop.f32.mrb[0].mxu0
      %v474 = vadd.f32 0.0, %v473
      %v475 = vpop.f32.mrb[0].mxu0
      %v476 = vadd.f32 0.0, %v475
      %v477 = vpop.f32.mrb[0].mxu0
      %v478 = vadd.f32 0.0, %v477
      %v479 = vpop.f32.mrb[0].mxu0
      %v480 = vadd.f32 0.0, %v479
      %481 = vmatprep.mubr.bf16.mxu0 0
      %482 = vmatmul.mubr.bf16.gmra.mrb[0].mxu0 %v424
      %v483 = vpop.f32.mrb[0].mxu0
      %v484 = vadd.f32 0.0, %v483
      %v485 = vpop.f32.mrb[0].mxu0
      %v486 = vadd.f32 0.0, %v485
      %v487 = vpop.f32.mrb[0].mxu0
      %v488 = vadd.f32 0.0, %v487
      %v489 = vpop.f32.mrb[0].mxu0
      %v490 = vadd.f32 0.0, %v489
      %491 = vmatprep.mubr.bf16.mxu0 0
      %492 = vmatmul.mubr.bf16.gmra.mrb[0].mxu0 %v427
      %v493 = vpop.f32.mrb[0].mxu0
      %v494 = vadd.f32 0.0, %v493
      %v495 = vpop.f32.mrb[0].mxu0
      %v496 = vadd.f32 0.0, %v495
      %v497 = vpop.f32.mrb[0].mxu0
      %v498 = vadd.f32 0.0, %v497
      %v499 = vpop.f32.mrb[0].mxu0
      %v500 = vadd.f32 0.0, %v499
      %501 = vmatprep.mubr.bf16.mxu0 0
      %502 = vmatmul.mubr.bf16.gmra.mrb[0].mxu0 %v430
      %v503 = vpop.f32.mrb[0].mxu0
      %v504 = vadd.f32 0.0, %v503
      %v505 = vpop.f32.mrb[0].mxu0
      %v506 = vadd.f32 0.0, %v505
      %v507 = vpop.f32.mrb[0].mxu0
      %v508 = vadd.f32 0.0, %v507
      %v509 = vpop.f32.mrb[0].mxu0
      %v510 = vadd.f32 0.0, %v509
      %511 = vdwg.mxu0
      %v514 = vunpack.c.l.s4 1983009808
      %v515 = vunpack.c.0.s8 %v514
      %v516 = vlaneseq
      %v517 = vshrl.u32 %v516, 7
      %v518 = vsub.s32 %v515, %v517
      %v519 = vrot.slane %v387, %v518
      %v520 = vcombine.high %v519, %v519
      %v522 = vsel %vm419, %v383, 0
      %v525 = vsel %vm419, %v384, 0
      %v528 = vsel %vm419, %v385, 0
      %v531 = vsel %vm419, %v386, 0
      %v534 = vsel %vm432, %v519, 0
      %v537 = vsel %vm432, %v520, 0
      %539 = vmatprep.subr.bf16.mxu0 %v537
      %540 = vmatpush1.bf16.msra.mxu0 %v534
      %541 = vmatprep.subr.bf16.mxu0 0
      %542 = vmatpush1.bf16.msra.mxu0 0
      %543 = vmatprep.subr.bf16.mxu0 0
      %544 = vmatpush1.bf16.msra.mxu0 0
      %545 = vmatprep.subr.bf16.mxu0 0
      %546 = vmatpush1.bf16.msra.mxu0 0
      %547 = vmatprep.subr.bf16.mxu0 0
      %548 = vmatpush1.bf16.msra.mxu0 0
      %549 = vmatprep.subr.bf16.mxu0 0
      %550 = vmatpush1.bf16.msra.mxu0 0
      %551 = vmatprep.subr.bf16.mxu0 0
      %552 = vmatpush1.bf16.msra.mxu0 0
      %553 = vmatprep.subr.bf16.mxu0 0
      %554 = vmatpush1.bf16.msra.mxu0 0
      %555 = vmatprep.subr.bf16.mxu0 0
      %556 = vmatpush1.bf16.msra.mxu0 0
      %557 = vmatprep.subr.bf16.mxu0 0
      %558 = vmatpush1.bf16.msra.mxu0 0
      %559 = vmatprep.subr.bf16.mxu0 0
      %560 = vmatpush1.bf16.msra.mxu0 0
      %561 = vmatprep.subr.bf16.mxu0 0
      %562 = vmatpush1.bf16.msra.mxu0 0
      %563 = vmatprep.subr.bf16.mxu0 0
      %564 = vmatpush1.bf16.msra.mxu0 0
      %565 = vmatprep.subr.bf16.mxu0 0
      %566 = vmatpush1.bf16.msra.mxu0 0
      %567 = vmatprep.subr.bf16.mxu0 0
      %568 = vmatpush1.bf16.msra.mxu0 0
      %569 = vmatprep.subr.bf16.mxu0 0
      %570 = vmatpush1.bf16.msra.mxu0 0
      %571 = vmatprep.mubr.bf16.mxu0 0
      %572 = vmatmul.mubr.bf16.gmra.mrb[0].mxu0 %v522
      %v573 = vpop.f32.mrb[0].mxu0
      %v574 = vadd.f32 %v474, %v573
      %v575 = vpop.f32.mrb[0].mxu0
      %v576 = vadd.f32 %v476, %v575
      %v577 = vpop.f32.mrb[0].mxu0
      %v578 = vadd.f32 %v478, %v577
      %v579 = vpop.f32.mrb[0].mxu0
      %v580 = vadd.f32 %v480, %v579
      %581 = vmatprep.mubr.bf16.mxu0 0
      %582 = vmatmul.mubr.bf16.gmra.mrb[0].mxu0 %v525
      %v583 = vpop.f32.mrb[0].mxu0
      %v584 = vadd.f32 %v484, %v583
      %v585 = vpop.f32.mrb[0].mxu0
      %v586 = vadd.f32 %v486, %v585
      %v587 = vpop.f32.mrb[0].mxu0
      %v588 = vadd.f32 %v488, %v587
      %v589 = vpop.f32.mrb[0].mxu0
      %v590 = vadd.f32 %v490, %v589
      %591 = vmatprep.mubr.bf16.mxu0 0
      %592 = vmatmul.mubr.bf16.gmra.mrb[0].mxu0 %v528
      %v593 = vpop.f32.mrb[0].mxu0
      %v594 = vadd.f32 %v494, %v593
      %v595 = vpop.f32.mrb[0].mxu0
      %v596 = vadd.f32 %v496, %v595
      %v597 = vpop.f32.mrb[0].mxu0
      %v598 = vadd.f32 %v498, %v597
      %v599 = vpop.f32.mrb[0].mxu0
      %v600 = vadd.f32 %v500, %v599
      %601 = vmatprep.mubr.bf16.mxu0 0
      %602 = vmatmul.mubr.bf16.gmra.mrb[0].mxu0 %v531
      %v603 = vpop.f32.mrb[0].mxu0
      %v604 = vadd.f32 %v504, %v603
      %v605 = vpop.f32.mrb[0].mxu0
      %v606 = vadd.f32 %v506, %v605
      %v607 = vpop.f32.mrb[0].mxu0
      %v608 = vadd.f32 %v508, %v607
      %v609 = vpop.f32.mrb[0].mxu0
      %v610 = vadd.f32 %v510, %v609
      %611 = vdwg.mxu0
      %v612 = vld [vmem:[%s345] sm:$0xf]
      %v613 = vld [vmem:[%s345 + $0x4] sm:$0x1]
      %v614 = vld [vmem:[%s345 + $0x8] sm:$0xf]
      %v615 = vld [vmem:[%s345 + $0xc] sm:$0x1]
      %v616 = vld [vmem:[%s345 + $0x10] sm:$0xf]
      %v617 = vld [vmem:[%s345 + $0x14] sm:$0x1]
      %v618 = vld [vmem:[%s345 + $0x18] sm:$0xf]
      %v619 = vld [vmem:[%s345 + $0x1c] sm:$0x1]
      %v620 = vld [vmem:[%s345 + $0x20] sm:$0xf]
      %v621 = vld [vmem:[%s345 + $0x24] sm:$0x1]
      %v622 = vld [vmem:[%s345 + $0x28] sm:$0xf]
      %v623 = vld [vmem:[%s345 + $0x2c] sm:$0x1]
      %v624 = vld [vmem:[%s345 + $0x30] sm:$0xf]
      %v625 = vld [vmem:[%s345 + $0x34] sm:$0x1]
      %v626 = vld [vmem:[%s345 + $0x38] sm:$0xf]
      %v627 = vld [vmem:[%s345 + $0x3c] sm:$0x1]
      %v628 = vunpack.c.l.bf16 %v612
      %v629 = vunpack.c.l.bf16 %v613
      %v630 = vunpack.c.l.bf16 %v614
      %v631 = vunpack.c.l.bf16 %v615
      %v632 = vunpack.c.l.bf16 %v616
      %v633 = vunpack.c.l.bf16 %v617
      %v634 = vunpack.c.l.bf16 %v618
      %v635 = vunpack.c.l.bf16 %v619
      %v636 = vunpack.c.l.bf16 %v620
      %v637 = vunpack.c.l.bf16 %v621
      %v638 = vunpack.c.l.bf16 %v622
      %v639 = vunpack.c.l.bf16 %v623
      %v640 = vunpack.c.l.bf16 %v624
      %v641 = vunpack.c.l.bf16 %v625
      %v642 = vunpack.c.l.bf16 %v626
      %v643 = vunpack.c.l.bf16 %v627
      %vm660 = vcmask 1046528
      %v661 = vrot.slane %v628, 1
      %v662 = vrot.slane %v629, 1
      %v663 = vsel %vm660, %v661, %v662
      %v664 = vrot.slane %v630, 1
      %v665 = vrot.slane %v631, 1
      %v666 = vsel %vm660, %v664, %v665
      %v667 = vrot.slane %v632, 1
      %v668 = vrot.slane %v633, 1
      %v669 = vsel %vm660, %v667, %v668
      %v670 = vrot.slane %v634, 1
      %v671 = vrot.slane %v635, 1
      %v672 = vsel %vm660, %v670, %v671
      %v673 = vrot.slane %v636, 1
      %v674 = vrot.slane %v637, 1
      %v675 = vsel %vm660, %v673, %v674
      %v676 = vrot.slane %v638, 1
      %v677 = vrot.slane %v639, 1
      %v678 = vsel %vm660, %v676, %v677
      %v679 = vrot.slane %v640, 1
      %v680 = vrot.slane %v641, 1
      %v681 = vsel %vm660, %v679, %v680
      %v682 = vrot.slane %v642, 1
      %v683 = vrot.slane %v643, 1
      %v684 = vsel %vm660, %v682, %v683
      %v693 = vpack.c.bf16 %v666, %v663
      %v694 = vpack.c.bf16 %v672, %v669
      %v695 = vpack.c.bf16 %v678, %v675
      %v696 = vpack.c.bf16 %v684, %v681
      %s697 = scalar_lea.vmem %s4, 8
      %v698 = vld [vmem:[%s697] sm:$0xf]
      %v701 = vunpack.c.l.s4 1983009808
      %v702 = vunpack.c.0.s8 %v701
      %v703 = vlaneseq
      %v704 = vshrl.u32 %v703, 7
      %v705 = vsub.s32 %v702, %v704
      %v706 = vrot.slane %v698, %v705
      %v707 = vcombine.high %v706, %v706
      %v709 = vsel %vm419, %v693, 0
      %v712 = vsel %vm419, %v694, 0
      %v715 = vsel %vm419, %v695, 0
      %v718 = vsel %vm419, %v696, 0
      %v721 = vsel %vm432, %v706, 0
      %v724 = vsel %vm432, %v707, 0
      %726 = vmatprep.subr.bf16.mxu0 %v724
      %727 = vmatpush1.bf16.msra.mxu0 %v721
      %728 = vmatprep.subr.bf16.mxu0 0
      %729 = vmatpush1.bf16.msra.mxu0 0
      %730 = vmatprep.subr.bf16.mxu0 0
      %731 = vmatpush1.bf16.msra.mxu0 0
      %732 = vmatprep.subr.bf16.mxu0 0
      %733 = vmatpush1.bf16.msra.mxu0 0
      %734 = vmatprep.subr.bf16.mxu0 0
      %735 = vmatpush1.bf16.msra.mxu0 0
      %736 = vmatprep.subr.bf16.mxu0 0
      %737 = vmatpush1.bf16.msra.mxu0 0
      %738 = vmatprep.subr.bf16.mxu0 0
      %739 = vmatpush1.bf16.msra.mxu0 0
      %740 = vmatprep.subr.bf16.mxu0 0
      %741 = vmatpush1.bf16.msra.mxu0 0
      %742 = vmatprep.subr.bf16.mxu0 0
      %743 = vmatpush1.bf16.msra.mxu0 0
      %744 = vmatprep.subr.bf16.mxu0 0
      %745 = vmatpush1.bf16.msra.mxu0 0
      %746 = vmatprep.subr.bf16.mxu0 0
      %747 = vmatpush1.bf16.msra.mxu0 0
      %748 = vmatprep.subr.bf16.mxu0 0
      %749 = vmatpush1.bf16.msra.mxu0 0
      %750 = vmatprep.subr.bf16.mxu0 0
      %751 = vmatpush1.bf16.msra.mxu0 0
      %752 = vmatprep.subr.bf16.mxu0 0
      %753 = vmatpush1.bf16.msra.mxu0 0
      %754 = vmatprep.subr.bf16.mxu0 0
      %755 = vmatpush1.bf16.msra.mxu0 0
      %756 = vmatprep.subr.bf16.mxu0 0
      %757 = vmatpush1.bf16.msra.mxu0 0
      %758 = vmatprep.mubr.bf16.mxu0 0
      %759 = vmatmul.mubr.bf16.gmra.mrb[0].mxu0 %v709
      %v760 = vpop.f32.mrb[0].mxu0
      %v761 = vadd.f32 0.0, %v760
      %v762 = vpop.f32.mrb[0].mxu0
      %v763 = vadd.f32 0.0, %v762
      %v764 = vpop.f32.mrb[0].mxu0
      %v765 = vadd.f32 0.0, %v764
      %v766 = vpop.f32.mrb[0].mxu0
      %v767 = vadd.f32 0.0, %v766
      %768 = vmatprep.mubr.bf16.mxu0 0
      %769 = vmatmul.mubr.bf16.gmra.mrb[0].mxu0 %v712
      %v770 = vpop.f32.mrb[0].mxu0
      %v771 = vadd.f32 0.0, %v770
      %v772 = vpop.f32.mrb[0].mxu0
      %v773 = vadd.f32 0.0, %v772
      %v774 = vpop.f32.mrb[0].mxu0
      %v775 = vadd.f32 0.0, %v774
      %v776 = vpop.f32.mrb[0].mxu0
      %v777 = vadd.f32 0.0, %v776
      %778 = vmatprep.mubr.bf16.mxu0 0
      %779 = vmatmul.mubr.bf16.gmra.mrb[0].mxu0 %v715
      %v780 = vpop.f32.mrb[0].mxu0
      %v781 = vadd.f32 0.0, %v780
      %v782 = vpop.f32.mrb[0].mxu0
      %v783 = vadd.f32 0.0, %v782
      %v784 = vpop.f32.mrb[0].mxu0
      %v785 = vadd.f32 0.0, %v784
      %v786 = vpop.f32.mrb[0].mxu0
      %v787 = vadd.f32 0.0, %v786
      %788 = vmatprep.mubr.bf16.mxu0 0
      %789 = vmatmul.mubr.bf16.gmra.mrb[0].mxu0 %v718
      %v790 = vpop.f32.mrb[0].mxu0
      %v791 = vadd.f32 0.0, %v790
      %v792 = vpop.f32.mrb[0].mxu0
      %v793 = vadd.f32 0.0, %v792
      %v794 = vpop.f32.mrb[0].mxu0
      %v795 = vadd.f32 0.0, %v794
      %v796 = vpop.f32.mrb[0].mxu0
      %v797 = vadd.f32 0.0, %v796
      %798 = vdwg.mxu0
      %v799 = vadd.f32 %v574, %v761
      %v800 = vadd.f32 %v576, %v763
      %v801 = vadd.f32 %v578, %v765
      %v802 = vadd.f32 %v580, %v767
      %v803 = vadd.f32 %v584, %v771
      %v804 = vadd.f32 %v586, %v773
      %v805 = vadd.f32 %v588, %v775
      %v806 = vadd.f32 %v590, %v777
      %v807 = vadd.f32 %v594, %v781
      %v808 = vadd.f32 %v596, %v783
      %v809 = vadd.f32 %v598, %v785
      %v810 = vadd.f32 %v600, %v787
      %v811 = vadd.f32 %v604, %v791
      %v812 = vadd.f32 %v606, %v793
      %v813 = vadd.f32 %v608, %v795
      %v814 = vadd.f32 %v610, %v797
      %v815 = vld [vmem:[%s355] sm:$0xf]
      %v816 = vld [vmem:[%s355 + $0x8] sm:$0xf]
      %v817 = vld [vmem:[%s355 + $0x10] sm:$0xf]
      %v818 = vld [vmem:[%s355 + $0x18] sm:$0xf]
      %v819 = vld [vmem:[%s355 + $0x20] sm:$0xf]
      %v820 = vld [vmem:[%s355 + $0x28] sm:$0xf]
      %v821 = vld [vmem:[%s355 + $0x30] sm:$0xf]
      %v822 = vld [vmem:[%s355 + $0x38] sm:$0xf]
      %v823 = vunpack.c.l.bf16 %v815
      %v824 = vunpack.c.l.bf16 %v816
      %v825 = vunpack.c.l.bf16 %v817
      %v826 = vunpack.c.l.bf16 %v818
      %v827 = vunpack.c.l.bf16 %v819
      %v828 = vunpack.c.l.bf16 %v820
      %v829 = vunpack.c.l.bf16 %v821
      %v830 = vunpack.c.l.bf16 %v822
      %v831 = vpack.c.bf16 %v824, %v823
      %v832 = vpack.c.bf16 %v826, %v825
      %v833 = vpack.c.bf16 %v828, %v827
      %v834 = vpack.c.bf16 %v830, %v829
      %s835 = scalar_lea.vmem %s4, 12
      %v836 = vld [vmem:[%s835] sm:$0xf]
      %v839 = vunpack.c.l.s4 1983009808
      %v840 = vunpack.c.0.s8 %v839
      %v841 = vlaneseq
      %v842 = vshrl.u32 %v841, 7
      %v843 = vsub.s32 %v840, %v842
      %v844 = vrot.slane %v836, %v843
      %v845 = vcombine.high %v844, %v844
      %v847 = vsel %vm419, %v831, 0
      %v850 = vsel %vm419, %v832, 0
      %v853 = vsel %vm419, %v833, 0
      %v856 = vsel %vm419, %v834, 0
      %v859 = vsel %vm432, %v844, 0
      %v862 = vsel %vm432, %v845, 0
      %864 = vmatprep.subr.bf16.mxu0 %v862
      %865 = vmatpush1.bf16.msra.mxu0 %v859
      %866 = vmatprep.subr.bf16.mxu0 0
      %867 = vmatpush1.bf16.msra.mxu0 0
      %868 = vmatprep.subr.bf16.mxu0 0
      %869 = vmatpush1.bf16.msra.mxu0 0
      %870 = vmatprep.subr.bf16.mxu0 0
      %871 = vmatpush1.bf16.msra.mxu0 0
      %872 = vmatprep.subr.bf16.mxu0 0
      %873 = vmatpush1.bf16.msra.mxu0 0
      %874 = vmatprep.subr.bf16.mxu0 0
      %875 = vmatpush1.bf16.msra.mxu0 0
      %876 = vmatprep.subr.bf16.mxu0 0
      %877 = vmatpush1.bf16.msra.mxu0 0
      %878 = vmatprep.subr.bf16.mxu0 0
      %879 = vmatpush1.bf16.msra.mxu0 0
      %880 = vmatprep.subr.bf16.mxu0 0
      %881 = vmatpush1.bf16.msra.mxu0 0
      %882 = vmatprep.subr.bf16.mxu0 0
      %883 = vmatpush1.bf16.msra.mxu0 0
      %884 = vmatprep.subr.bf16.mxu0 0
      %885 = vmatpush1.bf16.msra.mxu0 0
      %886 = vmatprep.subr.bf16.mxu0 0
      %887 = vmatpush1.bf16.msra.mxu0 0
      %888 = vmatprep.subr.bf16.mxu0 0
      %889 = vmatpush1.bf16.msra.mxu0 0
      %890 = vmatprep.subr.bf16.mxu0 0
      %891 = vmatpush1.bf16.msra.mxu0 0
      %892 = vmatprep.subr.bf16.mxu0 0
      %893 = vmatpush1.bf16.msra.mxu0 0
      %894 = vmatprep.subr.bf16.mxu0 0
      %895 = vmatpush1.bf16.msra.mxu0 0
      %896 = vmatprep.mubr.bf16.mxu0 0
      %897 = vmatmul.mubr.bf16.gmra.mrb[0].mxu0 %v847
      %v898 = vpop.f32.mrb[0].mxu0
      %v899 = vadd.f32 0.0, %v898
      %v900 = vpop.f32.mrb[0].mxu0
      %v901 = vadd.f32 0.0, %v900
      %v902 = vpop.f32.mrb[0].mxu0
      %v903 = vadd.f32 0.0, %v902
      %v904 = vpop.f32.mrb[0].mxu0
      %v905 = vadd.f32 0.0, %v904
      %906 = vmatprep.mubr.bf16.mxu0 0
      %907 = vmatmul.mubr.bf16.gmra.mrb[0].mxu0 %v850
      %v908 = vpop.f32.mrb[0].mxu0
      %v909 = vadd.f32 0.0, %v908
      %v910 = vpop.f32.mrb[0].mxu0
      %v911 = vadd.f32 0.0, %v910
      %v912 = vpop.f32.mrb[0].mxu0
      %v913 = vadd.f32 0.0, %v912
      %v914 = vpop.f32.mrb[0].mxu0
      %v915 = vadd.f32 0.0, %v914
      %916 = vmatprep.mubr.bf16.mxu0 0
      %917 = vmatmul.mubr.bf16.gmra.mrb[0].mxu0 %v853
      %v918 = vpop.f32.mrb[0].mxu0
      %v919 = vadd.f32 0.0, %v918
      %v920 = vpop.f32.mrb[0].mxu0
      %v921 = vadd.f32 0.0, %v920
      %v922 = vpop.f32.mrb[0].mxu0
      %v923 = vadd.f32 0.0, %v922
      %v924 = vpop.f32.mrb[0].mxu0
      %v925 = vadd.f32 0.0, %v924
      %926 = vmatprep.mubr.bf16.mxu0 0
      %927 = vmatmul.mubr.bf16.gmra.mrb[0].mxu0 %v856
      %v928 = vpop.f32.mrb[0].mxu0
      %v929 = vadd.f32 0.0, %v928
      %v930 = vpop.f32.mrb[0].mxu0
      %v931 = vadd.f32 0.0, %v930
      %v932 = vpop.f32.mrb[0].mxu0
      %v933 = vadd.f32 0.0, %v932
      %v934 = vpop.f32.mrb[0].mxu0
      %v935 = vadd.f32 0.0, %v934
      %936 = vdwg.mxu0
      %v937 = vadd.f32 %v799, %v899
      %v938 = vadd.f32 %v800, %v901
      %v939 = vadd.f32 %v801, %v903
      %v940 = vadd.f32 %v802, %v905
      %v941 = vadd.f32 %v803, %v909
      %v942 = vadd.f32 %v804, %v911
      %v943 = vadd.f32 %v805, %v913
      %v944 = vadd.f32 %v806, %v915
      %v945 = vadd.f32 %v807, %v919
      %v946 = vadd.f32 %v808, %v921
      %v947 = vadd.f32 %v809, %v923
      %v948 = vadd.f32 %v810, %v925
      %v949 = vadd.f32 %v811, %v929
      %v950 = vadd.f32 %v812, %v931
      %v951 = vadd.f32 %v813, %v933
      %v952 = vadd.f32 %v814, %v935
      %v953 = vld [vmem:[%s360] sm:$0xf]
      %v954 = vld [vmem:[%s360 + $0x8] sm:$0xf]
      %v955 = vld [vmem:[%s360 + $0x10] sm:$0xf]
      %v956 = vld [vmem:[%s360 + $0x18] sm:$0xf]
      %v957 = vld [vmem:[%s360 + $0x20] sm:$0xf]
      %v958 = vld [vmem:[%s360 + $0x28] sm:$0xf]
      %v959 = vld [vmem:[%s360 + $0x30] sm:$0xf]
      %v960 = vld [vmem:[%s360 + $0x38] sm:$0xf]
      %v961 = vunpack.c.l.bf16 %v953
      %v962 = vunpack.c.l.bf16 %v954
      %v963 = vunpack.c.l.bf16 %v955
      %v964 = vunpack.c.l.bf16 %v956
      %v965 = vunpack.c.l.bf16 %v957
      %v966 = vunpack.c.l.bf16 %v958
      %v967 = vunpack.c.l.bf16 %v959
      %v968 = vunpack.c.l.bf16 %v960
      %v969 = vpack.c.bf16 %v962, %v961
      %v970 = vpack.c.bf16 %v964, %v963
      %v971 = vpack.c.bf16 %v966, %v965
      %v972 = vpack.c.bf16 %v968, %v967
      %s973 = scalar_lea.vmem %s4, 16
      %v974 = vld [vmem:[%s973] sm:$0xf]
      %v977 = vunpack.c.l.s4 1983009808
      %v978 = vunpack.c.0.s8 %v977
      %v979 = vlaneseq
      %v980 = vshrl.u32 %v979, 7
      %v981 = vsub.s32 %v978, %v980
      %v982 = vrot.slane %v974, %v981
      %v983 = vcombine.high %v982, %v982
      %v985 = vsel %vm419, %v969, 0
      %v988 = vsel %vm419, %v970, 0
      %v991 = vsel %vm419, %v971, 0
      %v994 = vsel %vm419, %v972, 0
      %v997 = vsel %vm432, %v982, 0
      %v1000 = vsel %vm432, %v983, 0
      %1002 = vmatprep.subr.bf16.mxu0 %v1000
      %1003 = vmatpush1.bf16.msra.mxu0 %v997
      %1004 = vmatprep.subr.bf16.mxu0 0
      %1005 = vmatpush1.bf16.msra.mxu0 0
      %1006 = vmatprep.subr.bf16.mxu0 0
      %1007 = vmatpush1.bf16.msra.mxu0 0
      %1008 = vmatprep.subr.bf16.mxu0 0
      %1009 = vmatpush1.bf16.msra.mxu0 0
      %1010 = vmatprep.subr.bf16.mxu0 0
      %1011 = vmatpush1.bf16.msra.mxu0 0
      %1012 = vmatprep.subr.bf16.mxu0 0
      %1013 = vmatpush1.bf16.msra.mxu0 0
      %1014 = vmatprep.subr.bf16.mxu0 0
      %1015 = vmatpush1.bf16.msra.mxu0 0
      %1016 = vmatprep.subr.bf16.mxu0 0
      %1017 = vmatpush1.bf16.msra.mxu0 0
      %1018 = vmatprep.subr.bf16.mxu0 0
      %1019 = vmatpush1.bf16.msra.mxu0 0
      %1020 = vmatprep.subr.bf16.mxu0 0
      %1021 = vmatpush1.bf16.msra.mxu0 0
      %1022 = vmatprep.subr.bf16.mxu0 0
      %1023 = vmatpush1.bf16.msra.mxu0 0
      %1024 = vmatprep.subr.bf16.mxu0 0
      %1025 = vmatpush1.bf16.msra.mxu0 0
      %1026 = vmatprep.subr.bf16.mxu0 0
      %1027 = vmatpush1.bf16.msra.mxu0 0
      %1028 = vmatprep.subr.bf16.mxu0 0
      %1029 = vmatpush1.bf16.msra.mxu0 0
      %1030 = vmatprep.subr.bf16.mxu0 0
      %1031 = vmatpush1.bf16.msra.mxu0 0
      %1032 = vmatprep.subr.bf16.mxu0 0
      %1033 = vmatpush1.bf16.msra.mxu0 0
      %1034 = vmatprep.mubr.bf16.mxu0 0
      %1035 = vmatmul.mubr.bf16.gmra.mrb[0].mxu0 %v985
      %v1036 = vpop.f32.mrb[0].mxu0
      %v1037 = vadd.f32 0.0, %v1036
      %v1038 = vpop.f32.mrb[0].mxu0
      %v1039 = vadd.f32 0.0, %v1038
      %v1040 = vpop.f32.mrb[0].mxu0
      %v1041 = vadd.f32 0.0, %v1040
      %v1042 = vpop.f32.mrb[0].mxu0
      %v1043 = vadd.f32 0.0, %v1042
      %1044 = vmatprep.mubr.bf16.mxu0 0
      %1045 = vmatmul.mubr.bf16.gmra.mrb[0].mxu0 %v988
      %v1046 = vpop.f32.mrb[0].mxu0
      %v1047 = vadd.f32 0.0, %v1046
      %v1048 = vpop.f32.mrb[0].mxu0
      %v1049 = vadd.f32 0.0, %v1048
      %v1050 = vpop.f32.mrb[0].mxu0
      %v1051 = vadd.f32 0.0, %v1050
      %v1052 = vpop.f32.mrb[0].mxu0
      %v1053 = vadd.f32 0.0, %v1052
      %1054 = vmatprep.mubr.bf16.mxu0 0
      %1055 = vmatmul.mubr.bf16.gmra.mrb[0].mxu0 %v991
      %v1056 = vpop.f32.mrb[0].mxu0
      %v1057 = vadd.f32 0.0, %v1056
      %v1058 = vpop.f32.mrb[0].mxu0
      %v1059 = vadd.f32 0.0, %v1058
      %v1060 = vpop.f32.mrb[0].mxu0
      %v1061 = vadd.f32 0.0, %v1060
      %v1062 = vpop.f32.mrb[0].mxu0
      %v1063 = vadd.f32 0.0, %v1062
      %1064 = vmatprep.mubr.bf16.mxu0 0
      %1065 = vmatmul.mubr.bf16.gmra.mrb[0].mxu0 %v994
      %v1066 = vpop.f32.mrb[0].mxu0
      %v1067 = vadd.f32 0.0, %v1066
      %v1068 = vpop.f32.mrb[0].mxu0
      %v1069 = vadd.f32 0.0, %v1068
      %v1070 = vpop.f32.mrb[0].mxu0
      %v1071 = vadd.f32 0.0, %v1070
      %v1072 = vpop.f32.mrb[0].mxu0
      %v1073 = vadd.f32 0.0, %v1072
      %1074 = vdwg.mxu0
      %v1075 = vadd.f32 %v937, %v1037
      %v1076 = vadd.f32 %v938, %v1039
      %v1077 = vadd.f32 %v939, %v1041
      %v1078 = vadd.f32 %v940, %v1043
      %v1079 = vadd.f32 %v941, %v1047
      %v1080 = vadd.f32 %v942, %v1049
      %v1081 = vadd.f32 %v943, %v1051
      %v1082 = vadd.f32 %v944, %v1053
      %v1083 = vadd.f32 %v945, %v1057
      %v1084 = vadd.f32 %v946, %v1059
      %v1085 = vadd.f32 %v947, %v1061
      %v1086 = vadd.f32 %v948, %v1063
      %v1087 = vadd.f32 %v949, %v1067
      %v1088 = vadd.f32 %v950, %v1069
      %v1089 = vadd.f32 %v951, %v1071
      %v1090 = vadd.f32 %v952, %v1073
      %v1091 = vld [vmem:[%s355] sm:$0xf]
      %v1092 = vld [vmem:[%s355 + $0x4] sm:$0x1]
      %v1093 = vld [vmem:[%s355 + $0x8] sm:$0xf]
      %v1094 = vld [vmem:[%s355 + $0xc] sm:$0x1]
      %v1095 = vld [vmem:[%s355 + $0x10] sm:$0xf]
      %v1096 = vld [vmem:[%s355 + $0x14] sm:$0x1]
      %v1097 = vld [vmem:[%s355 + $0x18] sm:$0xf]
      %v1098 = vld [vmem:[%s355 + $0x1c] sm:$0x1]
      %v1099 = vld [vmem:[%s355 + $0x20] sm:$0xf]
      %v1100 = vld [vmem:[%s355 + $0x24] sm:$0x1]
      %v1101 = vld [vmem:[%s355 + $0x28] sm:$0xf]
      %v1102 = vld [vmem:[%s355 + $0x2c] sm:$0x1]
      %v1103 = vld [vmem:[%s355 + $0x30] sm:$0xf]
      %v1104 = vld [vmem:[%s355 + $0x34] sm:$0x1]
      %v1105 = vld [vmem:[%s355 + $0x38] sm:$0xf]
      %v1106 = vld [vmem:[%s355 + $0x3c] sm:$0x1]
      %v1107 = vunpack.c.l.bf16 %v1091
      %v1108 = vunpack.c.l.bf16 %v1092
      %v1109 = vunpack.c.l.bf16 %v1093
      %v1110 = vunpack.c.l.bf16 %v1094
      %v1111 = vunpack.c.l.bf16 %v1095
      %v1112 = vunpack.c.l.bf16 %v1096
      %v1113 = vunpack.c.l.bf16 %v1097
      %v1114 = vunpack.c.l.bf16 %v1098
      %v1115 = vunpack.c.l.bf16 %v1099
      %v1116 = vunpack.c.l.bf16 %v1100
      %v1117 = vunpack.c.l.bf16 %v1101
      %v1118 = vunpack.c.l.bf16 %v1102
      %v1119 = vunpack.c.l.bf16 %v1103
      %v1120 = vunpack.c.l.bf16 %v1104
      %v1121 = vunpack.c.l.bf16 %v1105
      %v1122 = vunpack.c.l.bf16 %v1106
      %v1139 = vrot.slane %v1107, 1
      %v1140 = vrot.slane %v1108, 1
      %v1141 = vsel %vm660, %v1139, %v1140
      %v1142 = vrot.slane %v1109, 1
      %v1143 = vrot.slane %v1110, 1
      %v1144 = vsel %vm660, %v1142, %v1143
      %v1145 = vrot.slane %v1111, 1
      %v1146 = vrot.slane %v1112, 1
      %v1147 = vsel %vm660, %v1145, %v1146
      %v1148 = vrot.slane %v1113, 1
      %v1149 = vrot.slane %v1114, 1
      %v1150 = vsel %vm660, %v1148, %v1149
      %v1151 = vrot.slane %v1115, 1
      %v1152 = vrot.slane %v1116, 1
      %v1153 = vsel %vm660, %v1151, %v1152
      %v1154 = vrot.slane %v1117, 1
      %v1155 = vrot.slane %v1118, 1
      %v1156 = vsel %vm660, %v1154, %v1155
      %v1157 = vrot.slane %v1119, 1
      %v1158 = vrot.slane %v1120, 1
      %v1159 = vsel %vm660, %v1157, %v1158
      %v1160 = vrot.slane %v1121, 1
      %v1161 = vrot.slane %v1122, 1
      %v1162 = vsel %vm660, %v1160, %v1161
      %v1171 = vpack.c.bf16 %v1144, %v1141
      %v1172 = vpack.c.bf16 %v1150, %v1147
      %v1173 = vpack.c.bf16 %v1156, %v1153
      %v1174 = vpack.c.bf16 %v1162, %v1159
      %s1175 = scalar_lea.vmem %s4, 20
      %v1176 = vld [vmem:[%s1175] sm:$0xf]
      %v1179 = vunpack.c.l.s4 1983009808
      %v1180 = vunpack.c.0.s8 %v1179
      %v1181 = vlaneseq
      %v1182 = vshrl.u32 %v1181, 7
      %v1183 = vsub.s32 %v1180, %v1182
      %v1184 = vrot.slane %v1176, %v1183
      %v1185 = vcombine.high %v1184, %v1184
      %v1187 = vsel %vm419, %v1171, 0
      %v1190 = vsel %vm419, %v1172, 0
      %v1193 = vsel %vm419, %v1173, 0
      %v1196 = vsel %vm419, %v1174, 0
      %v1199 = vsel %vm432, %v1184, 0
      %v1202 = vsel %vm432, %v1185, 0
      %1204 = vmatprep.subr.bf16.mxu0 %v1202
      %1205 = vmatpush1.bf16.msra.mxu0 %v1199
      %1206 = vmatprep.subr.bf16.mxu0 0
      %1207 = vmatpush1.bf16.msra.mxu0 0
      %1208 = vmatprep.subr.bf16.mxu0 0
      %1209 = vmatpush1.bf16.msra.mxu0 0
      %1210 = vmatprep.subr.bf16.mxu0 0
      %1211 = vmatpush1.bf16.msra.mxu0 0
      %1212 = vmatprep.subr.bf16.mxu0 0
      %1213 = vmatpush1.bf16.msra.mxu0 0
      %1214 = vmatprep.subr.bf16.mxu0 0
      %1215 = vmatpush1.bf16.msra.mxu0 0
      %1216 = vmatprep.subr.bf16.mxu0 0
      %1217 = vmatpush1.bf16.msra.mxu0 0
      %1218 = vmatprep.subr.bf16.mxu0 0
      %1219 = vmatpush1.bf16.msra.mxu0 0
      %1220 = vmatprep.subr.bf16.mxu0 0
      %1221 = vmatpush1.bf16.msra.mxu0 0
      %1222 = vmatprep.subr.bf16.mxu0 0
      %1223 = vmatpush1.bf16.msra.mxu0 0
      %1224 = vmatprep.subr.bf16.mxu0 0
      %1225 = vmatpush1.bf16.msra.mxu0 0
      %1226 = vmatprep.subr.bf16.mxu0 0
      %1227 = vmatpush1.bf16.msra.mxu0 0
      %1228 = vmatprep.subr.bf16.mxu0 0
      %1229 = vmatpush1.bf16.msra.mxu0 0
      %1230 = vmatprep.subr.bf16.mxu0 0
      %1231 = vmatpush1.bf16.msra.mxu0 0
      %1232 = vmatprep.subr.bf16.mxu0 0
      %1233 = vmatpush1.bf16.msra.mxu0 0
      %1234 = vmatprep.subr.bf16.mxu0 0
      %1235 = vmatpush1.bf16.msra.mxu0 0
      %1236 = vmatprep.mubr.bf16.mxu0 0
      %1237 = vmatmul.mubr.bf16.gmra.mrb[0].mxu0 %v1187
      %v1238 = vpop.f32.mrb[0].mxu0
      %v1239 = vadd.f32 0.0, %v1238
      %v1240 = vpop.f32.mrb[0].mxu0
      %v1241 = vadd.f32 0.0, %v1240
      %v1242 = vpop.f32.mrb[0].mxu0
      %v1243 = vadd.f32 0.0, %v1242
      %v1244 = vpop.f32.mrb[0].mxu0
      %v1245 = vadd.f32 0.0, %v1244
      %1246 = vmatprep.mubr.bf16.mxu0 0
      %1247 = vmatmul.mubr.bf16.gmra.mrb[0].mxu0 %v1190
      %v1248 = vpop.f32.mrb[0].mxu0
      %v1249 = vadd.f32 0.0, %v1248
      %v1250 = vpop.f32.mrb[0].mxu0
      %v1251 = vadd.f32 0.0, %v1250
      %v1252 = vpop.f32.mrb[0].mxu0
      %v1253 = vadd.f32 0.0, %v1252
      %v1254 = vpop.f32.mrb[0].mxu0
      %v1255 = vadd.f32 0.0, %v1254
      %1256 = vmatprep.mubr.bf16.mxu0 0
      %1257 = vmatmul.mubr.bf16.gmra.mrb[0].mxu0 %v1193
      %v1258 = vpop.f32.mrb[0].mxu0
      %v1259 = vadd.f32 0.0, %v1258
      %v1260 = vpop.f32.mrb[0].mxu0
      %v1261 = vadd.f32 0.0, %v1260
      %v1262 = vpop.f32.mrb[0].mxu0
      %v1263 = vadd.f32 0.0, %v1262
      %v1264 = vpop.f32.mrb[0].mxu0
      %v1265 = vadd.f32 0.0, %v1264
      %1266 = vmatprep.mubr.bf16.mxu0 0
      %1267 = vmatmul.mubr.bf16.gmra.mrb[0].mxu0 %v1196
      %v1268 = vpop.f32.mrb[0].mxu0
      %v1269 = vadd.f32 0.0, %v1268
      %v1270 = vpop.f32.mrb[0].mxu0
      %v1271 = vadd.f32 0.0, %v1270
      %v1272 = vpop.f32.mrb[0].mxu0
      %v1273 = vadd.f32 0.0, %v1272
      %v1274 = vpop.f32.mrb[0].mxu0
      %v1275 = vadd.f32 0.0, %v1274
      %1276 = vdwg.mxu0
      %v1277 = vadd.f32 %v1075, %v1239
      %v1278 = vadd.f32 %v1076, %v1241
      %v1279 = vadd.f32 %v1077, %v1243
      %v1280 = vadd.f32 %v1078, %v1245
      %v1281 = vadd.f32 %v1079, %v1249
      %v1282 = vadd.f32 %v1080, %v1251
      %v1283 = vadd.f32 %v1081, %v1253
      %v1284 = vadd.f32 %v1082, %v1255
      %v1285 = vadd.f32 %v1083, %v1259
      %v1286 = vadd.f32 %v1084, %v1261
      %v1287 = vadd.f32 %v1085, %v1263
      %v1288 = vadd.f32 %v1086, %v1265
      %v1289 = vadd.f32 %v1087, %v1269
      %v1290 = vadd.f32 %v1088, %v1271
      %v1291 = vadd.f32 %v1089, %v1273
      %v1292 = vadd.f32 %v1090, %v1275
      %s1293 = scalar_lea.vmem %s345, 8
      %v1294 = vld [vmem:[%s1293] sm:$0xf]
      %v1295 = vld [vmem:[%s1293 + $0x8] sm:$0xf]
      %v1296 = vld [vmem:[%s1293 + $0x10] sm:$0xf]
      %v1297 = vld [vmem:[%s1293 + $0x18] sm:$0xf]
      %v1298 = vld [vmem:[%s1293 + $0x20] sm:$0xf]
      %v1299 = vld [vmem:[%s1293 + $0x28] sm:$0xf]
      %v1300 = vld [vmem:[%s1293 + $0x30] sm:$0xf]
      %v1301 = vld [vmem:[%s1293 + $0x38] sm:$0xf]
      %v1302 = vunpack.c.l.bf16 %v1294
      %v1303 = vunpack.c.l.bf16 %v1295
      %v1304 = vunpack.c.l.bf16 %v1296
      %v1305 = vunpack.c.l.bf16 %v1297
      %v1306 = vunpack.c.l.bf16 %v1298
      %v1307 = vunpack.c.l.bf16 %v1299
      %v1308 = vunpack.c.l.bf16 %v1300
      %v1309 = vunpack.c.l.bf16 %v1301
      %v1310 = vpack.c.bf16 %v1303, %v1302
      %v1311 = vpack.c.bf16 %v1305, %v1304
      %v1312 = vpack.c.bf16 %v1307, %v1306
      %v1313 = vpack.c.bf16 %v1309, %v1308
      %s1314 = scalar_lea.vmem %s4, 24
      %v1315 = vld [vmem:[%s1314] sm:$0xf]
      %v1318 = vunpack.c.l.s4 1983009808
      %v1319 = vunpack.c.0.s8 %v1318
      %v1320 = vlaneseq
      %v1321 = vshrl.u32 %v1320, 7
      %v1322 = vsub.s32 %v1319, %v1321
      %v1323 = vrot.slane %v1315, %v1322
      %v1324 = vcombine.high %v1323, %v1323
      %v1326 = vsel %vm419, %v1310, 0
      %v1329 = vsel %vm419, %v1311, 0
      %v1332 = vsel %vm419, %v1312, 0
      %v1335 = vsel %vm419, %v1313, 0
      %v1338 = vsel %vm432, %v1323, 0
      %v1341 = vsel %vm432, %v1324, 0
      %1343 = vmatprep.subr.bf16.mxu0 %v1341
      %1344 = vmatpush1.bf16.msra.mxu0 %v1338
      %1345 = vmatprep.subr.bf16.mxu0 0
      %1346 = vmatpush1.bf16.msra.mxu0 0
      %1347 = vmatprep.subr.bf16.mxu0 0
      %1348 = vmatpush1.bf16.msra.mxu0 0
      %1349 = vmatprep.subr.bf16.mxu0 0
      %1350 = vmatpush1.bf16.msra.mxu0 0
      %1351 = vmatprep.subr.bf16.mxu0 0
      %1352 = vmatpush1.bf16.msra.mxu0 0
      %1353 = vmatprep.subr.bf16.mxu0 0
      %1354 = vmatpush1.bf16.msra.mxu0 0
      %1355 = vmatprep.subr.bf16.mxu0 0
      %1356 = vmatpush1.bf16.msra.mxu0 0
      %1357 = vmatprep.subr.bf16.mxu0 0
      %1358 = vmatpush1.bf16.msra.mxu0 0
      %1359 = vmatprep.subr.bf16.mxu0 0
      %1360 = vmatpush1.bf16.msra.mxu0 0
      %1361 = vmatprep.subr.bf16.mxu0 0
      %1362 = vmatpush1.bf16.msra.mxu0 0
      %1363 = vmatprep.subr.bf16.mxu0 0
      %1364 = vmatpush1.bf16.msra.mxu0 0
      %1365 = vmatprep.subr.bf16.mxu0 0
      %1366 = vmatpush1.bf16.msra.mxu0 0
      %1367 = vmatprep.subr.bf16.mxu0 0
      %1368 = vmatpush1.bf16.msra.mxu0 0
      %1369 = vmatprep.subr.bf16.mxu0 0
      %1370 = vmatpush1.bf16.msra.mxu0 0
      %1371 = vmatprep.subr.bf16.mxu0 0
      %1372 = vmatpush1.bf16.msra.mxu0 0
      %1373 = vmatprep.subr.bf16.mxu0 0
      %1374 = vmatpush1.bf16.msra.mxu0 0
      %1375 = vmatprep.mubr.bf16.mxu0 0
      %1376 = vmatmul.mubr.bf16.gmra.mrb[0].mxu0 %v1326
      %v1377 = vpop.f32.mrb[0].mxu0
      %v1378 = vadd.f32 0.0, %v1377
      %v1379 = vpop.f32.mrb[0].mxu0
      %v1380 = vadd.f32 0.0, %v1379
      %v1381 = vpop.f32.mrb[0].mxu0
      %v1382 = vadd.f32 0.0, %v1381
      %v1383 = vpop.f32.mrb[0].mxu0
      %v1384 = vadd.f32 0.0, %v1383
      %1385 = vmatprep.mubr.bf16.mxu0 0
      %1386 = vmatmul.mubr.bf16.gmra.mrb[0].mxu0 %v1329
      %v1387 = vpop.f32.mrb[0].mxu0
      %v1388 = vadd.f32 0.0, %v1387
      %v1389 = vpop.f32.mrb[0].mxu0
      %v1390 = vadd.f32 0.0, %v1389
      %v1391 = vpop.f32.mrb[0].mxu0
      %v1392 = vadd.f32 0.0, %v1391
      %v1393 = vpop.f32.mrb[0].mxu0
      %v1394 = vadd.f32 0.0, %v1393
      %1395 = vmatprep.mubr.bf16.mxu0 0
      %1396 = vmatmul.mubr.bf16.gmra.mrb[0].mxu0 %v1332
      %v1397 = vpop.f32.mrb[0].mxu0
      %v1398 = vadd.f32 0.0, %v1397
      %v1399 = vpop.f32.mrb[0].mxu0
      %v1400 = vadd.f32 0.0, %v1399
      %v1401 = vpop.f32.mrb[0].mxu0
      %v1402 = vadd.f32 0.0, %v1401
      %v1403 = vpop.f32.mrb[0].mxu0
      %v1404 = vadd.f32 0.0, %v1403
      %1405 = vmatprep.mubr.bf16.mxu0 0
      %1406 = vmatmul.mubr.bf16.gmra.mrb[0].mxu0 %v1335
      %v1407 = vpop.f32.mrb[0].mxu0
      %v1408 = vadd.f32 0.0, %v1407
      %v1409 = vpop.f32.mrb[0].mxu0
      %v1410 = vadd.f32 0.0, %v1409
      %v1411 = vpop.f32.mrb[0].mxu0
      %v1412 = vadd.f32 0.0, %v1411
      %v1413 = vpop.f32.mrb[0].mxu0
      %v1414 = vadd.f32 0.0, %v1413
      %1415 = vdwg.mxu0
      %v1416 = vadd.f32 %v1277, %v1378
      %v1417 = vadd.f32 %v1278, %v1380
      %v1418 = vadd.f32 %v1279, %v1382
      %v1419 = vadd.f32 %v1280, %v1384
      %v1420 = vadd.f32 %v1281, %v1388
      %v1421 = vadd.f32 %v1282, %v1390
      %v1422 = vadd.f32 %v1283, %v1392
      %v1423 = vadd.f32 %v1284, %v1394
      %v1424 = vadd.f32 %v1285, %v1398
      %v1425 = vadd.f32 %v1286, %v1400
      %v1426 = vadd.f32 %v1287, %v1402
      %v1427 = vadd.f32 %v1288, %v1404
      %v1428 = vadd.f32 %v1289, %v1408
      %v1429 = vadd.f32 %v1290, %v1410
      %v1430 = vadd.f32 %v1291, %v1412
      %v1431 = vadd.f32 %v1292, %v1414
      %s1432 = scalar_lea.vmem %s350, 8
      %v1433 = vld [vmem:[%s1432] sm:$0xf]
      %v1434 = vld [vmem:[%s1432 + $0x8] sm:$0xf]
      %v1435 = vld [vmem:[%s1432 + $0x10] sm:$0xf]
      %v1436 = vld [vmem:[%s1432 + $0x18] sm:$0xf]
      %v1437 = vld [vmem:[%s1432 + $0x20] sm:$0xf]
      %v1438 = vld [vmem:[%s1432 + $0x28] sm:$0xf]
      %v1439 = vld [vmem:[%s1432 + $0x30] sm:$0xf]
      %v1440 = vld [vmem:[%s1432 + $0x38] sm:$0xf]
      %v1441 = vunpack.c.l.bf16 %v1433
      %v1442 = vunpack.c.l.bf16 %v1434
      %v1443 = vunpack.c.l.bf16 %v1435
      %v1444 = vunpack.c.l.bf16 %v1436
      %v1445 = vunpack.c.l.bf16 %v1437
      %v1446 = vunpack.c.l.bf16 %v1438
      %v1447 = vunpack.c.l.bf16 %v1439
      %v1448 = vunpack.c.l.bf16 %v1440
      %v1449 = vpack.c.bf16 %v1442, %v1441
      %v1450 = vpack.c.bf16 %v1444, %v1443
      %v1451 = vpack.c.bf16 %v1446, %v1445
      %v1452 = vpack.c.bf16 %v1448, %v1447
      %s1453 = scalar_lea.vmem %s4, 28
      %v1454 = vld [vmem:[%s1453] sm:$0xf]
      %v1457 = vunpack.c.l.s4 1983009808
      %v1458 = vunpack.c.0.s8 %v1457
      %v1459 = vlaneseq
      %v1460 = vshrl.u32 %v1459, 7
      %v1461 = vsub.s32 %v1458, %v1460
      %v1462 = vrot.slane %v1454, %v1461
      %v1463 = vcombine.high %v1462, %v1462
      %v1465 = vsel %vm419, %v1449, 0
      %v1468 = vsel %vm419, %v1450, 0
      %v1471 = vsel %vm419, %v1451, 0
      %v1474 = vsel %vm419, %v1452, 0
      %v1477 = vsel %vm432, %v1462, 0
      %v1480 = vsel %vm432, %v1463, 0
      %1482 = vmatprep.subr.bf16.mxu0 %v1480
      %1483 = vmatpush1.bf16.msra.mxu0 %v1477
      %1484 = vmatprep.subr.bf16.mxu0 0
      %1485 = vmatpush1.bf16.msra.mxu0 0
      %1486 = vmatprep.subr.bf16.mxu0 0
      %1487 = vmatpush1.bf16.msra.mxu0 0
      %1488 = vmatprep.subr.bf16.mxu0 0
      %1489 = vmatpush1.bf16.msra.mxu0 0
      %1490 = vmatprep.subr.bf16.mxu0 0
      %1491 = vmatpush1.bf16.msra.mxu0 0
      %1492 = vmatprep.subr.bf16.mxu0 0
      %1493 = vmatpush1.bf16.msra.mxu0 0
      %1494 = vmatprep.subr.bf16.mxu0 0
      %1495 = vmatpush1.bf16.msra.mxu0 0
      %1496 = vmatprep.subr.bf16.mxu0 0
      %1497 = vmatpush1.bf16.msra.mxu0 0
      %1498 = vmatprep.subr.bf16.mxu0 0
      %1499 = vmatpush1.bf16.msra.mxu0 0
      %1500 = vmatprep.subr.bf16.mxu0 0
      %1501 = vmatpush1.bf16.msra.mxu0 0
      %1502 = vmatprep.subr.bf16.mxu0 0
      %1503 = vmatpush1.bf16.msra.mxu0 0
      %1504 = vmatprep.subr.bf16.mxu0 0
      %1505 = vmatpush1.bf16.msra.mxu0 0
      %1506 = vmatprep.subr.bf16.mxu0 0
      %1507 = vmatpush1.bf16.msra.mxu0 0
      %1508 = vmatprep.subr.bf16.mxu0 0
      %1509 = vmatpush1.bf16.msra.mxu0 0
      %1510 = vmatprep.subr.bf16.mxu0 0
      %1511 = vmatpush1.bf16.msra.mxu0 0
      %1512 = vmatprep.subr.bf16.mxu0 0
      %1513 = vmatpush1.bf16.msra.mxu0 0
      %1514 = vmatprep.mubr.bf16.mxu0 0
      %1515 = vmatmul.mubr.bf16.gmra.mrb[0].mxu0 %v1465
      %v1516 = vpop.f32.mrb[0].mxu0
      %v1517 = vadd.f32 0.0, %v1516
      %v1518 = vpop.f32.mrb[0].mxu0
      %v1519 = vadd.f32 0.0, %v1518
      %v1520 = vpop.f32.mrb[0].mxu0
      %v1521 = vadd.f32 0.0, %v1520
      %v1522 = vpop.f32.mrb[0].mxu0
      %v1523 = vadd.f32 0.0, %v1522
      %1524 = vmatprep.mubr.bf16.mxu0 0
      %1525 = vmatmul.mubr.bf16.gmra.mrb[0].mxu0 %v1468
      %v1526 = vpop.f32.mrb[0].mxu0
      %v1527 = vadd.f32 0.0, %v1526
      %v1528 = vpop.f32.mrb[0].mxu0
      %v1529 = vadd.f32 0.0, %v1528
      %v1530 = vpop.f32.mrb[0].mxu0
      %v1531 = vadd.f32 0.0, %v1530
      %v1532 = vpop.f32.mrb[0].mxu0
      %v1533 = vadd.f32 0.0, %v1532
      %1534 = vmatprep.mubr.bf16.mxu0 0
      %1535 = vmatmul.mubr.bf16.gmra.mrb[0].mxu0 %v1471
      %v1536 = vpop.f32.mrb[0].mxu0
      %v1537 = vadd.f32 0.0, %v1536
      %v1538 = vpop.f32.mrb[0].mxu0
      %v1539 = vadd.f32 0.0, %v1538
      %v1540 = vpop.f32.mrb[0].mxu0
      %v1541 = vadd.f32 0.0, %v1540
      %v1542 = vpop.f32.mrb[0].mxu0
      %v1543 = vadd.f32 0.0, %v1542
      %1544 = vmatprep.mubr.bf16.mxu0 0
      %1545 = vmatmul.mubr.bf16.gmra.mrb[0].mxu0 %v1474
      %v1546 = vpop.f32.mrb[0].mxu0
      %v1547 = vadd.f32 0.0, %v1546
      %v1548 = vpop.f32.mrb[0].mxu0
      %v1549 = vadd.f32 0.0, %v1548
      %v1550 = vpop.f32.mrb[0].mxu0
      %v1551 = vadd.f32 0.0, %v1550
      %v1552 = vpop.f32.mrb[0].mxu0
      %v1553 = vadd.f32 0.0, %v1552
      %1554 = vdwg.mxu0
      %v1555 = vadd.f32 %v1416, %v1517
      %v1556 = vadd.f32 %v1417, %v1519
      %v1557 = vadd.f32 %v1418, %v1521
      %v1558 = vadd.f32 %v1419, %v1523
      %v1559 = vadd.f32 %v1420, %v1527
      %v1560 = vadd.f32 %v1421, %v1529
      %v1561 = vadd.f32 %v1422, %v1531
      %v1562 = vadd.f32 %v1423, %v1533
      %v1563 = vadd.f32 %v1424, %v1537
      %v1564 = vadd.f32 %v1425, %v1539
      %v1565 = vadd.f32 %v1426, %v1541
      %v1566 = vadd.f32 %v1427, %v1543
      %v1567 = vadd.f32 %v1428, %v1547
      %v1568 = vadd.f32 %v1429, %v1549
      %v1569 = vadd.f32 %v1430, %v1551
      %v1570 = vadd.f32 %v1431, %v1553
      %v1571 = vld [vmem:[%s1293] sm:$0xf]
      %v1572 = vld [vmem:[%s1293 + $0x4] sm:$0x1]
      %v1573 = vld [vmem:[%s1293 + $0x8] sm:$0xf]
      %v1574 = vld [vmem:[%s1293 + $0xc] sm:$0x1]
      %v1575 = vld [vmem:[%s1293 + $0x10] sm:$0xf]
      %v1576 = vld [vmem:[%s1293 + $0x14] sm:$0x1]
      %v1577 = vld [vmem:[%s1293 + $0x18] sm:$0xf]
      %v1578 = vld [vmem:[%s1293 + $0x1c] sm:$0x1]
      %v1579 = vld [vmem:[%s1293 + $0x20] sm:$0xf]
      %v1580 = vld [vmem:[%s1293 + $0x24] sm:$0x1]
      %v1581 = vld [vmem:[%s1293 + $0x28] sm:$0xf]
      %v1582 = vld [vmem:[%s1293 + $0x2c] sm:$0x1]
      %v1583 = vld [vmem:[%s1293 + $0x30] sm:$0xf]
      %v1584 = vld [vmem:[%s1293 + $0x34] sm:$0x1]
      %v1585 = vld [vmem:[%s1293 + $0x38] sm:$0xf]
      %v1586 = vld [vmem:[%s1293 + $0x3c] sm:$0x1]
      %v1587 = vunpack.c.l.bf16 %v1571
      %v1588 = vunpack.c.l.bf16 %v1572
      %v1589 = vunpack.c.l.bf16 %v1573
      %v1590 = vunpack.c.l.bf16 %v1574
      %v1591 = vunpack.c.l.bf16 %v1575
      %v1592 = vunpack.c.l.bf16 %v1576
      %v1593 = vunpack.c.l.bf16 %v1577
      %v1594 = vunpack.c.l.bf16 %v1578
      %v1595 = vunpack.c.l.bf16 %v1579
      %v1596 = vunpack.c.l.bf16 %v1580
      %v1597 = vunpack.c.l.bf16 %v1581
      %v1598 = vunpack.c.l.bf16 %v1582
      %v1599 = vunpack.c.l.bf16 %v1583
      %v1600 = vunpack.c.l.bf16 %v1584
      %v1601 = vunpack.c.l.bf16 %v1585
      %v1602 = vunpack.c.l.bf16 %v1586
      %v1619 = vrot.slane %v1587, 1
      %v1620 = vrot.slane %v1588, 1
      %v1621 = vsel %vm660, %v1619, %v1620
      %v1622 = vrot.slane %v1589, 1
      %v1623 = vrot.slane %v1590, 1
      %v1624 = vsel %vm660, %v1622, %v1623
      %v1625 = vrot.slane %v1591, 1
      %v1626 = vrot.slane %v1592, 1
      %v1627 = vsel %vm660, %v1625, %v1626
      %v1628 = vrot.slane %v1593, 1
      %v1629 = vrot.slane %v1594, 1
      %v1630 = vsel %vm660, %v1628, %v1629
      %v1631 = vrot.slane %v1595, 1
      %v1632 = vrot.slane %v1596, 1
      %v1633 = vsel %vm660, %v1631, %v1632
      %v1634 = vrot.slane %v1597, 1
      %v1635 = vrot.slane %v1598, 1
      %v1636 = vsel %vm660, %v1634, %v1635
      %v1637 = vrot.slane %v1599, 1
      %v1638 = vrot.slane %v1600, 1
      %v1639 = vsel %vm660, %v1637, %v1638
      %v1640 = vrot.slane %v1601, 1
      %v1641 = vrot.slane %v1602, 1
      %v1642 = vsel %vm660, %v1640, %v1641
      %v1651 = vpack.c.bf16 %v1624, %v1621
      %v1652 = vpack.c.bf16 %v1630, %v1627
      %v1653 = vpack.c.bf16 %v1636, %v1633
      %v1654 = vpack.c.bf16 %v1642, %v1639
      %s1655 = scalar_lea.vmem %s4, 32
      %v1656 = vld [vmem:[%s1655] sm:$0xf]
      %v1659 = vunpack.c.l.s4 1983009808
      %v1660 = vunpack.c.0.s8 %v1659
      %v1661 = vlaneseq
      %v1662 = vshrl.u32 %v1661, 7
      %v1663 = vsub.s32 %v1660, %v1662
      %v1664 = vrot.slane %v1656, %v1663
      %v1665 = vcombine.high %v1664, %v1664
      %v1667 = vsel %vm419, %v1651, 0
      %v1670 = vsel %vm419, %v1652, 0
      %v1673 = vsel %vm419, %v1653, 0
      %v1676 = vsel %vm419, %v1654, 0
      %v1679 = vsel %vm432, %v1664, 0
      %v1682 = vsel %vm432, %v1665, 0
      %1684 = vmatprep.subr.bf16.mxu0 %v1682
      %1685 = vmatpush1.bf16.msra.mxu0 %v1679
      %1686 = vmatprep.subr.bf16.mxu0 0
      %1687 = vmatpush1.bf16.msra.mxu0 0
      %1688 = vmatprep.subr.bf16.mxu0 0
      %1689 = vmatpush1.bf16.msra.mxu0 0
      %1690 = vmatprep.subr.bf16.mxu0 0
      %1691 = vmatpush1.bf16.msra.mxu0 0
      %1692 = vmatprep.subr.bf16.mxu0 0
      %1693 = vmatpush1.bf16.msra.mxu0 0
      %1694 = vmatprep.subr.bf16.mxu0 0
      %1695 = vmatpush1.bf16.msra.mxu0 0
      %1696 = vmatprep.subr.bf16.mxu0 0
      %1697 = vmatpush1.bf16.msra.mxu0 0
      %1698 = vmatprep.subr.bf16.mxu0 0
      %1699 = vmatpush1.bf16.msra.mxu0 0
      %1700 = vmatprep.subr.bf16.mxu0 0
      %1701 = vmatpush1.bf16.msra.mxu0 0
      %1702 = vmatprep.subr.bf16.mxu0 0
      %1703 = vmatpush1.bf16.msra.mxu0 0
      %1704 = vmatprep.subr.bf16.mxu0 0
      %1705 = vmatpush1.bf16.msra.mxu0 0
      %1706 = vmatprep.subr.bf16.mxu0 0
      %1707 = vmatpush1.bf16.msra.mxu0 0
      %1708 = vmatprep.subr.bf16.mxu0 0
      %1709 = vmatpush1.bf16.msra.mxu0 0
      %1710 = vmatprep.subr.bf16.mxu0 0
      %1711 = vmatpush1.bf16.msra.mxu0 0
      %1712 = vmatprep.subr.bf16.mxu0 0
      %1713 = vmatpush1.bf16.msra.mxu0 0
      %1714 = vmatprep.subr.bf16.mxu0 0
      %1715 = vmatpush1.bf16.msra.mxu0 0
      %1716 = vmatprep.mubr.bf16.mxu0 0
      %1717 = vmatmul.mubr.bf16.gmra.mrb[0].mxu0 %v1667
      %v1718 = vpop.f32.mrb[0].mxu0
      %v1719 = vadd.f32 0.0, %v1718
      %v1720 = vpop.f32.mrb[0].mxu0
      %v1721 = vadd.f32 0.0, %v1720
      %v1722 = vpop.f32.mrb[0].mxu0
      %v1723 = vadd.f32 0.0, %v1722
      %v1724 = vpop.f32.mrb[0].mxu0
      %v1725 = vadd.f32 0.0, %v1724
      %1726 = vmatprep.mubr.bf16.mxu0 0
      %1727 = vmatmul.mubr.bf16.gmra.mrb[0].mxu0 %v1670
      %v1728 = vpop.f32.mrb[0].mxu0
      %v1729 = vadd.f32 0.0, %v1728
      %v1730 = vpop.f32.mrb[0].mxu0
      %v1731 = vadd.f32 0.0, %v1730
      %v1732 = vpop.f32.mrb[0].mxu0
      %v1733 = vadd.f32 0.0, %v1732
      %v1734 = vpop.f32.mrb[0].mxu0
      %v1735 = vadd.f32 0.0, %v1734
      %1736 = vmatprep.mubr.bf16.mxu0 0
      %1737 = vmatmul.mubr.bf16.gmra.mrb[0].mxu0 %v1673
      %v1738 = vpop.f32.mrb[0].mxu0
      %v1739 = vadd.f32 0.0, %v1738
      %v1740 = vpop.f32.mrb[0].mxu0
      %v1741 = vadd.f32 0.0, %v1740
      %v1742 = vpop.f32.mrb[0].mxu0
      %v1743 = vadd.f32 0.0, %v1742
      %v1744 = vpop.f32.mrb[0].mxu0
      %v1745 = vadd.f32 0.0, %v1744
      %1746 = vmatprep.mubr.bf16.mxu0 0
      %1747 = vmatmul.mubr.bf16.gmra.mrb[0].mxu0 %v1676
      %v1748 = vpop.f32.mrb[0].mxu0
      %v1749 = vadd.f32 0.0, %v1748
      %v1750 = vpop.f32.mrb[0].mxu0
      %v1751 = vadd.f32 0.0, %v1750
      %v1752 = vpop.f32.mrb[0].mxu0
      %v1753 = vadd.f32 0.0, %v1752
      %v1754 = vpop.f32.mrb[0].mxu0
      %v1755 = vadd.f32 0.0, %v1754
      %1756 = vdwg.mxu0
      %v1757 = vadd.f32 %v1555, %v1719
      %v1758 = vadd.f32 %v1556, %v1721
      %v1759 = vadd.f32 %v1557, %v1723
      %v1760 = vadd.f32 %v1558, %v1725
      %v1761 = vadd.f32 %v1559, %v1729
      %v1762 = vadd.f32 %v1560, %v1731
      %v1763 = vadd.f32 %v1561, %v1733
      %v1764 = vadd.f32 %v1562, %v1735
      %v1765 = vadd.f32 %v1563, %v1739
      %v1766 = vadd.f32 %v1564, %v1741
      %v1767 = vadd.f32 %v1565, %v1743
      %v1768 = vadd.f32 %v1566, %v1745
      %v1769 = vadd.f32 %v1567, %v1749
      %v1770 = vadd.f32 %v1568, %v1751
      %v1771 = vadd.f32 %v1569, %v1753
      %v1772 = vadd.f32 %v1570, %v1755
      %v1773 = vld [vmem:[%s5] sm:$0x3]
      %v1775 = vlaneseq
      %v1776 = vshrl.u32 %v1775, 7
      %v1777 = vsub.s32 0, %v1776
      %v1778 = vrot.slane %v1773, %v1777
      %v1779 = vlaneseq
      %v1780 = vshrl.u32 %v1779, 7
      %v1781 = vsub.s32 1, %v1780
      %v1782 = vrot.slane %v1773, %v1781
      %v1785 = vadd.f32 %v1757, %v1778
      %v1786 = vadd.f32 %v1758, %v1782
      %v1787 = vadd.f32 %v1759, %v1778
      %v1788 = vadd.f32 %v1760, %v1782
      %v1789 = vadd.f32 %v1761, %v1778
      %v1790 = vadd.f32 %v1762, %v1782
      %v1791 = vadd.f32 %v1763, %v1778
      %v1792 = vadd.f32 %v1764, %v1782
      %v1793 = vadd.f32 %v1765, %v1778
      %v1794 = vadd.f32 %v1766, %v1782
      %v1795 = vadd.f32 %v1767, %v1778
      %v1796 = vadd.f32 %v1768, %v1782
      %v1797 = vadd.f32 %v1769, %v1778
      %v1798 = vadd.f32 %v1770, %v1782
      %v1799 = vadd.f32 %v1771, %v1778
      %v1800 = vadd.f32 %v1772, %v1782
      %v1801 = vmax.f32 %v1785, 0.0
      %v1802 = vmax.f32 %v1787, 0.0
      %v1803 = vmax.f32 %v1789, 0.0
      %v1804 = vmax.f32 %v1791, 0.0
      %v1805 = vmax.f32 %v1793, 0.0
      %v1806 = vmax.f32 %v1795, 0.0
      %v1807 = vmax.f32 %v1797, 0.0
      %v1808 = vmax.f32 %v1799, 0.0
      %1809 = vst [vmem:[#allocation2] sm:$0xff] 0.0
      %1810 = vst [vmem:[#allocation2 + $0x8] sm:$0x3] 0.0
      %1811 = vst [vmem:[#allocation2 + $0x10] sm:$0xff] 0.0
      %1812 = vst [vmem:[#allocation2 + $0x18] sm:$0x3] 0.0
      %1813 = vst [vmem:[#allocation2 + $0x20] sm:$0xff] 0.0
      %1814 = vst [vmem:[#allocation2 + $0x28] sm:$0x3] 0.0
      %1815 = vst [vmem:[#allocation2 + $0x30] sm:$0xff] 0.0
      %1816 = vst [vmem:[#allocation2 + $0x38] sm:$0x3] 0.0
      %1817 = vst [vmem:[#allocation2 + $0x40] sm:$0xff] 0.0
      %1818 = vst [vmem:[#allocation2 + $0x48] sm:$0x3] 0.0
      %1819 = vst [vmem:[#allocation2 + $0x50] sm:$0xff] 0.0
      %1820 = vst [vmem:[#allocation2 + $0x58] sm:$0x3] 0.0
      %1821 = vst [vmem:[#allocation2 + $0x60] sm:$0xff] 0.0
      %1822 = vst [vmem:[#allocation2 + $0x68] sm:$0x3] 0.0
      %1823 = vst [vmem:[#allocation2 + $0x70] sm:$0xff] 0.0
      %1824 = vst [vmem:[#allocation2 + $0x78] sm:$0x3] 0.0
      %1825 = vst [vmem:[#allocation2 + $0x80] sm:$0xff] 0.0
      %1826 = vst [vmem:[#allocation2 + $0x88] sm:$0x3] 0.0
      %1827 = vst [vmem:[#allocation2 + $0x90] sm:$0xff] 0.0
      %1828 = vst [vmem:[#allocation2 + $0x98] sm:$0x3] 0.0
      %s1829 = scalar_lea.vmem [#allocation2], 16
      %1830 = vst [vmem:[%s1829 + $0x1] sm:$0xff] %v1801
      %1831 = vst [vmem:[%s1829 + $0x11] sm:$0xff] %v1802
      %1832 = vst [vmem:[%s1829 + $0x21] sm:$0xff] %v1803
      %1833 = vst [vmem:[%s1829 + $0x31] sm:$0xff] %v1804
      %1834 = vst [vmem:[%s1829 + $0x41] sm:$0xff] %v1805
      %1835 = vst [vmem:[%s1829 + $0x51] sm:$0xff] %v1806
      %1836 = vst [vmem:[%s1829 + $0x61] sm:$0xff] %v1807
      %1837 = vst [vmem:[%s1829 + $0x71] sm:$0xff] %v1808
      %v1838 = vld [vmem:[#allocation2] sm:$0xff]
      %v1839 = vld [vmem:[#allocation2 + $0x10] sm:$0xff]
      %v1840 = vld [vmem:[#allocation2 + $0x20] sm:$0xff]
      %v1841 = vld [vmem:[#allocation2 + $0x30] sm:$0xff]
      %v1842 = vld [vmem:[#allocation2 + $0x40] sm:$0xff]
      %v1843 = vld [vmem:[#allocation2 + $0x50] sm:$0xff]
      %v1844 = vld [vmem:[#allocation2 + $0x60] sm:$0xff]
      %v1845 = vld [vmem:[#allocation2 + $0x70] sm:$0xff]
      %v1846 = vpack.c.bf16 %v1839, %v1838
      %v1847 = vpack.c.bf16 %v1841, %v1840
      %v1848 = vpack.c.bf16 %v1843, %v1842
      %v1849 = vpack.c.bf16 %v1845, %v1844
      %v1850 = vld [vmem:[%s6] sm:$0xf]
      %v1851 = vld [vmem:[%s6 + $0x4] sm:$0xf]
      %v1852 = vld [vmem:[%s6 + $0x8] sm:$0xf]
      %v1853 = vld [vmem:[%s6 + $0xc] sm:$0xf]
      %v1854 = vld [vmem:[%s6 + $0x10] sm:$0xf]
      %v1855 = vld [vmem:[%s6 + $0x14] sm:$0xf]
      %v1856 = vld [vmem:[%s6 + $0x18] sm:$0xf]
      %v1857 = vld [vmem:[%s6 + $0x1c] sm:$0xf]
      %v1858 = vld [vmem:[%s6 + $0x20] sm:$0xf]
      %v1859 = vld [vmem:[%s6 + $0x24] sm:$0xf]
      %v1860 = vld [vmem:[%s6 + $0x28] sm:$0xf]
      %v1861 = vld [vmem:[%s6 + $0x2c] sm:$0xf]
      %v1862 = vld [vmem:[%s6 + $0x30] sm:$0xf]
      %v1863 = vld [vmem:[%s6 + $0x34] sm:$0xf]
      %v1864 = vld [vmem:[%s6 + $0x38] sm:$0xf]
      %v1865 = vld [vmem:[%s6 + $0x3c] sm:$0xf]
      %v1866 = vld [vmem:[#allocation2 + $0x1] sm:$0xff]
      %v1867 = vld [vmem:[#allocation2 + $0x11] sm:$0xff]
      %v1868 = vld [vmem:[#allocation2 + $0x21] sm:$0xff]
      %v1869 = vld [vmem:[#allocation2 + $0x31] sm:$0xff]
      %v1870 = vld [vmem:[#allocation2 + $0x41] sm:$0xff]
      %v1871 = vld [vmem:[#allocation2 + $0x51] sm:$0xff]
      %v1872 = vld [vmem:[#allocation2 + $0x61] sm:$0xff]
      %v1873 = vld [vmem:[#allocation2 + $0x71] sm:$0xff]
      %v1874 = vpack.c.bf16 %v1867, %v1866
      %v1875 = vpack.c.bf16 %v1869, %v1868
      %v1876 = vpack.c.bf16 %v1871, %v1870
      %v1877 = vpack.c.bf16 %v1873, %v1872
      %s1878 = scalar_lea.vmem %s6, 64
      %v1879 = vld [vmem:[%s1878] sm:$0xf]
      %v1880 = vld [vmem:[%s1878 + $0x4] sm:$0xf]
      %v1881 = vld [vmem:[%s1878 + $0x8] sm:$0xf]
      %v1882 = vld [vmem:[%s1878 + $0xc] sm:$0xf]
      %v1883 = vld [vmem:[%s1878 + $0x10] sm:$0xf]
      %v1884 = vld [vmem:[%s1878 + $0x14] sm:$0xf]
      %v1885 = vld [vmem:[%s1878 + $0x18] sm:$0xf]
      %v1886 = vld [vmem:[%s1878 + $0x1c] sm:$0xf]
      %v1887 = vld [vmem:[%s1878 + $0x20] sm:$0xf]
      %v1888 = vld [vmem:[%s1878 + $0x24] sm:$0xf]
      %v1889 = vld [vmem:[%s1878 + $0x28] sm:$0xf]
      %v1890 = vld [vmem:[%s1878 + $0x2c] sm:$0xf]
      %v1891 = vld [vmem:[%s1878 + $0x30] sm:$0xf]
      %v1892 = vld [vmem:[%s1878 + $0x34] sm:$0xf]
      %v1893 = vld [vmem:[%s1878 + $0x38] sm:$0xf]
      %v1894 = vld [vmem:[%s1878 + $0x3c] sm:$0xf]
      %v1911 = vunpack.c.l.b16 %v1879
      %v1912 = vunpack.c.l.b16 %v1880
      %v1913 = vunpack.c.l.b16 %v1881
      %v1914 = vunpack.c.l.b16 %v1882
      %v1915 = vunpack.c.l.b16 %v1883
      %v1916 = vunpack.c.l.b16 %v1884
      %v1917 = vunpack.c.l.b16 %v1885
      %v1918 = vunpack.c.l.b16 %v1886
      %v1919 = vunpack.c.l.b16 %v1887
      %v1920 = vunpack.c.l.b16 %v1888
      %v1921 = vunpack.c.l.b16 %v1889
      %v1922 = vunpack.c.l.b16 %v1890
      %v1923 = vunpack.c.l.b16 %v1891
      %v1924 = vunpack.c.l.b16 %v1892
      %v1925 = vunpack.c.l.b16 %v1893
      %v1926 = vunpack.c.l.b16 %v1894
      %v1927 = vpack.c.b16 %v1912, %v1911
      %v1928 = vpack.c.b16 %v1914, %v1913
      %v1929 = vpack.c.b16 %v1916, %v1915
      %v1930 = vpack.c.b16 %v1918, %v1917
      %v1931 = vpack.c.b16 %v1920, %v1919
      %v1932 = vpack.c.b16 %v1922, %v1921
      %v1933 = vpack.c.b16 %v1924, %v1923
      %v1934 = vpack.c.b16 %v1926, %v1925
      %1943 = vmatprep.subr.bf16.mxu0 0
      %1944 = vmatpush1.bf16.msra.mxu0 %v1927
      %1945 = vmatprep.subr.bf16.mxu0 0
      %1946 = vmatpush1.bf16.msra.mxu0 %v1928
      %1947 = vmatprep.subr.bf16.mxu0 0
      %1948 = vmatpush1.bf16.msra.mxu0 %v1929
      %1949 = vmatprep.subr.bf16.mxu0 0
      %1950 = vmatpush1.bf16.msra.mxu0 %v1930
      %1951 = vmatprep.subr.bf16.mxu0 0
      %1952 = vmatpush1.bf16.msra.mxu0 %v1931
      %1953 = vmatprep.subr.bf16.mxu0 0
      %1954 = vmatpush1.bf16.msra.mxu0 %v1932
      %1955 = vmatprep.subr.bf16.mxu0 0
      %1956 = vmatpush1.bf16.msra.mxu0 %v1933
      %1957 = vmatprep.subr.bf16.mxu0 0
      %1958 = vmatpush1.bf16.msra.mxu0 %v1934
      %1959 = vmatprep.subr.bf16.mxu0 0
      %1960 = vmatpush1.bf16.msra.mxu0 0
      %1961 = vmatprep.subr.bf16.mxu0 0
      %1962 = vmatpush1.bf16.msra.mxu0 0
      %1963 = vmatprep.subr.bf16.mxu0 0
      %1964 = vmatpush1.bf16.msra.mxu0 0
      %1965 = vmatprep.subr.bf16.mxu0 0
      %1966 = vmatpush1.bf16.msra.mxu0 0
      %1967 = vmatprep.subr.bf16.mxu0 0
      %1968 = vmatpush1.bf16.msra.mxu0 0
      %1969 = vmatprep.subr.bf16.mxu0 0
      %1970 = vmatpush1.bf16.msra.mxu0 0
      %1971 = vmatprep.subr.bf16.mxu0 0
      %1972 = vmatpush1.bf16.msra.mxu0 0
      %1973 = vmatprep.subr.bf16.mxu0 0
      %1974 = vmatpush1.bf16.msra.mxu0 0
      %1975 = vmatprep.mubr.bf16.mxu0 0
      %1976 = vmatmul.mubr.bf16.gmra.mrb[0].mxu0 %v1874
      %v1977 = vpop.f32.mrb[0].mxu0
      %v1978 = vadd.f32 0.0, %v1977
      %v1979 = vpop.f32.mrb[0].mxu0
      %v1980 = vpop.f32.mrb[0].mxu0
      %v1981 = vadd.f32 0.0, %v1980
      %v1982 = vpop.f32.mrb[0].mxu0
      %1983 = vmatprep.mubr.bf16.mxu0 0
      %1984 = vmatmul.mubr.bf16.gmra.mrb[0].mxu0 %v1875
      %v1985 = vpop.f32.mrb[0].mxu0
      %v1986 = vadd.f32 0.0, %v1985
      %v1987 = vpop.f32.mrb[0].mxu0
      %v1988 = vpop.f32.mrb[0].mxu0
      %v1989 = vadd.f32 0.0, %v1988
      %v1990 = vpop.f32.mrb[0].mxu0
      %1991 = vmatprep.mubr.bf16.mxu0 0
      %1992 = vmatmul.mubr.bf16.gmra.mrb[0].mxu0 %v1876
      %v1993 = vpop.f32.mrb[0].mxu0
      %v1994 = vadd.f32 0.0, %v1993
      %v1995 = vpop.f32.mrb[0].mxu0
      %v1996 = vpop.f32.mrb[0].mxu0
      %v1997 = vadd.f32 0.0, %v1996
      %v1998 = vpop.f32.mrb[0].mxu0
      %1999 = vmatprep.mubr.bf16.mxu0 0
      %2000 = vmatmul.mubr.bf16.gmra.mrb[0].mxu0 %v1877
      %v2001 = vpop.f32.mrb[0].mxu0
      %v2002 = vadd.f32 0.0, %v2001
      %v2003 = vpop.f32.mrb[0].mxu0
      %v2004 = vpop.f32.mrb[0].mxu0
      %v2005 = vadd.f32 0.0, %v2004
      %v2006 = vpop.f32.mrb[0].mxu0
      %2007 = vdwg.mxu0
      %v2024 = vunpack.c.l.b16 %v1850
      %v2025 = vunpack.c.l.b16 %v1851
      %v2026 = vunpack.c.l.b16 %v1852
      %v2027 = vunpack.c.l.b16 %v1853
      %v2028 = vunpack.c.l.b16 %v1854
      %v2029 = vunpack.c.l.b16 %v1855
      %v2030 = vunpack.c.l.b16 %v1856
      %v2031 = vunpack.c.l.b16 %v1857
      %v2032 = vunpack.c.l.b16 %v1858
      %v2033 = vunpack.c.l.b16 %v1859
      %v2034 = vunpack.c.l.b16 %v1860
      %v2035 = vunpack.c.l.b16 %v1861
      %v2036 = vunpack.c.l.b16 %v1862
      %v2037 = vunpack.c.l.b16 %v1863
      %v2038 = vunpack.c.l.b16 %v1864
      %v2039 = vunpack.c.l.b16 %v1865
      %v2040 = vpack.c.b16 %v2025, %v2024
      %v2041 = vpack.c.b16 %v2027, %v2026
      %v2042 = vpack.c.b16 %v2029, %v2028
      %v2043 = vpack.c.b16 %v2031, %v2030
      %v2044 = vpack.c.b16 %v2033, %v2032
      %v2045 = vpack.c.b16 %v2035, %v2034
      %v2046 = vpack.c.b16 %v2037, %v2036
      %v2047 = vpack.c.b16 %v2039, %v2038
      %2056 = vmatprep.subr.bf16.mxu0 0
      %2057 = vmatpush1.bf16.msra.mxu0 %v2040
      %2058 = vmatprep.subr.bf16.mxu0 0
      %2059 = vmatpush1.bf16.msra.mxu0 %v2041
      %2060 = vmatprep.subr.bf16.mxu0 0
      %2061 = vmatpush1.bf16.msra.mxu0 %v2042
      %2062 = vmatprep.subr.bf16.mxu0 0
      %2063 = vmatpush1.bf16.msra.mxu0 %v2043
      %2064 = vmatprep.subr.bf16.mxu0 0
      %2065 = vmatpush1.bf16.msra.mxu0 %v2044
      %2066 = vmatprep.subr.bf16.mxu0 0
      %2067 = vmatpush1.bf16.msra.mxu0 %v2045
      %2068 = vmatprep.subr.bf16.mxu0 0
      %2069 = vmatpush1.bf16.msra.mxu0 %v2046
      %2070 = vmatprep.subr.bf16.mxu0 0
      %2071 = vmatpush1.bf16.msra.mxu0 %v2047
      %2072 = vmatprep.subr.bf16.mxu0 0
      %2073 = vmatpush1.bf16.msra.mxu0 0
      %2074 = vmatprep.subr.bf16.mxu0 0
      %2075 = vmatpush1.bf16.msra.mxu0 0
      %2076 = vmatprep.subr.bf16.mxu0 0
      %2077 = vmatpush1.bf16.msra.mxu0 0
      %2078 = vmatprep.subr.bf16.mxu0 0
      %2079 = vmatpush1.bf16.msra.mxu0 0
      %2080 = vmatprep.subr.bf16.mxu0 0
      %2081 = vmatpush1.bf16.msra.mxu0 0
      %2082 = vmatprep.subr.bf16.mxu0 0
      %2083 = vmatpush1.bf16.msra.mxu0 0
      %2084 = vmatprep.subr.bf16.mxu0 0
      %2085 = vmatpush1.bf16.msra.mxu0 0
      %2086 = vmatprep.subr.bf16.mxu0 0
      %2087 = vmatpush1.bf16.msra.mxu0 0
      %2088 = vmatprep.mubr.bf16.mxu0 0
      %2089 = vmatmul.mubr.bf16.gmra.mrb[0].mxu0 %v1846
      %v2090 = vpop.f32.mrb[0].mxu0
      %v2091 = vadd.f32 %v1978, %v2090
      %v2092 = vpop.f32.mrb[0].mxu0
      %v2093 = vpop.f32.mrb[0].mxu0
      %v2094 = vadd.f32 %v1981, %v2093
      %v2095 = vpop.f32.mrb[0].mxu0
      %2096 = vmatprep.mubr.bf16.mxu0 0
      %2097 = vmatmul.mubr.bf16.gmra.mrb[0].mxu0 %v1847
      %v2098 = vpop.f32.mrb[0].mxu0
      %v2099 = vadd.f32 %v1986, %v2098
      %v2100 = vpop.f32.mrb[0].mxu0
      %v2101 = vpop.f32.mrb[0].mxu0
      %v2102 = vadd.f32 %v1989, %v2101
      %v2103 = vpop.f32.mrb[0].mxu0
      %2104 = vmatprep.mubr.bf16.mxu0 0
      %2105 = vmatmul.mubr.bf16.gmra.mrb[0].mxu0 %v1848
      %v2106 = vpop.f32.mrb[0].mxu0
      %v2107 = vadd.f32 %v1994, %v2106
      %v2108 = vpop.f32.mrb[0].mxu0
      %v2109 = vpop.f32.mrb[0].mxu0
      %v2110 = vadd.f32 %v1997, %v2109
      %v2111 = vpop.f32.mrb[0].mxu0
      %2112 = vmatprep.mubr.bf16.mxu0 0
      %2113 = vmatmul.mubr.bf16.gmra.mrb[0].mxu0 %v1849
      %v2114 = vpop.f32.mrb[0].mxu0
      %v2115 = vadd.f32 %v2002, %v2114
      %v2116 = vpop.f32.mrb[0].mxu0
      %v2117 = vpop.f32.mrb[0].mxu0
      %v2118 = vadd.f32 %v2005, %v2117
      %v2119 = vpop.f32.mrb[0].mxu0
      %2120 = vdwg.mxu0
      %v2121 = vld [vmem:[#allocation2 + $0x2] sm:$0xff]
      %v2122 = vld [vmem:[#allocation2 + $0x12] sm:$0xff]
      %v2123 = vld [vmem:[#allocation2 + $0x22] sm:$0xff]
      %v2124 = vld [vmem:[#allocation2 + $0x32] sm:$0xff]
      %v2125 = vld [vmem:[#allocation2 + $0x42] sm:$0xff]
      %v2126 = vld [vmem:[#allocation2 + $0x52] sm:$0xff]
      %v2127 = vld [vmem:[#allocation2 + $0x62] sm:$0xff]
      %v2128 = vld [vmem:[#allocation2 + $0x72] sm:$0xff]
      %v2129 = vpack.c.bf16 %v2122, %v2121
      %v2130 = vpack.c.bf16 %v2124, %v2123
      %v2131 = vpack.c.bf16 %v2126, %v2125
      %v2132 = vpack.c.bf16 %v2128, %v2127
      %s2133 = scalar_lea.vmem %s6, 128
      %v2134 = vld [vmem:[%s2133] sm:$0xf]
      %v2135 = vld [vmem:[%s2133 + $0x4] sm:$0xf]
      %v2136 = vld [vmem:[%s2133 + $0x8] sm:$0xf]
      %v2137 = vld [vmem:[%s2133 + $0xc] sm:$0xf]
      %v2138 = vld [vmem:[%s2133 + $0x10] sm:$0xf]
      %v2139 = vld [vmem:[%s2133 + $0x14] sm:$0xf]
      %v2140 = vld [vmem:[%s2133 + $0x18] sm:$0xf]
      %v2141 = vld [vmem:[%s2133 + $0x1c] sm:$0xf]
      %v2142 = vld [vmem:[%s2133 + $0x20] sm:$0xf]
      %v2143 = vld [vmem:[%s2133 + $0x24] sm:$0xf]
      %v2144 = vld [vmem:[%s2133 + $0x28] sm:$0xf]
      %v2145 = vld [vmem:[%s2133 + $0x2c] sm:$0xf]
      %v2146 = vld [vmem:[%s2133 + $0x30] sm:$0xf]
      %v2147 = vld [vmem:[%s2133 + $0x34] sm:$0xf]
      %v2148 = vld [vmem:[%s2133 + $0x38] sm:$0xf]
      %v2149 = vld [vmem:[%s2133 + $0x3c] sm:$0xf]
      %v2166 = vunpack.c.l.b16 %v2134
      %v2167 = vunpack.c.l.b16 %v2135
      %v2168 = vunpack.c.l.b16 %v2136
      %v2169 = vunpack.c.l.b16 %v2137
      %v2170 = vunpack.c.l.b16 %v2138
      %v2171 = vunpack.c.l.b16 %v2139
      %v2172 = vunpack.c.l.b16 %v2140
      %v2173 = vunpack.c.l.b16 %v2141
      %v2174 = vunpack.c.l.b16 %v2142
      %v2175 = vunpack.c.l.b16 %v2143
      %v2176 = vunpack.c.l.b16 %v2144
      %v2177 = vunpack.c.l.b16 %v2145
      %v2178 = vunpack.c.l.b16 %v2146
      %v2179 = vunpack.c.l.b16 %v2147
      %v2180 = vunpack.c.l.b16 %v2148
      %v2181 = vunpack.c.l.b16 %v2149
      %v2182 = vpack.c.b16 %v2167, %v2166
      %v2183 = vpack.c.b16 %v2169, %v2168
      %v2184 = vpack.c.b16 %v2171, %v2170
      %v2185 = vpack.c.b16 %v2173, %v2172
      %v2186 = vpack.c.b16 %v2175, %v2174
      %v2187 = vpack.c.b16 %v2177, %v2176
      %v2188 = vpack.c.b16 %v2179, %v2178
      %v2189 = vpack.c.b16 %v2181, %v2180
      %2198 = vmatprep.subr.bf16.mxu0 0
      %2199 = vmatpush1.bf16.msra.mxu0 %v2182
      %2200 = vmatprep.subr.bf16.mxu0 0
      %2201 = vmatpush1.bf16.msra.mxu0 %v2183
      %2202 = vmatprep.subr.bf16.mxu0 0
      %2203 = vmatpush1.bf16.msra.mxu0 %v2184
      %2204 = vmatprep.subr.bf16.mxu0 0
      %2205 = vmatpush1.bf16.msra.mxu0 %v2185
      %2206 = vmatprep.subr.bf16.mxu0 0
      %2207 = vmatpush1.bf16.msra.mxu0 %v2186
      %2208 = vmatprep.subr.bf16.mxu0 0
      %2209 = vmatpush1.bf16.msra.mxu0 %v2187
      %2210 = vmatprep.subr.bf16.mxu0 0
      %2211 = vmatpush1.bf16.msra.mxu0 %v2188
      %2212 = vmatprep.subr.bf16.mxu0 0
      %2213 = vmatpush1.bf16.msra.mxu0 %v2189
      %2214 = vmatprep.subr.bf16.mxu0 0
      %2215 = vmatpush1.bf16.msra.mxu0 0
      %2216 = vmatprep.subr.bf16.mxu0 0
      %2217 = vmatpush1.bf16.msra.mxu0 0
      %2218 = vmatprep.subr.bf16.mxu0 0
      %2219 = vmatpush1.bf16.msra.mxu0 0
      %2220 = vmatprep.subr.bf16.mxu0 0
      %2221 = vmatpush1.bf16.msra.mxu0 0
      %2222 = vmatprep.subr.bf16.mxu0 0
      %2223 = vmatpush1.bf16.msra.mxu0 0
      %2224 = vmatprep.subr.bf16.mxu0 0
      %2225 = vmatpush1.bf16.msra.mxu0 0
      %2226 = vmatprep.subr.bf16.mxu0 0
      %2227 = vmatpush1.bf16.msra.mxu0 0
      %2228 = vmatprep.subr.bf16.mxu0 0
      %2229 = vmatpush1.bf16.msra.mxu0 0
      %2230 = vmatprep.mubr.bf16.mxu0 0
      %2231 = vmatmul.mubr.bf16.gmra.mrb[0].mxu0 %v2129
      %v2232 = vpop.f32.mrb[0].mxu0
      %v2233 = vadd.f32 0.0, %v2232
      %v2234 = vpop.f32.mrb[0].mxu0
      %v2235 = vpop.f32.mrb[0].mxu0
      %v2236 = vadd.f32 0.0, %v2235
      %v2237 = vpop.f32.mrb[0].mxu0
      %2238 = vmatprep.mubr.bf16.mxu0 0
      %2239 = vmatmul.mubr.bf16.gmra.mrb[0].mxu0 %v2130
      %v2240 = vpop.f32.mrb[0].mxu0
      %v2241 = vadd.f32 0.0, %v2240
      %v2242 = vpop.f32.mrb[0].mxu0
      %v2243 = vpop.f32.mrb[0].mxu0
      %v2244 = vadd.f32 0.0, %v2243
      %v2245 = vpop.f32.mrb[0].mxu0
      %2246 = vmatprep.mubr.bf16.mxu0 0
      %2247 = vmatmul.mubr.bf16.gmra.mrb[0].mxu0 %v2131
      %v2248 = vpop.f32.mrb[0].mxu0
      %v2249 = vadd.f32 0.0, %v2248
      %v2250 = vpop.f32.mrb[0].mxu0
      %v2251 = vpop.f32.mrb[0].mxu0
      %v2252 = vadd.f32 0.0, %v2251
      %v2253 = vpop.f32.mrb[0].mxu0
      %2254 = vmatprep.mubr.bf16.mxu0 0
      %2255 = vmatmul.mubr.bf16.gmra.mrb[0].mxu0 %v2132
      %v2256 = vpop.f32.mrb[0].mxu0
      %v2257 = vadd.f32 0.0, %v2256
      %v2258 = vpop.f32.mrb[0].mxu0
      %v2259 = vpop.f32.mrb[0].mxu0
      %v2260 = vadd.f32 0.0, %v2259
      %v2261 = vpop.f32.mrb[0].mxu0
      %2262 = vdwg.mxu0
      %v2263 = vadd.f32 %v2091, %v2233
      %v2264 = vadd.f32 %v2094, %v2236
      %v2265 = vadd.f32 %v2099, %v2241
      %v2266 = vadd.f32 %v2102, %v2244
      %v2267 = vadd.f32 %v2107, %v2249
      %v2268 = vadd.f32 %v2110, %v2252
      %v2269 = vadd.f32 %v2115, %v2257
      %v2270 = vadd.f32 %v2118, %v2260
      %v2271 = vld [vmem:[%s1829] sm:$0xff]
      %v2272 = vld [vmem:[%s1829 + $0x10] sm:$0xff]
      %v2273 = vld [vmem:[%s1829 + $0x20] sm:$0xff]
      %v2274 = vld [vmem:[%s1829 + $0x30] sm:$0xff]
      %v2275 = vld [vmem:[%s1829 + $0x40] sm:$0xff]
      %v2276 = vld [vmem:[%s1829 + $0x50] sm:$0xff]
      %v2277 = vld [vmem:[%s1829 + $0x60] sm:$0xff]
      %v2278 = vld [vmem:[%s1829 + $0x70] sm:$0xff]
      %v2279 = vpack.c.bf16 %v2272, %v2271
      %v2280 = vpack.c.bf16 %v2274, %v2273
      %v2281 = vpack.c.bf16 %v2276, %v2275
      %v2282 = vpack.c.bf16 %v2278, %v2277
      %s2283 = scalar_lea.vmem %s6, 192
      %v2284 = vld [vmem:[%s2283] sm:$0xf]
      %v2285 = vld [vmem:[%s2283 + $0x4] sm:$0xf]
      %v2286 = vld [vmem:[%s2283 + $0x8] sm:$0xf]
      %v2287 = vld [vmem:[%s2283 + $0xc] sm:$0xf]
      %v2288 = vld [vmem:[%s2283 + $0x10] sm:$0xf]
      %v2289 = vld [vmem:[%s2283 + $0x14] sm:$0xf]
      %v2290 = vld [vmem:[%s2283 + $0x18] sm:$0xf]
      %v2291 = vld [vmem:[%s2283 + $0x1c] sm:$0xf]
      %v2292 = vld [vmem:[%s2283 + $0x20] sm:$0xf]
      %v2293 = vld [vmem:[%s2283 + $0x24] sm:$0xf]
      %v2294 = vld [vmem:[%s2283 + $0x28] sm:$0xf]
      %v2295 = vld [vmem:[%s2283 + $0x2c] sm:$0xf]
      %v2296 = vld [vmem:[%s2283 + $0x30] sm:$0xf]
      %v2297 = vld [vmem:[%s2283 + $0x34] sm:$0xf]
      %v2298 = vld [vmem:[%s2283 + $0x38] sm:$0xf]
      %v2299 = vld [vmem:[%s2283 + $0x3c] sm:$0xf]
      %v2316 = vunpack.c.l.b16 %v2284
      %v2317 = vunpack.c.l.b16 %v2285
      %v2318 = vunpack.c.l.b16 %v2286
      %v2319 = vunpack.c.l.b16 %v2287
      %v2320 = vunpack.c.l.b16 %v2288
      %v2321 = vunpack.c.l.b16 %v2289
      %v2322 = vunpack.c.l.b16 %v2290
      %v2323 = vunpack.c.l.b16 %v2291
      %v2324 = vunpack.c.l.b16 %v2292
      %v2325 = vunpack.c.l.b16 %v2293
      %v2326 = vunpack.c.l.b16 %v2294
      %v2327 = vunpack.c.l.b16 %v2295
      %v2328 = vunpack.c.l.b16 %v2296
      %v2329 = vunpack.c.l.b16 %v2297
      %v2330 = vunpack.c.l.b16 %v2298
      %v2331 = vunpack.c.l.b16 %v2299
      %v2332 = vpack.c.b16 %v2317, %v2316
      %v2333 = vpack.c.b16 %v2319, %v2318
      %v2334 = vpack.c.b16 %v2321, %v2320
      %v2335 = vpack.c.b16 %v2323, %v2322
      %v2336 = vpack.c.b16 %v2325, %v2324
      %v2337 = vpack.c.b16 %v2327, %v2326
      %v2338 = vpack.c.b16 %v2329, %v2328
      %v2339 = vpack.c.b16 %v2331, %v2330
      %2348 = vmatprep.subr.bf16.mxu0 0
      %2349 = vmatpush1.bf16.msra.mxu0 %v2332
      %2350 = vmatprep.subr.bf16.mxu0 0
      %2351 = vmatpush1.bf16.msra.mxu0 %v2333
      %2352 = vmatprep.subr.bf16.mxu0 0
      %2353 = vmatpush1.bf16.msra.mxu0 %v2334
      %2354 = vmatprep.subr.bf16.mxu0 0
      %2355 = vmatpush1.bf16.msra.mxu0 %v2335
      %2356 = vmatprep.subr.bf16.mxu0 0
      %2357 = vmatpush1.bf16.msra.mxu0 %v2336
      %2358 = vmatprep.subr.bf16.mxu0 0
      %2359 = vmatpush1.bf16.msra.mxu0 %v2337
      %2360 = vmatprep.subr.bf16.mxu0 0
      %2361 = vmatpush1.bf16.msra.mxu0 %v2338
      %2362 = vmatprep.subr.bf16.mxu0 0
      %2363 = vmatpush1.bf16.msra.mxu0 %v2339
      %2364 = vmatprep.subr.bf16.mxu0 0
      %2365 = vmatpush1.bf16.msra.mxu0 0
      %2366 = vmatprep.subr.bf16.mxu0 0
      %2367 = vmatpush1.bf16.msra.mxu0 0
      %2368 = vmatprep.subr.bf16.mxu0 0
      %2369 = vmatpush1.bf16.msra.mxu0 0
      %2370 = vmatprep.subr.bf16.mxu0 0
      %2371 = vmatpush1.bf16.msra.mxu0 0
      %2372 = vmatprep.subr.bf16.mxu0 0
      %2373 = vmatpush1.bf16.msra.mxu0 0
      %2374 = vmatprep.subr.bf16.mxu0 0
      %2375 = vmatpush1.bf16.msra.mxu0 0
      %2376 = vmatprep.subr.bf16.mxu0 0
      %2377 = vmatpush1.bf16.msra.mxu0 0
      %2378 = vmatprep.subr.bf16.mxu0 0
      %2379 = vmatpush1.bf16.msra.mxu0 0
      %2380 = vmatprep.mubr.bf16.mxu0 0
      %2381 = vmatmul.mubr.bf16.gmra.mrb[0].mxu0 %v2279
      %v2382 = vpop.f32.mrb[0].mxu0
      %v2383 = vadd.f32 0.0, %v2382
      %v2384 = vpop.f32.mrb[0].mxu0
      %v2385 = vpop.f32.mrb[0].mxu0
      %v2386 = vadd.f32 0.0, %v2385
      %v2387 = vpop.f32.mrb[0].mxu0
      %2388 = vmatprep.mubr.bf16.mxu0 0
      %2389 = vmatmul.mubr.bf16.gmra.mrb[0].mxu0 %v2280
      %v2390 = vpop.f32.mrb[0].mxu0
      %v2391 = vadd.f32 0.0, %v2390
      %v2392 = vpop.f32.mrb[0].mxu0
      %v2393 = vpop.f32.mrb[0].mxu0
      %v2394 = vadd.f32 0.0, %v2393
      %v2395 = vpop.f32.mrb[0].mxu0
      %2396 = vmatprep.mubr.bf16.mxu0 0
      %2397 = vmatmul.mubr.bf16.gmra.mrb[0].mxu0 %v2281
      %v2398 = vpop.f32.mrb[0].mxu0
      %v2399 = vadd.f32 0.0, %v2398
      %v2400 = vpop.f32.mrb[0].mxu0
      %v2401 = vpop.f32.mrb[0].mxu0
      %v2402 = vadd.f32 0.0, %v2401
      %v2403 = vpop.f32.mrb[0].mxu0
      %2404 = vmatprep.mubr.bf16.mxu0 0
      %2405 = vmatmul.mubr.bf16.gmra.mrb[0].mxu0 %v2282
      %v2406 = vpop.f32.mrb[0].mxu0
      %v2407 = vadd.f32 0.0, %v2406
      %v2408 = vpop.f32.mrb[0].mxu0
      %v2409 = vpop.f32.mrb[0].mxu0
      %v2410 = vadd.f32 0.0, %v2409
      %v2411 = vpop.f32.mrb[0].mxu0
      %2412 = vdwg.mxu0
      %v2413 = vadd.f32 %v2263, %v2383
      %v2414 = vadd.f32 %v2264, %v2386
      %v2415 = vadd.f32 %v2265, %v2391
      %v2416 = vadd.f32 %v2266, %v2394
      %v2417 = vadd.f32 %v2267, %v2399
      %v2418 = vadd.f32 %v2268, %v2402
      %v2419 = vadd.f32 %v2269, %v2407
      %v2420 = vadd.f32 %v2270, %v2410
      %v2421 = vld [vmem:[%s1829 + $0x1] sm:$0xff]
      %v2422 = vld [vmem:[%s1829 + $0x11] sm:$0xff]
      %v2423 = vld [vmem:[%s1829 + $0x21] sm:$0xff]
      %v2424 = vld [vmem:[%s1829 + $0x31] sm:$0xff]
      %v2425 = vld [vmem:[%s1829 + $0x41] sm:$0xff]
      %v2426 = vld [vmem:[%s1829 + $0x51] sm:$0xff]
      %v2427 = vld [vmem:[%s1829 + $0x61] sm:$0xff]
      %v2428 = vld [vmem:[%s1829 + $0x71] sm:$0xff]
      %v2429 = vpack.c.bf16 %v2422, %v2421
      %v2430 = vpack.c.bf16 %v2424, %v2423
      %v2431 = vpack.c.bf16 %v2426, %v2425
      %v2432 = vpack.c.bf16 %v2428, %v2427
      %s2433 = scalar_lea.vmem %s6, 256
      %v2434 = vld [vmem:[%s2433] sm:$0xf]
      %v2435 = vld [vmem:[%s2433 + $0x4] sm:$0xf]
      %v2436 = vld [vmem:[%s2433 + $0x8] sm:$0xf]
      %v2437 = vld [vmem:[%s2433 + $0xc] sm:$0xf]
      %v2438 = vld [vmem:[%s2433 + $0x10] sm:$0xf]
      %v2439 = vld [vmem:[%s2433 + $0x14] sm:$0xf]
      %v2440 = vld [vmem:[%s2433 + $0x18] sm:$0xf]
      %v2441 = vld [vmem:[%s2433 + $0x1c] sm:$0xf]
      %v2442 = vld [vmem:[%s2433 + $0x20] sm:$0xf]
      %v2443 = vld [vmem:[%s2433 + $0x24] sm:$0xf]
      %v2444 = vld [vmem:[%s2433 + $0x28] sm:$0xf]
      %v2445 = vld [vmem:[%s2433 + $0x2c] sm:$0xf]
      %v2446 = vld [vmem:[%s2433 + $0x30] sm:$0xf]
      %v2447 = vld [vmem:[%s2433 + $0x34] sm:$0xf]
      %v2448 = vld [vmem:[%s2433 + $0x38] sm:$0xf]
      %v2449 = vld [vmem:[%s2433 + $0x3c] sm:$0xf]
      %v2466 = vunpack.c.l.b16 %v2434
      %v2467 = vunpack.c.l.b16 %v2435
      %v2468 = vunpack.c.l.b16 %v2436
      %v2469 = vunpack.c.l.b16 %v2437
      %v2470 = vunpack.c.l.b16 %v2438
      %v2471 = vunpack.c.l.b16 %v2439
      %v2472 = vunpack.c.l.b16 %v2440
      %v2473 = vunpack.c.l.b16 %v2441
      %v2474 = vunpack.c.l.b16 %v2442
      %v2475 = vunpack.c.l.b16 %v2443
      %v2476 = vunpack.c.l.b16 %v2444
      %v2477 = vunpack.c.l.b16 %v2445
      %v2478 = vunpack.c.l.b16 %v2446
      %v2479 = vunpack.c.l.b16 %v2447
      %v2480 = vunpack.c.l.b16 %v2448
      %v2481 = vunpack.c.l.b16 %v2449
      %v2482 = vpack.c.b16 %v2467, %v2466
      %v2483 = vpack.c.b16 %v2469, %v2468
      %v2484 = vpack.c.b16 %v2471, %v2470
      %v2485 = vpack.c.b16 %v2473, %v2472
      %v2486 = vpack.c.b16 %v2475, %v2474
      %v2487 = vpack.c.b16 %v2477, %v2476
      %v2488 = vpack.c.b16 %v2479, %v2478
      %v2489 = vpack.c.b16 %v2481, %v2480
      %2498 = vmatprep.subr.bf16.mxu0 0
      %2499 = vmatpush1.bf16.msra.mxu0 %v2482
      %2500 = vmatprep.subr.bf16.mxu0 0
      %2501 = vmatpush1.bf16.msra.mxu0 %v2483
      %2502 = vmatprep.subr.bf16.mxu0 0
      %2503 = vmatpush1.bf16.msra.mxu0 %v2484
      %2504 = vmatprep.subr.bf16.mxu0 0
      %2505 = vmatpush1.bf16.msra.mxu0 %v2485
      %2506 = vmatprep.subr.bf16.mxu0 0
      %2507 = vmatpush1.bf16.msra.mxu0 %v2486
      %2508 = vmatprep.subr.bf16.mxu0 0
      %2509 = vmatpush1.bf16.msra.mxu0 %v2487
      %2510 = vmatprep.subr.bf16.mxu0 0
      %2511 = vmatpush1.bf16.msra.mxu0 %v2488
      %2512 = vmatprep.subr.bf16.mxu0 0
      %2513 = vmatpush1.bf16.msra.mxu0 %v2489
      %2514 = vmatprep.subr.bf16.mxu0 0
      %2515 = vmatpush1.bf16.msra.mxu0 0
      %2516 = vmatprep.subr.bf16.mxu0 0
      %2517 = vmatpush1.bf16.msra.mxu0 0
      %2518 = vmatprep.subr.bf16.mxu0 0
      %2519 = vmatpush1.bf16.msra.mxu0 0
      %2520 = vmatprep.subr.bf16.mxu0 0
      %2521 = vmatpush1.bf16.msra.mxu0 0
      %2522 = vmatprep.subr.bf16.mxu0 0
      %2523 = vmatpush1.bf16.msra.mxu0 0
      %2524 = vmatprep.subr.bf16.mxu0 0
      %2525 = vmatpush1.bf16.msra.mxu0 0
      %2526 = vmatprep.subr.bf16.mxu0 0
      %2527 = vmatpush1.bf16.msra.mxu0 0
      %2528 = vmatprep.subr.bf16.mxu0 0
      %2529 = vmatpush1.bf16.msra.mxu0 0
      %2530 = vmatprep.mubr.bf16.mxu0 0
      %2531 = vmatmul.mubr.bf16.gmra.mrb[0].mxu0 %v2429
      %v2532 = vpop.f32.mrb[0].mxu0
      %v2533 = vadd.f32 0.0, %v2532
      %v2534 = vpop.f32.mrb[0].mxu0
      %v2535 = vpop.f32.mrb[0].mxu0
      %v2536 = vadd.f32 0.0, %v2535
      %v2537 = vpop.f32.mrb[0].mxu0
      %2538 = vmatprep.mubr.bf16.mxu0 0
      %2539 = vmatmul.mubr.bf16.gmra.mrb[0].mxu0 %v2430
      %v2540 = vpop.f32.mrb[0].mxu0
      %v2541 = vadd.f32 0.0, %v2540
      %v2542 = vpop.f32.mrb[0].mxu0
      %v2543 = vpop.f32.mrb[0].mxu0
      %v2544 = vadd.f32 0.0, %v2543
      %v2545 = vpop.f32.mrb[0].mxu0
      %2546 = vmatprep.mubr.bf16.mxu0 0
      %2547 = vmatmul.mubr.bf16.gmra.mrb[0].mxu0 %v2431
      %v2548 = vpop.f32.mrb[0].mxu0
      %v2549 = vadd.f32 0.0, %v2548
      %v2550 = vpop.f32.mrb[0].mxu0
      %v2551 = vpop.f32.mrb[0].mxu0
      %v2552 = vadd.f32 0.0, %v2551
      %v2553 = vpop.f32.mrb[0].mxu0
      %2554 = vmatprep.mubr.bf16.mxu0 0
      %2555 = vmatmul.mubr.bf16.gmra.mrb[0].mxu0 %v2432
      %v2556 = vpop.f32.mrb[0].mxu0
      %v2557 = vadd.f32 0.0, %v2556
      %v2558 = vpop.f32.mrb[0].mxu0
      %v2559 = vpop.f32.mrb[0].mxu0
      %v2560 = vadd.f32 0.0, %v2559
      %v2561 = vpop.f32.mrb[0].mxu0
      %2562 = vdwg.mxu0
      %v2563 = vadd.f32 %v2413, %v2533
      %v2564 = vadd.f32 %v2414, %v2536
      %v2565 = vadd.f32 %v2415, %v2541
      %v2566 = vadd.f32 %v2416, %v2544
      %v2567 = vadd.f32 %v2417, %v2549
      %v2568 = vadd.f32 %v2418, %v2552
      %v2569 = vadd.f32 %v2419, %v2557
      %v2570 = vadd.f32 %v2420, %v2560
      %v2571 = vld [vmem:[%s1829 + $0x2] sm:$0xff]
      %v2572 = vld [vmem:[%s1829 + $0x12] sm:$0xff]
      %v2573 = vld [vmem:[%s1829 + $0x22] sm:$0xff]
      %v2574 = vld [vmem:[%s1829 + $0x32] sm:$0xff]
      %v2575 = vld [vmem:[%s1829 + $0x42] sm:$0xff]
      %v2576 = vld [vmem:[%s1829 + $0x52] sm:$0xff]
      %v2577 = vld [vmem:[%s1829 + $0x62] sm:$0xff]
      %v2578 = vld [vmem:[%s1829 + $0x72] sm:$0xff]
      %v2579 = vpack.c.bf16 %v2572, %v2571
      %v2580 = vpack.c.bf16 %v2574, %v2573
      %v2581 = vpack.c.bf16 %v2576, %v2575
      %v2582 = vpack.c.bf16 %v2578, %v2577
      %s2583 = scalar_lea.vmem %s6, 320
      %v2584 = vld [vmem:[%s2583] sm:$0xf]
      %v2585 = vld [vmem:[%s2583 + $0x4] sm:$0xf]
      %v2586 = vld [vmem:[%s2583 + $0x8] sm:$0xf]
      %v2587 = vld [vmem:[%s2583 + $0xc] sm:$0xf]
      %v2588 = vld [vmem:[%s2583 + $0x10] sm:$0xf]
      %v2589 = vld [vmem:[%s2583 + $0x14] sm:$0xf]
      %v2590 = vld [vmem:[%s2583 + $0x18] sm:$0xf]
      %v2591 = vld [vmem:[%s2583 + $0x1c] sm:$0xf]
      %v2592 = vld [vmem:[%s2583 + $0x20] sm:$0xf]
      %v2593 = vld [vmem:[%s2583 + $0x24] sm:$0xf]
      %v2594 = vld [vmem:[%s2583 + $0x28] sm:$0xf]
      %v2595 = vld [vmem:[%s2583 + $0x2c] sm:$0xf]
      %v2596 = vld [vmem:[%s2583 + $0x30] sm:$0xf]
      %v2597 = vld [vmem:[%s2583 + $0x34] sm:$0xf]
      %v2598 = vld [vmem:[%s2583 + $0x38] sm:$0xf]
      %v2599 = vld [vmem:[%s2583 + $0x3c] sm:$0xf]
      %v2616 = vunpack.c.l.b16 %v2584
      %v2617 = vunpack.c.l.b16 %v2585
      %v2618 = vunpack.c.l.b16 %v2586
      %v2619 = vunpack.c.l.b16 %v2587
      %v2620 = vunpack.c.l.b16 %v2588
      %v2621 = vunpack.c.l.b16 %v2589
      %v2622 = vunpack.c.l.b16 %v2590
      %v2623 = vunpack.c.l.b16 %v2591
      %v2624 = vunpack.c.l.b16 %v2592
      %v2625 = vunpack.c.l.b16 %v2593
      %v2626 = vunpack.c.l.b16 %v2594
      %v2627 = vunpack.c.l.b16 %v2595
      %v2628 = vunpack.c.l.b16 %v2596
      %v2629 = vunpack.c.l.b16 %v2597
      %v2630 = vunpack.c.l.b16 %v2598
      %v2631 = vunpack.c.l.b16 %v2599
      %v2632 = vpack.c.b16 %v2617, %v2616
      %v2633 = vpack.c.b16 %v2619, %v2618
      %v2634 = vpack.c.b16 %v2621, %v2620
      %v2635 = vpack.c.b16 %v2623, %v2622
      %v2636 = vpack.c.b16 %v2625, %v2624
      %v2637 = vpack.c.b16 %v2627, %v2626
      %v2638 = vpack.c.b16 %v2629, %v2628
      %v2639 = vpack.c.b16 %v2631, %v2630
      %2648 = vmatprep.subr.bf16.mxu0 0
      %2649 = vmatpush1.bf16.msra.mxu0 %v2632
      %2650 = vmatprep.subr.bf16.mxu0 0
      %2651 = vmatpush1.bf16.msra.mxu0 %v2633
      %2652 = vmatprep.subr.bf16.mxu0 0
      %2653 = vmatpush1.bf16.msra.mxu0 %v2634
      %2654 = vmatprep.subr.bf16.mxu0 0
      %2655 = vmatpush1.bf16.msra.mxu0 %v2635
      %2656 = vmatprep.subr.bf16.mxu0 0
      %2657 = vmatpush1.bf16.msra.mxu0 %v2636
      %2658 = vmatprep.subr.bf16.mxu0 0
      %2659 = vmatpush1.bf16.msra.mxu0 %v2637
      %2660 = vmatprep.subr.bf16.mxu0 0
      %2661 = vmatpush1.bf16.msra.mxu0 %v2638
      %2662 = vmatprep.subr.bf16.mxu0 0
      %2663 = vmatpush1.bf16.msra.mxu0 %v2639
      %2664 = vmatprep.subr.bf16.mxu0 0
      %2665 = vmatpush1.bf16.msra.mxu0 0
      %2666 = vmatprep.subr.bf16.mxu0 0
      %2667 = vmatpush1.bf16.msra.mxu0 0
      %2668 = vmatprep.subr.bf16.mxu0 0
      %2669 = vmatpush1.bf16.msra.mxu0 0
      %2670 = vmatprep.subr.bf16.mxu0 0
      %2671 = vmatpush1.bf16.msra.mxu0 0
      %2672 = vmatprep.subr.bf16.mxu0 0
      %2673 = vmatpush1.bf16.msra.mxu0 0
      %2674 = vmatprep.subr.bf16.mxu0 0
      %2675 = vmatpush1.bf16.msra.mxu0 0
      %2676 = vmatprep.subr.bf16.mxu0 0
      %2677 = vmatpush1.bf16.msra.mxu0 0
      %2678 = vmatprep.subr.bf16.mxu0 0
      %2679 = vmatpush1.bf16.msra.mxu0 0
      %2680 = vmatprep.mubr.bf16.mxu0 0
      %2681 = vmatmul.mubr.bf16.gmra.mrb[0].mxu0 %v2579
      %v2682 = vpop.f32.mrb[0].mxu0
      %v2683 = vadd.f32 0.0, %v2682
      %v2684 = vpop.f32.mrb[0].mxu0
      %v2685 = vpop.f32.mrb[0].mxu0
      %v2686 = vadd.f32 0.0, %v2685
      %v2687 = vpop.f32.mrb[0].mxu0
      %2688 = vmatprep.mubr.bf16.mxu0 0
      %2689 = vmatmul.mubr.bf16.gmra.mrb[0].mxu0 %v2580
      %v2690 = vpop.f32.mrb[0].mxu0
      %v2691 = vadd.f32 0.0, %v2690
      %v2692 = vpop.f32.mrb[0].mxu0
      %v2693 = vpop.f32.mrb[0].mxu0
      %v2694 = vadd.f32 0.0, %v2693
      %v2695 = vpop.f32.mrb[0].mxu0
      %2696 = vmatprep.mubr.bf16.mxu0 0
      %2697 = vmatmul.mubr.bf16.gmra.mrb[0].mxu0 %v2581
      %v2698 = vpop.f32.mrb[0].mxu0
      %v2699 = vadd.f32 0.0, %v2698
      %v2700 = vpop.f32.mrb[0].mxu0
      %v2701 = vpop.f32.mrb[0].mxu0
      %v2702 = vadd.f32 0.0, %v2701
      %v2703 = vpop.f32.mrb[0].mxu0
      %2704 = vmatprep.mubr.bf16.mxu0 0
      %2705 = vmatmul.mubr.bf16.gmra.mrb[0].mxu0 %v2582
      %v2706 = vpop.f32.mrb[0].mxu0
      %v2707 = vadd.f32 0.0, %v2706
      %v2708 = vpop.f32.mrb[0].mxu0
      %v2709 = vpop.f32.mrb[0].mxu0
      %v2710 = vadd.f32 0.0, %v2709
      %v2711 = vpop.f32.mrb[0].mxu0
      %2712 = vdwg.mxu0
      %v2713 = vadd.f32 %v2563, %v2683
      %v2714 = vadd.f32 %v2564, %v2686
      %v2715 = vadd.f32 %v2565, %v2691
      %v2716 = vadd.f32 %v2566, %v2694
      %v2717 = vadd.f32 %v2567, %v2699
      %v2718 = vadd.f32 %v2568, %v2702
      %v2719 = vadd.f32 %v2569, %v2707
      %v2720 = vadd.f32 %v2570, %v2710
      %s2721 = scalar_lea.vmem [#allocation2], 32
      %v2722 = vld [vmem:[%s2721] sm:$0xff]
      %v2723 = vld [vmem:[%s2721 + $0x10] sm:$0xff]
      %v2724 = vld [vmem:[%s2721 + $0x20] sm:$0xff]
      %v2725 = vld [vmem:[%s2721 + $0x30] sm:$0xff]
      %v2726 = vld [vmem:[%s2721 + $0x40] sm:$0xff]
      %v2727 = vld [vmem:[%s2721 + $0x50] sm:$0xff]
      %v2728 = vld [vmem:[%s2721 + $0x60] sm:$0xff]
      %v2729 = vld [vmem:[%s2721 + $0x70] sm:$0xff]
      %v2730 = vpack.c.bf16 %v2723, %v2722
      %v2731 = vpack.c.bf16 %v2725, %v2724
      %v2732 = vpack.c.bf16 %v2727, %v2726
      %v2733 = vpack.c.bf16 %v2729, %v2728
      %s2734 = scalar_lea.vmem %s6, 384
      %v2735 = vld [vmem:[%s2734] sm:$0xf]
      %v2736 = vld [vmem:[%s2734 + $0x4] sm:$0xf]
      %v2737 = vld [vmem:[%s2734 + $0x8] sm:$0xf]
      %v2738 = vld [vmem:[%s2734 + $0xc] sm:$0xf]
      %v2739 = vld [vmem:[%s2734 + $0x10] sm:$0xf]
      %v2740 = vld [vmem:[%s2734 + $0x14] sm:$0xf]
      %v2741 = vld [vmem:[%s2734 + $0x18] sm:$0xf]
      %v2742 = vld [vmem:[%s2734 + $0x1c] sm:$0xf]
      %v2743 = vld [vmem:[%s2734 + $0x20] sm:$0xf]
      %v2744 = vld [vmem:[%s2734 + $0x24] sm:$0xf]
      %v2745 = vld [vmem:[%s2734 + $0x28] sm:$0xf]
      %v2746 = vld [vmem:[%s2734 + $0x2c] sm:$0xf]
      %v2747 = vld [vmem:[%s2734 + $0x30] sm:$0xf]
      %v2748 = vld [vmem:[%s2734 + $0x34] sm:$0xf]
      %v2749 = vld [vmem:[%s2734 + $0x38] sm:$0xf]
      %v2750 = vld [vmem:[%s2734 + $0x3c] sm:$0xf]
      %v2767 = vunpack.c.l.b16 %v2735
      %v2768 = vunpack.c.l.b16 %v2736
      %v2769 = vunpack.c.l.b16 %v2737
      %v2770 = vunpack.c.l.b16 %v2738
      %v2771 = vunpack.c.l.b16 %v2739
      %v2772 = vunpack.c.l.b16 %v2740
      %v2773 = vunpack.c.l.b16 %v2741
      %v2774 = vunpack.c.l.b16 %v2742
      %v2775 = vunpack.c.l.b16 %v2743
      %v2776 = vunpack.c.l.b16 %v2744
      %v2777 = vunpack.c.l.b16 %v2745
      %v2778 = vunpack.c.l.b16 %v2746
      %v2779 = vunpack.c.l.b16 %v2747
      %v2780 = vunpack.c.l.b16 %v2748
      %v2781 = vunpack.c.l.b16 %v2749
      %v2782 = vunpack.c.l.b16 %v2750
      %v2783 = vpack.c.b16 %v2768, %v2767
      %v2784 = vpack.c.b16 %v2770, %v2769
      %v2785 = vpack.c.b16 %v2772, %v2771
      %v2786 = vpack.c.b16 %v2774, %v2773
      %v2787 = vpack.c.b16 %v2776, %v2775
      %v2788 = vpack.c.b16 %v2778, %v2777
      %v2789 = vpack.c.b16 %v2780, %v2779
      %v2790 = vpack.c.b16 %v2782, %v2781
      %2799 = vmatprep.subr.bf16.mxu0 0
      %2800 = vmatpush1.bf16.msra.mxu0 %v2783
      %2801 = vmatprep.subr.bf16.mxu0 0
      %2802 = vmatpush1.bf16.msra.mxu0 %v2784
      %2803 = vmatprep.subr.bf16.mxu0 0
      %2804 = vmatpush1.bf16.msra.mxu0 %v2785
      %2805 = vmatprep.subr.bf16.mxu0 0
      %2806 = vmatpush1.bf16.msra.mxu0 %v2786
      %2807 = vmatprep.subr.bf16.mxu0 0
      %2808 = vmatpush1.bf16.msra.mxu0 %v2787
      %2809 = vmatprep.subr.bf16.mxu0 0
      %2810 = vmatpush1.bf16.msra.mxu0 %v2788
      %2811 = vmatprep.subr.bf16.mxu0 0
      %2812 = vmatpush1.bf16.msra.mxu0 %v2789
      %2813 = vmatprep.subr.bf16.mxu0 0
      %2814 = vmatpush1.bf16.msra.mxu0 %v2790
      %2815 = vmatprep.subr.bf16.mxu0 0
      %2816 = vmatpush1.bf16.msra.mxu0 0
      %2817 = vmatprep.subr.bf16.mxu0 0
      %2818 = vmatpush1.bf16.msra.mxu0 0
      %2819 = vmatprep.subr.bf16.mxu0 0
      %2820 = vmatpush1.bf16.msra.mxu0 0
      %2821 = vmatprep.subr.bf16.mxu0 0
      %2822 = vmatpush1.bf16.msra.mxu0 0
      %2823 = vmatprep.subr.bf16.mxu0 0
      %2824 = vmatpush1.bf16.msra.mxu0 0
      %2825 = vmatprep.subr.bf16.mxu0 0
      %2826 = vmatpush1.bf16.msra.mxu0 0
      %2827 = vmatprep.subr.bf16.mxu0 0
      %2828 = vmatpush1.bf16.msra.mxu0 0
      %2829 = vmatprep.subr.bf16.mxu0 0
      %2830 = vmatpush1.bf16.msra.mxu0 0
      %2831 = vmatprep.mubr.bf16.mxu0 0
      %2832 = vmatmul.mubr.bf16.gmra.mrb[0].mxu0 %v2730
      %v2833 = vpop.f32.mrb[0].mxu0
      %v2834 = vadd.f32 0.0, %v2833
      %v2835 = vpop.f32.mrb[0].mxu0
      %v2836 = vpop.f32.mrb[0].mxu0
      %v2837 = vadd.f32 0.0, %v2836
      %v2838 = vpop.f32.mrb[0].mxu0
      %2839 = vmatprep.mubr.bf16.mxu0 0
      %2840 = vmatmul.mubr.bf16.gmra.mrb[0].mxu0 %v2731
      %v2841 = vpop.f32.mrb[0].mxu0
      %v2842 = vadd.f32 0.0, %v2841
      %v2843 = vpop.f32.mrb[0].mxu0
      %v2844 = vpop.f32.mrb[0].mxu0
      %v2845 = vadd.f32 0.0, %v2844
      %v2846 = vpop.f32.mrb[0].mxu0
      %2847 = vmatprep.mubr.bf16.mxu0 0
      %2848 = vmatmul.mubr.bf16.gmra.mrb[0].mxu0 %v2732
      %v2849 = vpop.f32.mrb[0].mxu0
      %v2850 = vadd.f32 0.0, %v2849
      %v2851 = vpop.f32.mrb[0].mxu0
      %v2852 = vpop.f32.mrb[0].mxu0
      %v2853 = vadd.f32 0.0, %v2852
      %v2854 = vpop.f32.mrb[0].mxu0
      %2855 = vmatprep.mubr.bf16.mxu0 0
      %2856 = vmatmul.mubr.bf16.gmra.mrb[0].mxu0 %v2733
      %v2857 = vpop.f32.mrb[0].mxu0
      %v2858 = vadd.f32 0.0, %v2857
      %v2859 = vpop.f32.mrb[0].mxu0
      %v2860 = vpop.f32.mrb[0].mxu0
      %v2861 = vadd.f32 0.0, %v2860
      %v2862 = vpop.f32.mrb[0].mxu0
      %2863 = vdwg.mxu0
      %v2864 = vadd.f32 %v2713, %v2834
      %v2865 = vadd.f32 %v2714, %v2837
      %v2866 = vadd.f32 %v2715, %v2842
      %v2867 = vadd.f32 %v2716, %v2845
      %v2868 = vadd.f32 %v2717, %v2850
      %v2869 = vadd.f32 %v2718, %v2853
      %v2870 = vadd.f32 %v2719, %v2858
      %v2871 = vadd.f32 %v2720, %v2861
      %v2872 = vld [vmem:[%s2721 + $0x1] sm:$0xff]
      %v2873 = vld [vmem:[%s2721 + $0x11] sm:$0xff]
      %v2874 = vld [vmem:[%s2721 + $0x21] sm:$0xff]
      %v2875 = vld [vmem:[%s2721 + $0x31] sm:$0xff]
      %v2876 = vld [vmem:[%s2721 + $0x41] sm:$0xff]
      %v2877 = vld [vmem:[%s2721 + $0x51] sm:$0xff]
      %v2878 = vld [vmem:[%s2721 + $0x61] sm:$0xff]
      %v2879 = vld [vmem:[%s2721 + $0x71] sm:$0xff]
      %v2880 = vpack.c.bf16 %v2873, %v2872
      %v2881 = vpack.c.bf16 %v2875, %v2874
      %v2882 = vpack.c.bf16 %v2877, %v2876
      %v2883 = vpack.c.bf16 %v2879, %v2878
      %s2884 = scalar_lea.vmem %s6, 448
      %v2885 = vld [vmem:[%s2884] sm:$0xf]
      %v2886 = vld [vmem:[%s2884 + $0x4] sm:$0xf]
      %v2887 = vld [vmem:[%s2884 + $0x8] sm:$0xf]
      %v2888 = vld [vmem:[%s2884 + $0xc] sm:$0xf]
      %v2889 = vld [vmem:[%s2884 + $0x10] sm:$0xf]
      %v2890 = vld [vmem:[%s2884 + $0x14] sm:$0xf]
      %v2891 = vld [vmem:[%s2884 + $0x18] sm:$0xf]
      %v2892 = vld [vmem:[%s2884 + $0x1c] sm:$0xf]
      %v2893 = vld [vmem:[%s2884 + $0x20] sm:$0xf]
      %v2894 = vld [vmem:[%s2884 + $0x24] sm:$0xf]
      %v2895 = vld [vmem:[%s2884 + $0x28] sm:$0xf]
      %v2896 = vld [vmem:[%s2884 + $0x2c] sm:$0xf]
      %v2897 = vld [vmem:[%s2884 + $0x30] sm:$0xf]
      %v2898 = vld [vmem:[%s2884 + $0x34] sm:$0xf]
      %v2899 = vld [vmem:[%s2884 + $0x38] sm:$0xf]
      %v2900 = vld [vmem:[%s2884 + $0x3c] sm:$0xf]
      %v2917 = vunpack.c.l.b16 %v2885
      %v2918 = vunpack.c.l.b16 %v2886
      %v2919 = vunpack.c.l.b16 %v2887
      %v2920 = vunpack.c.l.b16 %v2888
      %v2921 = vunpack.c.l.b16 %v2889
      %v2922 = vunpack.c.l.b16 %v2890
      %v2923 = vunpack.c.l.b16 %v2891
      %v2924 = vunpack.c.l.b16 %v2892
      %v2925 = vunpack.c.l.b16 %v2893
      %v2926 = vunpack.c.l.b16 %v2894
      %v2927 = vunpack.c.l.b16 %v2895
      %v2928 = vunpack.c.l.b16 %v2896
      %v2929 = vunpack.c.l.b16 %v2897
      %v2930 = vunpack.c.l.b16 %v2898
      %v2931 = vunpack.c.l.b16 %v2899
      %v2932 = vunpack.c.l.b16 %v2900
      %v2933 = vpack.c.b16 %v2918, %v2917
      %v2934 = vpack.c.b16 %v2920, %v2919
      %v2935 = vpack.c.b16 %v2922, %v2921
      %v2936 = vpack.c.b16 %v2924, %v2923
      %v2937 = vpack.c.b16 %v2926, %v2925
      %v2938 = vpack.c.b16 %v2928, %v2927
      %v2939 = vpack.c.b16 %v2930, %v2929
      %v2940 = vpack.c.b16 %v2932, %v2931
      %2949 = vmatprep.subr.bf16.mxu0 0
      %2950 = vmatpush1.bf16.msra.mxu0 %v2933
      %2951 = vmatprep.subr.bf16.mxu0 0
      %2952 = vmatpush1.bf16.msra.mxu0 %v2934
      %2953 = vmatprep.subr.bf16.mxu0 0
      %2954 = vmatpush1.bf16.msra.mxu0 %v2935
      %2955 = vmatprep.subr.bf16.mxu0 0
      %2956 = vmatpush1.bf16.msra.mxu0 %v2936
      %2957 = vmatprep.subr.bf16.mxu0 0
      %2958 = vmatpush1.bf16.msra.mxu0 %v2937
      %2959 = vmatprep.subr.bf16.mxu0 0
      %2960 = vmatpush1.bf16.msra.mxu0 %v2938
      %2961 = vmatprep.subr.bf16.mxu0 0
      %2962 = vmatpush1.bf16.msra.mxu0 %v2939
      %2963 = vmatprep.subr.bf16.mxu0 0
      %2964 = vmatpush1.bf16.msra.mxu0 %v2940
      %2965 = vmatprep.subr.bf16.mxu0 0
      %2966 = vmatpush1.bf16.msra.mxu0 0
      %2967 = vmatprep.subr.bf16.mxu0 0
      %2968 = vmatpush1.bf16.msra.mxu0 0
      %2969 = vmatprep.subr.bf16.mxu0 0
      %2970 = vmatpush1.bf16.msra.mxu0 0
      %2971 = vmatprep.subr.bf16.mxu0 0
      %2972 = vmatpush1.bf16.msra.mxu0 0
      %2973 = vmatprep.subr.bf16.mxu0 0
      %2974 = vmatpush1.bf16.msra.mxu0 0
      %2975 = vmatprep.subr.bf16.mxu0 0
      %2976 = vmatpush1.bf16.msra.mxu0 0
      %2977 = vmatprep.subr.bf16.mxu0 0
      %2978 = vmatpush1.bf16.msra.mxu0 0
      %2979 = vmatprep.subr.bf16.mxu0 0
      %2980 = vmatpush1.bf16.msra.mxu0 0
      %2981 = vmatprep.mubr.bf16.mxu0 0
      %2982 = vmatmul.mubr.bf16.gmra.mrb[0].mxu0 %v2880
      %v2983 = vpop.f32.mrb[0].mxu0
      %v2984 = vadd.f32 0.0, %v2983
      %v2985 = vpop.f32.mrb[0].mxu0
      %v2986 = vpop.f32.mrb[0].mxu0
      %v2987 = vadd.f32 0.0, %v2986
      %v2988 = vpop.f32.mrb[0].mxu0
      %2989 = vmatprep.mubr.bf16.mxu0 0
      %2990 = vmatmul.mubr.bf16.gmra.mrb[0].mxu0 %v2881
      %v2991 = vpop.f32.mrb[0].mxu0
      %v2992 = vadd.f32 0.0, %v2991
      %v2993 = vpop.f32.mrb[0].mxu0
      %v2994 = vpop.f32.mrb[0].mxu0
      %v2995 = vadd.f32 0.0, %v2994
      %v2996 = vpop.f32.mrb[0].mxu0
      %2997 = vmatprep.mubr.bf16.mxu0 0
      %2998 = vmatmul.mubr.bf16.gmra.mrb[0].mxu0 %v2882
      %v2999 = vpop.f32.mrb[0].mxu0
      %v3000 = vadd.f32 0.0, %v2999
      %v3001 = vpop.f32.mrb[0].mxu0
      %v3002 = vpop.f32.mrb[0].mxu0
      %v3003 = vadd.f32 0.0, %v3002
      %v3004 = vpop.f32.mrb[0].mxu0
      %3005 = vmatprep.mubr.bf16.mxu0 0
      %3006 = vmatmul.mubr.bf16.gmra.mrb[0].mxu0 %v2883
      %v3007 = vpop.f32.mrb[0].mxu0
      %v3008 = vadd.f32 0.0, %v3007
      %v3009 = vpop.f32.mrb[0].mxu0
      %v3010 = vpop.f32.mrb[0].mxu0
      %v3011 = vadd.f32 0.0, %v3010
      %v3012 = vpop.f32.mrb[0].mxu0
      %3013 = vdwg.mxu0
      %v3014 = vadd.f32 %v2864, %v2984
      %v3015 = vadd.f32 %v2865, %v2987
      %v3016 = vadd.f32 %v2866, %v2992
      %v3017 = vadd.f32 %v2867, %v2995
      %v3018 = vadd.f32 %v2868, %v3000
      %v3019 = vadd.f32 %v2869, %v3003
      %v3020 = vadd.f32 %v2870, %v3008
      %v3021 = vadd.f32 %v2871, %v3011
      %v3022 = vld [vmem:[%s2721 + $0x2] sm:$0xff]
      %v3023 = vld [vmem:[%s2721 + $0x12] sm:$0xff]
      %v3024 = vld [vmem:[%s2721 + $0x22] sm:$0xff]
      %v3025 = vld [vmem:[%s2721 + $0x32] sm:$0xff]
      %v3026 = vld [vmem:[%s2721 + $0x42] sm:$0xff]
      %v3027 = vld [vmem:[%s2721 + $0x52] sm:$0xff]
      %v3028 = vld [vmem:[%s2721 + $0x62] sm:$0xff]
      %v3029 = vld [vmem:[%s2721 + $0x72] sm:$0xff]
      %v3030 = vpack.c.bf16 %v3023, %v3022
      %v3031 = vpack.c.bf16 %v3025, %v3024
      %v3032 = vpack.c.bf16 %v3027, %v3026
      %v3033 = vpack.c.bf16 %v3029, %v3028
      %s3034 = scalar_lea.vmem %s6, 512
      %v3035 = vld [vmem:[%s3034] sm:$0xf]
      %v3036 = vld [vmem:[%s3034 + $0x4] sm:$0xf]
      %v3037 = vld [vmem:[%s3034 + $0x8] sm:$0xf]
      %v3038 = vld [vmem:[%s3034 + $0xc] sm:$0xf]
      %v3039 = vld [vmem:[%s3034 + $0x10] sm:$0xf]
      %v3040 = vld [vmem:[%s3034 + $0x14] sm:$0xf]
      %v3041 = vld [vmem:[%s3034 + $0x18] sm:$0xf]
      %v3042 = vld [vmem:[%s3034 + $0x1c] sm:$0xf]
      %v3043 = vld [vmem:[%s3034 + $0x20] sm:$0xf]
      %v3044 = vld [vmem:[%s3034 + $0x24] sm:$0xf]
      %v3045 = vld [vmem:[%s3034 + $0x28] sm:$0xf]
      %v3046 = vld [vmem:[%s3034 + $0x2c] sm:$0xf]
      %v3047 = vld [vmem:[%s3034 + $0x30] sm:$0xf]
      %v3048 = vld [vmem:[%s3034 + $0x34] sm:$0xf]
      %v3049 = vld [vmem:[%s3034 + $0x38] sm:$0xf]
      %v3050 = vld [vmem:[%s3034 + $0x3c] sm:$0xf]
      %v3067 = vunpack.c.l.b16 %v3035
      %v3068 = vunpack.c.l.b16 %v3036
      %v3069 = vunpack.c.l.b16 %v3037
      %v3070 = vunpack.c.l.b16 %v3038
      %v3071 = vunpack.c.l.b16 %v3039
      %v3072 = vunpack.c.l.b16 %v3040
      %v3073 = vunpack.c.l.b16 %v3041
      %v3074 = vunpack.c.l.b16 %v3042
      %v3075 = vunpack.c.l.b16 %v3043
      %v3076 = vunpack.c.l.b16 %v3044
      %v3077 = vunpack.c.l.b16 %v3045
      %v3078 = vunpack.c.l.b16 %v3046
      %v3079 = vunpack.c.l.b16 %v3047
      %v3080 = vunpack.c.l.b16 %v3048
      %v3081 = vunpack.c.l.b16 %v3049
      %v3082 = vunpack.c.l.b16 %v3050
      %v3083 = vpack.c.b16 %v3068, %v3067
      %v3084 = vpack.c.b16 %v3070, %v3069
      %v3085 = vpack.c.b16 %v3072, %v3071
      %v3086 = vpack.c.b16 %v3074, %v3073
      %v3087 = vpack.c.b16 %v3076, %v3075
      %v3088 = vpack.c.b16 %v3078, %v3077
      %v3089 = vpack.c.b16 %v3080, %v3079
      %v3090 = vpack.c.b16 %v3082, %v3081
      %3099 = vmatprep.subr.bf16.mxu0 0
      %3100 = vmatpush1.bf16.msra.mxu0 %v3083
      %3101 = vmatprep.subr.bf16.mxu0 0
      %3102 = vmatpush1.bf16.msra.mxu0 %v3084
      %3103 = vmatprep.subr.bf16.mxu0 0
      %3104 = vmatpush1.bf16.msra.mxu0 %v3085
      %3105 = vmatprep.subr.bf16.mxu0 0
      %3106 = vmatpush1.bf16.msra.mxu0 %v3086
      %3107 = vmatprep.subr.bf16.mxu0 0
      %3108 = vmatpush1.bf16.msra.mxu0 %v3087
      %3109 = vmatprep.subr.bf16.mxu0 0
      %3110 = vmatpush1.bf16.msra.mxu0 %v3088
      %3111 = vmatprep.subr.bf16.mxu0 0
      %3112 = vmatpush1.bf16.msra.mxu0 %v3089
      %3113 = vmatprep.subr.bf16.mxu0 0
      %3114 = vmatpush1.bf16.msra.mxu0 %v3090
      %3115 = vmatprep.subr.bf16.mxu0 0
      %3116 = vmatpush1.bf16.msra.mxu0 0
      %3117 = vmatprep.subr.bf16.mxu0 0
      %3118 = vmatpush1.bf16.msra.mxu0 0
      %3119 = vmatprep.subr.bf16.mxu0 0
      %3120 = vmatpush1.bf16.msra.mxu0 0
      %3121 = vmatprep.subr.bf16.mxu0 0
      %3122 = vmatpush1.bf16.msra.mxu0 0
      %3123 = vmatprep.subr.bf16.mxu0 0
      %3124 = vmatpush1.bf16.msra.mxu0 0
      %3125 = vmatprep.subr.bf16.mxu0 0
      %3126 = vmatpush1.bf16.msra.mxu0 0
      %3127 = vmatprep.subr.bf16.mxu0 0
      %3128 = vmatpush1.bf16.msra.mxu0 0
      %3129 = vmatprep.subr.bf16.mxu0 0
      %3130 = vmatpush1.bf16.msra.mxu0 0
      %3131 = vmatprep.mubr.bf16.mxu0 0
      %3132 = vmatmul.mubr.bf16.gmra.mrb[0].mxu0 %v3030
      %v3133 = vpop.f32.mrb[0].mxu0
      %v3134 = vadd.f32 0.0, %v3133
      %v3135 = vpop.f32.mrb[0].mxu0
      %v3136 = vpop.f32.mrb[0].mxu0
      %v3137 = vadd.f32 0.0, %v3136
      %v3138 = vpop.f32.mrb[0].mxu0
      %3139 = vmatprep.mubr.bf16.mxu0 0
      %3140 = vmatmul.mubr.bf16.gmra.mrb[0].mxu0 %v3031
      %v3141 = vpop.f32.mrb[0].mxu0
      %v3142 = vadd.f32 0.0, %v3141
      %v3143 = vpop.f32.mrb[0].mxu0
      %v3144 = vpop.f32.mrb[0].mxu0
      %v3145 = vadd.f32 0.0, %v3144
      %v3146 = vpop.f32.mrb[0].mxu0
      %3147 = vmatprep.mubr.bf16.mxu0 0
      %3148 = vmatmul.mubr.bf16.gmra.mrb[0].mxu0 %v3032
      %v3149 = vpop.f32.mrb[0].mxu0
      %v3150 = vadd.f32 0.0, %v3149
      %v3151 = vpop.f32.mrb[0].mxu0
      %v3152 = vpop.f32.mrb[0].mxu0
      %v3153 = vadd.f32 0.0, %v3152
      %v3154 = vpop.f32.mrb[0].mxu0
      %3155 = vmatprep.mubr.bf16.mxu0 0
      %3156 = vmatmul.mubr.bf16.gmra.mrb[0].mxu0 %v3033
      %v3157 = vpop.f32.mrb[0].mxu0
      %v3158 = vadd.f32 0.0, %v3157
      %v3159 = vpop.f32.mrb[0].mxu0
      %v3160 = vpop.f32.mrb[0].mxu0
      %v3161 = vadd.f32 0.0, %v3160
      %v3162 = vpop.f32.mrb[0].mxu0
      %3163 = vdwg.mxu0
      %v3164 = vadd.f32 %v3014, %v3134
      %v3165 = vadd.f32 %v3015, %v3137
      %v3166 = vadd.f32 %v3016, %v3142
      %v3167 = vadd.f32 %v3017, %v3145
      %v3168 = vadd.f32 %v3018, %v3150
      %v3169 = vadd.f32 %v3019, %v3153
      %v3170 = vadd.f32 %v3020, %v3158
      %v3171 = vadd.f32 %v3021, %v3161
      %v3172 = vld [vmem:[%s7] sm:$0x1]
      %v3174 = vlaneseq
      %v3175 = vshrl.u32 %v3174, 7
      %v3176 = vsub.s32 0, %v3175
      %v3177 = vrot.slane %v3172, %v3176
      %v3179 = vadd.f32 %v3164, %v3177
      %v3180 = vadd.f32 %v3165, %v3177
      %v3181 = vadd.f32 %v3166, %v3177
      %v3182 = vadd.f32 %v3167, %v3177
      %v3183 = vadd.f32 %v3168, %v3177
      %v3184 = vadd.f32 %v3169, %v3177
      %v3185 = vadd.f32 %v3170, %v3177
      %v3186 = vadd.f32 %v3171, %v3177
      %v3187 = vadd.f32 %v3179, %v1786
      %v3188 = vadd.f32 %v3180, %v1788
      %v3189 = vadd.f32 %v3181, %v1790
      %v3190 = vadd.f32 %v3182, %v1792
      %v3191 = vadd.f32 %v3183, %v1794
      %v3192 = vadd.f32 %v3184, %v1796
      %v3193 = vadd.f32 %v3185, %v1798
      %v3194 = vadd.f32 %v3186, %v1800
      %v3195 = vmax.f32 %v3187, 0.0
      %v3196 = vmax.f32 %v3188, 0.0
      %v3197 = vmax.f32 %v3189, 0.0
      %v3198 = vmax.f32 %v3190, 0.0
      %v3199 = vmax.f32 %v3191, 0.0
      %v3200 = vmax.f32 %v3192, 0.0
      %v3201 = vmax.f32 %v3193, 0.0
      %v3202 = vmax.f32 %v3194, 0.0
      %v3203 = vpack.c.bf16 %v3196, %v3195
      %v3204 = vpack.c.bf16 %v3198, %v3197
      %v3205 = vpack.c.bf16 %v3200, %v3199
      %v3206 = vpack.c.bf16 %v3202, %v3201
      %v3211 = vunpack.c.l.b16 %v3203
      %v3212 = vunpack.c.h.b16 %v3203
      %v3213 = vunpack.c.l.b16 %v3204
      %v3214 = vunpack.c.h.b16 %v3204
      %v3215 = vunpack.c.l.b16 %v3205
      %v3216 = vunpack.c.h.b16 %v3205
      %v3217 = vunpack.c.l.b16 %v3206
      %v3218 = vunpack.c.h.b16 %v3206
      %v3219 = vpack.c.b16 %v3211, %v3211
      %v3220 = vpack.c.b16 %v3212, %v3212
      %v3221 = vpack.c.b16 %v3213, %v3213
      %v3222 = vpack.c.b16 %v3214, %v3214
      %v3223 = vpack.c.b16 %v3215, %v3215
      %v3224 = vpack.c.b16 %v3216, %v3216
      %v3225 = vpack.c.b16 %v3217, %v3217
      %v3226 = vpack.c.b16 %v3218, %v3218
      %3235 = vst [vmem:[%s365] sm:$0xf] %v3219
      %3236 = vst [vmem:[%s365 + $0x4] sm:$0xf] %v3220
      %3237 = vst [vmem:[%s365 + $0x8] sm:$0xf] %v3221
      %3238 = vst [vmem:[%s365 + $0xc] sm:$0xf] %v3222
      %3239 = vst [vmem:[%s365 + $0x10] sm:$0xf] %v3223
      %3240 = vst [vmem:[%s365 + $0x14] sm:$0xf] %v3224
      %3241 = vst [vmem:[%s365 + $0x18] sm:$0xf] %v3225
      %3242 = vst [vmem:[%s365 + $0x1c] sm:$0xf] %v3226
      %p3243 = scmp.lt.s32.totalorder %s19, 1
      %s3244 = scalar_select %p3243, %s19, 1
      %s3245 = smul.addr %s3244, 8
      %s3246 = smul.addr %s3245, 4
      %s3247 = scalar_lea.vmem %s8, %s3246
      // Predicated region
      $region53: #{resblock_forward.1} parent=51 // pred_check
        %p3248 = pneg %p225
      $region54: #{resblock_forward.1} parent=51 // pred_check_branch
        %3250 = sbr.rel (%p3248) target = $region56
      $region55: #{resblock_forward.1} parent=51 // pred_region
        _
      $region56: #{resblock_forward.1} parent=51 // pred_fallthru
        _
    $region52: #{resblock_forward.1} parent=5 // pred_fallthru
      _
    %p3251 = scmp.le.s32.totalorder 2, %s14
    // Predicated region
    $region57: #{resblock_forward.1} parent=5 // pred_check
      %p3252 = pneg %p3251
    $region58: #{resblock_forward.1} parent=5 // pred_check_branch
      %3254 = sbr.rel (%p3252) target = $region60
    $region59: #{resblock_forward.1} parent=5 // pred_region
      %s3255 = ssub.s32 %s14, 2
      // Predicated region
      $region61: #{resblock_forward.1} parent=59 // pred_check
        %p3256 = pneg %p231
      $region62: #{resblock_forward.1} parent=59 // pred_check_branch
        %3258 = sbr.rel (%p3256) target = $region64
      $region63: #{resblock_forward.1} parent=59 // pred_region
        %p3259 = scmp.lt.s32.totalorder %s20, 1
        %s3260 = scalar_select %p3259, %s20, 1
        %s3261 = smul.addr %s3260, 8
        %s3262 = smul.addr %s3261, 4
        %s3263 = scalar_lea.vmem %s8, %s3262
      $region64: #{resblock_forward.1} parent=59 // pred_fallthru
        _
    $region60: #{resblock_forward.1} parent=5 // pred_fallthru
      _
  $region6: #{resblock_forward.1} parent=0 // loop_footer
    %s18 = sadd.s32 1, %s14
  $region7: #{resblock_forward.1} parent=0 // loop_footer_branch
    %13 = sbr.rel target = $region3
  $region8: #{resblock_forward.1} parent=0 // loop_exit
    _

</llo_original>
